<compile_context>
chip_gen: v7x
topology: tpu7x:2x2x1
jax: 0.10.0
libtpu: 0.0.40
codegen_flags: <defaults>
</compile_context>

<pallas_src>
import jax
import jax.numpy as jnp
from jax.experimental import pallas as pl
from jax.experimental.pallas import tpu as pltpu


def _gelu_tanh(x):
    # tanh-approximation GELU (tanh maps to the EUP slot on TPU).
    # TODO(synk): PyTorch nn.GELU() defaults to the exact erf form; the tanh
    # approximation differs at the ~1e-3 level (intentional, EUP-friendly).
    c = 0.7978845608028654  # sqrt(2/pi)
    return 0.5 * x * (1.0 + jnp.tanh(c * (x + 0.044715 * x * x * x)))


def residual_mlp_kernel(x_ref, w1_ref, b1_ref, w2_ref, b2_ref, o_ref):
    # x_ref:  (tm, D) token tile (activation dtype: f32 or bf16)
    # w1_ref: (D, H) bf16   b1_ref: (1, H) f32
    # w2_ref: (H, D) bf16   b2_ref: (1, D) f32
    h = jnp.dot(x_ref[...].astype(jnp.bfloat16), w1_ref[...],
                preferred_element_type=jnp.float32)
    h = _gelu_tanh(h + b1_ref[...])
    y = jnp.dot(h.astype(jnp.bfloat16), w2_ref[...],
                preferred_element_type=jnp.float32)
    # Fused bias + residual epilogue.  x is re-read from VMEM here (vld slots
    # have slack) instead of holding an f32 copy live across both matmuls,
    # which would stretch live ranges past the (tm, H) intermediate and spill.
    o_ref[...] = (y + b2_ref[...]
                  + x_ref[...].astype(jnp.float32)).astype(o_ref.dtype)


def _round_up(a, b):
    return ((a + b - 1) // b) * b


def residual_mlp(x, w1, b1, w2, b2, *, tm=512):
    """out = GELU(x @ w1 + b1) @ w2 + b2 + x, fused in one Pallas kernel."""
    M, D = x.shape
    H = w1.shape[1]
    assert w1.shape == (D, H) and w2.shape == (H, D)
    assert b1.shape == (H,) and b2.shape == (D,)
    assert D % 128 == 0 and H % 128 == 0, "keep D/H multiples of 128 (lane-dense)"

    act_bytes = x.dtype.itemsize

    # ---- Generation-aware VMEM budget --------------------------------------
    try:
        vmem_cap = pltpu.get_tpu_info().vmem_capacity_bytes
    except Exception:
        vmem_cap = 64 * 2**20  # conservative fallback (v7x per-TC VMEM)
    budget = int(0.85 * vmem_cap)

    def footprint(tm_, wbuf):
        return (2 * tm_ * D * act_bytes        # x tiles (double-buffered)
                + 2 * tm_ * D * act_bytes      # out tiles (double-buffered)
                + wbuf * 2 * D * H * 2         # W1 + W2 (bf16)
                + wbuf * (H + D) * 4           # biases (f32)
                + tm_ * H * 4                  # (tm, H) f32 GELU intermediate
                + tm_ * D * 4)                 # (tm, D) f32 matmul-2 result

    # Token tile: as large as fits (bigger tiles amortize the ~0.35 us/step
    # pipeline overhead), kept a multiple of 256 for full v6e/v7x MXU M-passes.
    tm = max(256, min(_round_up(tm, 256), _round_up(M, 256)))
    while tm > 256 and footprint(tm, wbuf=1) > budget:
        tm -= 256
    # TODO(synk): for production Swin/ViT dims on v7x (64 MiB VMEM/TC) where
    # resident bf16 weights + the (tm, H) f32 intermediate exceed the budget
    # even at tm=256, add an H-split "arbitrary" grid axis that streams W1
    # column-blocks / W2 row-blocks into a (tm, D) f32 VMEM accumulator.

    est = footprint(tm, wbuf=2)  # conservative: covers double-buffered fallback
    vmem_limit = int(min(budget, max(2 * est, 32 * 2**20)))
    vmem_limit = max(vmem_limit, est)

    # ---- Operand prep (no pad/slice HBM passes over x / out) ---------------
    w1_bf = w1.astype(jnp.bfloat16)   # bf16 weights: native MXU rate, half VMEM
    w2_bf = w2.astype(jnp.bfloat16)
    b1_2d = b1.astype(jnp.float32).reshape(1, H)
    b2_2d = b2.astype(jnp.float32).reshape(1, D)

    grid = (pl.cdiv(M, tm),)  # ragged last tile handled by Pallas masking

    cost = pl.CostEstimate(
        flops=4 * M * D * H,                      # two matmuls
        transcendentals=M * H,                    # tanh in GELU
        bytes_accessed=(2 * M * D * act_bytes     # x in + out
                        + 2 * D * H * 2           # bf16 weights
                        + (H + D) * 4))           # biases

    def const_spec(shape, weight_mode):
        # Grid-invariant operand (index_map constant across the grid).
        if weight_mode is None:
            return pl.BlockSpec(shape, lambda i: (0, 0))
        return pl.BlockSpec(shape, lambda i: (0, 0), pipeline_mode=weight_mode)

    def run(single_buffer_weights):
        # Single-buffer the grid-invariant weights/biases so the pipeline does
        # not reserve a second VMEM copy of them.
        wmode = pl.Buffered(1) if single_buffer_weights else None
        return pl.pallas_call(
            residual_mlp_kernel,
            out_shape=jax.ShapeDtypeStruct((M, D), x.dtype),
            grid_spec=pltpu.PrefetchScalarGridSpec(
                num_scalar_prefetch=0,
                grid=grid,
                in_specs=[
                    pl.BlockSpec((tm, D), lambda i: (i, 0)),   # x tile
                    const_spec((D, H), wmode),                 # W1 (resident)
                    const_spec((1, H), wmode),                 # b1
                    const_spec((H, D), wmode),                 # W2 (resident)
                    const_spec((1, D), wmode),                 # b2
                ],
                out_specs=pl.BlockSpec((tm, D), lambda i: (i, 0)),
            ),
            compiler_params=pltpu.CompilerParams(
                dimension_semantics=("parallel",),   # megacore shards token tiles
                vmem_limit_bytes=vmem_limit),
            cost_estimate=cost,
        )(x, w1_bf, b1_2d, w2_bf, b2_2d)

    try:
        out = run(single_buffer_weights=True)
        jax.block_until_ready(out)
        return out
    except Exception:
        # TODO(synk): pl.Buffered(1) single-buffering rejected by this jax
        # version; fall back to default double-buffered weight operands.
        out = run(single_buffer_weights=False)
        jax.block_until_ready(out)
        return out


def residual_mlp_ref(x, w1, b1, w2, b2):
    xf = x.astype(jnp.float32)
    h = _gelu_tanh(xf @ w1 + b1)
    return h @ w2 + b2 + xf


if __name__ == "__main__":
    key = jax.random.PRNGKey(0)
    kx, k1, k2, k3, k4 = jax.random.split(key, 5)

    # Token-major layout: rows = batch * tokens, lanes = channels.
    # D, H multiples of 128 -> lane-dense vregs / unmasked stores.
    # M = 1200 is NOT a multiple of tm=512: exercises multiple grid steps plus
    # the ragged last tile handled without any wrapper pad/slice.
    B, N, D, H = 2, 600, 128, 256
    M = B * N

    x = jax.random.normal(kx, (M, D), dtype=jnp.float32)
    w1 = jax.random.normal(k1, (D, H), dtype=jnp.float32) * 0.05
    b1 = jax.random.normal(k2, (H,), dtype=jnp.float32) * 0.01
    w2 = jax.random.normal(k3, (H, D), dtype=jnp.float32) * 0.05
    b2 = jax.random.normal(k4, (D,), dtype=jnp.float32) * 0.01

    ref = residual_mlp_ref(x, w1, b1, w2, b2)

    # f32 activations.
    out = residual_mlp(x, w1, b1, w2, b2, tm=512)
    jax.block_until_ready(out)
    assert out.shape == (M, D)
    # bf16 matmul operands vs f32 reference -> intentionally loose tolerance.
    assert jnp.allclose(out, ref, atol=2e-2, rtol=2e-2), "f32 mismatch vs reference"

    # bf16 activations path (halves x/out HBM traffic; residual add stays f32).
    out_bf = residual_mlp(x.astype(jnp.bfloat16), w1, b1, w2, b2, tm=512)
    jax.block_until_ready(out_bf)
    assert out_bf.dtype == jnp.bfloat16 and out_bf.shape == (M, D)
    assert jnp.allclose(out_bf.astype(jnp.float32), ref, atol=1e-1, rtol=1e-1), \
        "bf16 mismatch vs reference"

    print("KERNEL_OK")
</pallas_src>

<mosaic_0001>
module attributes {stable_mosaic.version = 11 : i64} {
  func.func @residual_mlp_kernel(%arg0: i32, %arg1: memref<512x128xf32, #tpu.memory_space<vmem>>, %arg2: memref<128x256xbf16, #tpu.memory_space<vmem>>, %arg3: memref<1x256xf32, #tpu.memory_space<vmem>>, %arg4: memref<256x128xbf16, #tpu.memory_space<vmem>>, %arg5: memref<1x128xf32, #tpu.memory_space<vmem>>, %arg6: memref<512x128xf32, #tpu.memory_space<vmem>>) attributes {dimension_semantics = [#tpu.dimension_semantics<parallel>], iteration_bounds = array<i64: 3>, scalar_prefetch = 0 : i64, scratch_operands = 0 : i64, tpu.core_type = #tpu.core_type<tc>, window_params = [{transform_indices = @transform_0, window_bounds = array<i64: 512, 128>}, {pipeline_mode = #tpu.pipeline_mode<synchronous>, transform_indices = @transform_1, window_bounds = array<i64: 128, 256>}, {pipeline_mode = #tpu.pipeline_mode<synchronous>, transform_indices = @transform_2, window_bounds = array<i64: 1, 256>}, {pipeline_mode = #tpu.pipeline_mode<synchronous>, transform_indices = @transform_3, window_bounds = array<i64: 256, 128>}, {pipeline_mode = #tpu.pipeline_mode<synchronous>, transform_indices = @transform_4, window_bounds = array<i64: 1, 128>}, {transform_indices = @transform_5, window_bounds = array<i64: 512, 128>}]} {
    %c0 = arith.constant 0 : index
    %c0_0 = arith.constant 0 : index
    %0 = vector.load %arg1[%c0, %c0_0] : memref<512x128xf32, #tpu.memory_space<vmem>>, vector<512x128xf32>
    %1 = arith.truncf %0 : vector<512x128xf32> to vector<512x128xbf16>
    %c0_1 = arith.constant 0 : index
    %c0_2 = arith.constant 0 : index
    %2 = vector.load %arg2[%c0_1, %c0_2] : memref<128x256xbf16, #tpu.memory_space<vmem>>, vector<128x256xbf16>
    %cst = arith.constant dense<0.000000e+00> : vector<512x256xf32>
    %3 = tpu.matmul %1, %2, %cst {dimension_numbers = #tpu.dot_dimension_numbers<[1], [0], [0], [1], [0, 0, 1, 1], [], []>} : vector<512x128xbf16>, vector<128x256xbf16>, vector<512x256xf32> -> vector<512x256xf32>
    %c0_3 = arith.constant 0 : index
    %c0_4 = arith.constant 0 : index
    %4 = vector.load %arg3[%c0_3, %c0_4] : memref<1x256xf32, #tpu.memory_space<vmem>>, vector<1x256xf32>
    %5 = vector.broadcast %4 : vector<1x256xf32> to vector<512x256xf32>
    %6 = arith.addf %3, %5 : vector<512x256xf32>
    %cst_5 = arith.constant 5.000000e-01 : f32
    %7 = vector.broadcast %cst_5 : f32 to vector<512x256xf32>
    %8 = arith.mulf %7, %6 : vector<512x256xf32>
    %cst_6 = arith.constant 4.471500e-02 : f32
    %9 = vector.broadcast %cst_6 : f32 to vector<512x256xf32>
    %10 = arith.mulf %9, %6 : vector<512x256xf32>
    %11 = arith.mulf %10, %6 : vector<512x256xf32>
    %12 = arith.mulf %11, %6 : vector<512x256xf32>
    %13 = arith.addf %6, %12 : vector<512x256xf32>
    %cst_7 = arith.constant 0.797884583 : f32
    %14 = vector.broadcast %cst_7 : f32 to vector<512x256xf32>
    %15 = arith.mulf %14, %13 : vector<512x256xf32>
    %16 = math.tanh %15 : vector<512x256xf32>
    %cst_8 = arith.constant 1.000000e+00 : f32
    %17 = vector.broadcast %cst_8 : f32 to vector<512x256xf32>
    %18 = arith.addf %17, %16 : vector<512x256xf32>
    %19 = arith.mulf %8, %18 : vector<512x256xf32>
    %20 = arith.truncf %19 : vector<512x256xf32> to vector<512x256xbf16>
    %c0_9 = arith.constant 0 : index
    %c0_10 = arith.constant 0 : index
    %21 = vector.load %arg4[%c0_9, %c0_10] : memref<256x128xbf16, #tpu.memory_space<vmem>>, vector<256x128xbf16>
    %cst_11 = arith.constant dense<0.000000e+00> : vector<512x128xf32>
    %22 = tpu.matmul %20, %21, %cst_11 {dimension_numbers = #tpu.dot_dimension_numbers<[1], [0], [0], [1], [0, 0, 1, 1], [], []>} : vector<512x256xbf16>, vector<256x128xbf16>, vector<512x128xf32> -> vector<512x128xf32>
    %c0_12 = arith.constant 0 : index
    %c0_13 = arith.constant 0 : index
    %23 = vector.load %arg5[%c0_12, %c0_13] : memref<1x128xf32, #tpu.memory_space<vmem>>, vector<1x128xf32>
    %24 = vector.broadcast %23 : vector<1x128xf32> to vector<512x128xf32>
    %25 = arith.addf %22, %24 : vector<512x128xf32>
    %c0_14 = arith.constant 0 : index
    %c0_15 = arith.constant 0 : index
    %26 = vector.load %arg1[%c0_14, %c0_15] : memref<512x128xf32, #tpu.memory_space<vmem>>, vector<512x128xf32>
    %27 = arith.addf %25, %26 : vector<512x128xf32>
    %c0_16 = arith.constant 0 : index
    %c0_17 = arith.constant 0 : index
    %28 = vector.load %arg6[%c0_16, %c0_17] : memref<512x128xf32, #tpu.memory_space<vmem>>, vector<512x128xf32>
    tpu.vector_store %arg6[%c0_16, %c0_17], %27 {strides = array<i32>} : memref<512x128xf32, #tpu.memory_space<vmem>>, vector<512x128xf32>,
    return
  }
  func.func @transform_0(%arg0: i32) -> (i32, i32) {
    %c0_i32 = arith.constant 0 : i32
    %c0_i32_0 = arith.constant 0 : i32
    return %arg0, %c0_i32 : i32, i32
  }
  func.func @transform_1(%arg0: i32) -> (i32, i32) {
    %c0_i32 = arith.constant 0 : i32
    %c0_i32_0 = arith.constant 0 : i32
    %c0_i32_1 = arith.constant 0 : i32
    return %c0_i32, %c0_i32_0 : i32, i32
  }
  func.func @transform_2(%arg0: i32) -> (i32, i32) {
    %c0_i32 = arith.constant 0 : i32
    %c0_i32_0 = arith.constant 0 : i32
    %c0_i32_1 = arith.constant 0 : i32
    return %c0_i32, %c0_i32_0 : i32, i32
  }
  func.func @transform_3(%arg0: i32) -> (i32, i32) {
    %c0_i32 = arith.constant 0 : i32
    %c0_i32_0 = arith.constant 0 : i32
    %c0_i32_1 = arith.constant 0 : i32
    return %c0_i32, %c0_i32_0 : i32, i32
  }
  func.func @transform_4(%arg0: i32) -> (i32, i32) {
    %c0_i32 = arith.constant 0 : i32
    %c0_i32_0 = arith.constant 0 : i32
    %c0_i32_1 = arith.constant 0 : i32
    return %c0_i32, %c0_i32_0 : i32, i32
  }
  func.func @transform_5(%arg0: i32) -> (i32, i32) {
    %c0_i32 = arith.constant 0 : i32
    %c0_i32_0 = arith.constant 0 : i32
    return %arg0, %c0_i32 : i32, i32
  }
}

module attributes {stable_mosaic.version = 11 : i64} {
  func.func @residual_mlp_kernel(%arg0: i32, %arg1: memref<512x128xf32, #tpu.memory_space<vmem>>, %arg2: memref<128x256xbf16, #tpu.memory_space<vmem>>, %arg3: memref<1x256xf32, #tpu.memory_space<vmem>>, %arg4: memref<256x128xbf16, #tpu.memory_space<vmem>>, %arg5: memref<1x128xf32, #tpu.memory_space<vmem>>, %arg6: memref<512x128xf32, #tpu.memory_space<vmem>>) attributes {dimension_semantics = [#tpu.dimension_semantics<parallel>], iteration_bounds = array<i64: 3>, scalar_prefetch = 0 : i64, scratch_operands = 0 : i64, tpu.core_type = #tpu.core_type<tc>, window_params = [{transform_indices = @transform_0, window_bounds = array<i64: 512, 128>}, {pipeline_mode = #tpu.pipeline_mode<synchronous>, transform_indices = @transform_1, window_bounds = array<i64: 128, 256>}, {pipeline_mode = #tpu.pipeline_mode<synchronous>, transform_indices = @transform_2, window_bounds = array<i64: 1, 256>}, {pipeline_mode = #tpu.pipeline_mode<synchronous>, transform_indices = @transform_3, window_bounds = array<i64: 256, 128>}, {pipeline_mode = #tpu.pipeline_mode<synchronous>, transform_indices = @transform_4, window_bounds = array<i64: 1, 128>}, {transform_indices = @transform_5, window_bounds = array<i64: 512, 128>}]} {
    %c0 = arith.constant 0 : index
    %c0_0 = arith.constant 0 : index
    %0 = vector.load %arg1[%c0, %c0_0] : memref<512x128xf32, #tpu.memory_space<vmem>>, vector<512x128xf32>
    %1 = arith.truncf %0 : vector<512x128xf32> to vector<512x128xbf16>
    %c0_1 = arith.constant 0 : index
    %c0_2 = arith.constant 0 : index
    %2 = vector.load %arg2[%c0_1, %c0_2] : memref<128x256xbf16, #tpu.memory_space<vmem>>, vector<128x256xbf16>
    %cst = arith.constant dense<0.000000e+00> : vector<512x256xf32>
    %3 = tpu.matmul %1, %2, %cst {dimension_numbers = #tpu.dot_dimension_numbers<[1], [0], [0], [1], [0, 0, 1, 1], [], []>} : vector<512x128xbf16>, vector<128x256xbf16>, vector<512x256xf32> -> vector<512x256xf32>
    %c0_3 = arith.constant 0 : index
    %c0_4 = arith.constant 0 : index
    %4 = vector.load %arg3[%c0_3, %c0_4] : memref<1x256xf32, #tpu.memory_space<vmem>>, vector<1x256xf32>
    %5 = vector.broadcast %4 : vector<1x256xf32> to vector<512x256xf32>
    %6 = arith.addf %3, %5 : vector<512x256xf32>
    %cst_5 = arith.constant 5.000000e-01 : f32
    %7 = vector.broadcast %cst_5 : f32 to vector<512x256xf32>
    %8 = arith.mulf %7, %6 : vector<512x256xf32>
    %cst_6 = arith.constant 4.471500e-02 : f32
    %9 = vector.broadcast %cst_6 : f32 to vector<512x256xf32>
    %10 = arith.mulf %9, %6 : vector<512x256xf32>
    %11 = arith.mulf %10, %6 : vector<512x256xf32>
    %12 = arith.mulf %11, %6 : vector<512x256xf32>
    %13 = arith.addf %6, %12 : vector<512x256xf32>
    %cst_7 = arith.constant 0.797884583 : f32
    %14 = vector.broadcast %cst_7 : f32 to vector<512x256xf32>
    %15 = arith.mulf %14, %13 : vector<512x256xf32>
    %16 = math.tanh %15 : vector<512x256xf32>
    %cst_8 = arith.constant 1.000000e+00 : f32
    %17 = vector.broadcast %cst_8 : f32 to vector<512x256xf32>
    %18 = arith.addf %17, %16 : vector<512x256xf32>
    %19 = arith.mulf %8, %18 : vector<512x256xf32>
    %20 = arith.truncf %19 : vector<512x256xf32> to vector<512x256xbf16>
    %c0_9 = arith.constant 0 : index
    %c0_10 = arith.constant 0 : index
    %21 = vector.load %arg4[%c0_9, %c0_10] : memref<256x128xbf16, #tpu.memory_space<vmem>>, vector<256x128xbf16>
    %cst_11 = arith.constant dense<0.000000e+00> : vector<512x128xf32>
    %22 = tpu.matmul %20, %21, %cst_11 {dimension_numbers = #tpu.dot_dimension_numbers<[1], [0], [0], [1], [0, 0, 1, 1], [], []>} : vector<512x256xbf16>, vector<256x128xbf16>, vector<512x128xf32> -> vector<512x128xf32>
    %c0_12 = arith.constant 0 : index
    %c0_13 = arith.constant 0 : index
    %23 = vector.load %arg5[%c0_12, %c0_13] : memref<1x128xf32, #tpu.memory_space<vmem>>, vector<1x128xf32>
    %24 = vector.broadcast %23 : vector<1x128xf32> to vector<512x128xf32>
    %25 = arith.addf %22, %24 : vector<512x128xf32>
    %c0_14 = arith.constant 0 : index
    %c0_15 = arith.constant 0 : index
    %26 = vector.load %arg1[%c0_14, %c0_15] : memref<512x128xf32, #tpu.memory_space<vmem>>, vector<512x128xf32>
    %27 = arith.addf %25, %26 : vector<512x128xf32>
    %c0_16 = arith.constant 0 : index
    %c0_17 = arith.constant 0 : index
    %28 = vector.load %arg6[%c0_16, %c0_17] : memref<512x128xf32, #tpu.memory_space<vmem>>, vector<512x128xf32>
    tpu.vector_store %arg6[%c0_16, %c0_17], %27 {strides = array<i32>} : memref<512x128xf32, #tpu.memory_space<vmem>>, vector<512x128xf32>,
    return
  }
  func.func @transform_0(%arg0: i32) -> (i32, i32) {
    %c0_i32 = arith.constant 0 : i32
    %c0_i32_0 = arith.constant 0 : i32
    return %arg0, %c0_i32 : i32, i32
  }
  func.func @transform_1(%arg0: i32) -> (i32, i32) {
    %c0_i32 = arith.constant 0 : i32
    %c0_i32_0 = arith.constant 0 : i32
    %c0_i32_1 = arith.constant 0 : i32
    return %c0_i32, %c0_i32_0 : i32, i32
  }
  func.func @transform_2(%arg0: i32) -> (i32, i32) {
    %c0_i32 = arith.constant 0 : i32
    %c0_i32_0 = arith.constant 0 : i32
    %c0_i32_1 = arith.constant 0 : i32
    return %c0_i32, %c0_i32_0 : i32, i32
  }
  func.func @transform_3(%arg0: i32) -> (i32, i32) {
    %c0_i32 = arith.constant 0 : i32
    %c0_i32_0 = arith.constant 0 : i32
    %c0_i32_1 = arith.constant 0 : i32
    return %c0_i32, %c0_i32_0 : i32, i32
  }
  func.func @transform_4(%arg0: i32) -> (i32, i32) {
    %c0_i32 = arith.constant 0 : i32
    %c0_i32_0 = arith.constant 0 : i32
    %c0_i32_1 = arith.constant 0 : i32
    return %c0_i32, %c0_i32_0 : i32, i32
  }
  func.func @transform_5(%arg0: i32) -> (i32, i32) {
    %c0_i32 = arith.constant 0 : i32
    %c0_i32_0 = arith.constant 0 : i32
    return %arg0, %c0_i32 : i32, i32
  }
}

</mosaic_0001>

<llo_original>
// kernel: tpu_custom_call.1
$region0: #{tpu_custom_call.1}
  #allocation0 [shape = 'u32[]', space=smem, size = 0x4, offset = 0x4, fixed_abs, tag = 'smem constant byte address 0x4 - core index']
  #allocation1 [shape = 'u32[144,128]{1,0:T(1,128)}', space=vmem, size = 0x12000, scoped, tag = 'internal scratch']
  %s0 = inlined_call_operand.hbm [shape: f32[1200,128], index: 0, kind: input, shape index: {}]
  %s1 = inlined_call_operand.hbm [shape: bf16[128,256], index: 1, kind: input, shape index: {}]
  %s2 = inlined_call_operand.vmem [shape: f32[1,256], index: 2, kind: input, shape index: {}]
  %s3 = inlined_call_operand.hbm [shape: bf16[256,128], index: 3, kind: input, shape index: {}]
  %s4 = inlined_call_operand.vmem [shape: f32[1,128], index: 4, kind: input, shape index: {}]
  %s5 = inlined_call_operand.hbm [shape: f32[1200,128], index: 5, kind: output, shape index: {}]
  %s6 = sld [smem:[#allocation0]]
  $region65: #{tpu_custom_call.1} parent=0
    _
  %s8 = ssub.s32 1, %s6
  %s9 = scalar_select 0, %s8, %s6
  $region1: #{tpu_custom_call.1} parent=0
    #allocation2 [shape = 'u8[524288]{0}', space=vmem, size = 0x80000, scoped, tag = 'input window, operand 0']
    #allocation3 [shape = 's32[2]{0}', space=sflag, size = 0x8, scoped, tag = 'scoped memory for tpu_custom_call.1']
    #allocation4 [shape = 's32[2]{0}', space=sflag, size = 0x8, scoped, tag = 'scoped memory for tpu_custom_call.1']
    #allocation5 [shape = 'u8[65536]{0}', space=vmem, size = 0x10000, scoped, tag = 'input window, operand 1, single buffered']
    #allocation6 [shape = 's32[1]{0}', space=sflag, size = 0x4, scoped, tag = 'scoped memory for tpu_custom_call.1']
    #allocation7 [shape = 'u8[65536]{0}', space=vmem, size = 0x10000, scoped, tag = 'input window, operand 3, single buffered']
    #allocation8 [shape = 'u8[524288]{0}', space=vmem, size = 0x80000, scoped, tag = 'output window, operand 0']
    %10 = vsyncpa [#allocation3], 0
    %s11 = scalar_lea.sflag [#allocation3], 1
    %12 = vsyncpa %s11, 0
    %13 = vsyncpa [#allocation6], 0
    %14 = vsyncpa [#allocation4], 0
    %s15 = scalar_lea.sflag [#allocation4], 1
    %16 = vsyncpa %s15, 0
    loop: start=0, step=1, limit=5
    $region2: #{tpu_custom_call.1} parent=1 // loop_pre_header
      _
    $region3: #{tpu_custom_call.1} parent=1 // loop_header
      %s18 = sphi 0, %s22
      %p19 = scmp.ge.s32.totalorder %s18, 5
      %s28 = sphi 0, %s30
      %s31 = sphi 0, %s28
      %s32 = sphi 0, %s31
      %s48 = sphi 0, %s32
      %s52 = sphi 0, %s52
      %s54 = sphi 0, %s52
      %s55 = sphi 0, %s54
      %s69 = sphi 0, %s55
      %s73 = sphi 0, %s73
      %s75 = sphi 0, %s73
      %s76 = sphi 0, %s75
      %s90 = sphi 0, %s76
      %s94 = sphi 0, %s94
      %s96 = sphi 0, %s94
      %s97 = sphi 0, %s96
      %s111 = sphi 0, %s97
      %s115 = sphi 0, %s115
      %s117 = sphi 0, %s115
      %s118 = sphi 0, %s117
      %s132 = sphi 0, %s118
      %s138 = sphi 0, %s140
      %s141 = sphi 0, %s138
      %s142 = sphi 0, %s141
      %s158 = sphi 0, %s142
    $region4: #{tpu_custom_call.1} parent=1 // loop_header_branch
      %21 = sbr.rel (%p19) target = $region8
    $region5: #{tpu_custom_call.1} parent=1 // loop_body
      %s23 = ssub.s32 %s18, 1
      %s24 = ssub.s32 %s18, 2
      %s25 = sadd.s32 %s18, 1
      %s26 = ssub.s32 %s18, %s25
      %p27 = scmp.eq.s32.totalorder %s26, 0
      %s29 = sadd.s32 %s28, 1
      %s30 = scalar_select %p27, %s28, %s29
      %p33 = pneg %p27
      %p34 = scmp.eq.s32.totalorder %s18, 2
      %p35 = por %p33, %p34
      %p36 = scmp.ne.s32.totalorder %s28, %s31
      %p37 = scmp.eq.s32.totalorder %s18, 0
      %p38 = por %p36, %p37
      %p39 = scmp.ne.s32.totalorder %s28, %s31
      %p40 = scmp.eq.s32.totalorder %s23, 2
      %p41 = por %p39, %p40
      %p42 = scmp.ne.s32.totalorder %s31, %s32
      %p43 = scmp.eq.s32.totalorder %s23, 0
      %p44 = por %p42, %p43
      %p45 = scmp.ne.s32.totalorder %s31, %s32
      %p46 = scmp.eq.s32.totalorder %s24, 2
      %p47 = por %p45, %p46
      %p49 = scmp.ne.s32.totalorder %s32, %s48
      %p50 = scmp.eq.s32.totalorder %s24, 0
      %p51 = por %p49, %p50
      %s53 = sadd.s32 %s52, 1
      %p56 = scmp.eq.s32.totalorder %s18, 2
      %p57 = scmp.ne.s32.totalorder %s52, %s54
      %p58 = scmp.eq.s32.totalorder %s18, 0
      %p59 = por %p57, %p58
      %p60 = scmp.ne.s32.totalorder %s52, %s54
      %p61 = scmp.eq.s32.totalorder %s23, 2
      %p62 = por %p60, %p61
      %p63 = scmp.ne.s32.totalorder %s54, %s55
      %p64 = scmp.eq.s32.totalorder %s23, 0
      %p65 = por %p63, %p64
      %p66 = scmp.ne.s32.totalorder %s54, %s55
      %p67 = scmp.eq.s32.totalorder %s24, 2
      %p68 = por %p66, %p67
      %p70 = scmp.ne.s32.totalorder %s55, %s69
      %p71 = scmp.eq.s32.totalorder %s24, 0
      %p72 = por %p70, %p71
      %s74 = sadd.s32 %s73, 1
      %p77 = scmp.eq.s32.totalorder %s18, 2
      %p78 = scmp.ne.s32.totalorder %s73, %s75
      %p79 = scmp.eq.s32.totalorder %s18, 0
      %p80 = por %p78, %p79
      %p81 = scmp.ne.s32.totalorder %s73, %s75
      %p82 = scmp.eq.s32.totalorder %s23, 2
      %p83 = por %p81, %p82
      %p84 = scmp.ne.s32.totalorder %s75, %s76
      %p85 = scmp.eq.s32.totalorder %s23, 0
      %p86 = por %p84, %p85
      %p87 = scmp.ne.s32.totalorder %s75, %s76
      %p88 = scmp.eq.s32.totalorder %s24, 2
      %p89 = por %p87, %p88
      %p91 = scmp.ne.s32.totalorder %s76, %s90
      %p92 = scmp.eq.s32.totalorder %s24, 0
      %p93 = por %p91, %p92
      %s95 = sadd.s32 %s94, 1
      %p98 = scmp.eq.s32.totalorder %s18, 2
      %p99 = scmp.ne.s32.totalorder %s94, %s96
      %p100 = scmp.eq.s32.totalorder %s18, 0
      %p101 = por %p99, %p100
      %p102 = scmp.ne.s32.totalorder %s94, %s96
      %p103 = scmp.eq.s32.totalorder %s23, 2
      %p104 = por %p102, %p103
      %p105 = scmp.ne.s32.totalorder %s96, %s97
      %p106 = scmp.eq.s32.totalorder %s23, 0
      %p107 = por %p105, %p106
      %p108 = scmp.ne.s32.totalorder %s96, %s97
      %p109 = scmp.eq.s32.totalorder %s24, 2
      %p110 = por %p108, %p109
      %p112 = scmp.ne.s32.totalorder %s97, %s111
      %p113 = scmp.eq.s32.totalorder %s24, 0
      %p114 = por %p112, %p113
      %s116 = sadd.s32 %s115, 1
      %p119 = scmp.eq.s32.totalorder %s18, 2
      %p120 = scmp.ne.s32.totalorder %s115, %s117
      %p121 = scmp.eq.s32.totalorder %s18, 0
      %p122 = por %p120, %p121
      %p123 = scmp.ne.s32.totalorder %s115, %s117
      %p124 = scmp.eq.s32.totalorder %s23, 2
      %p125 = por %p123, %p124
      %p126 = scmp.ne.s32.totalorder %s117, %s118
      %p127 = scmp.eq.s32.totalorder %s23, 0
      %p128 = por %p126, %p127
      %p129 = scmp.ne.s32.totalorder %s117, %s118
      %p130 = scmp.eq.s32.totalorder %s24, 2
      %p131 = por %p129, %p130
      %p133 = scmp.ne.s32.totalorder %s118, %s132
      %p134 = scmp.eq.s32.totalorder %s24, 0
      %p135 = por %p133, %p134
      %s136 = ssub.s32 %s18, %s25
      %p137 = scmp.eq.s32.totalorder %s136, 0
      %s139 = sadd.s32 %s138, 1
      %s140 = scalar_select %p137, %s138, %s139
      %p143 = pneg %p137
      %p144 = scmp.eq.s32.totalorder %s18, 2
      %p145 = por %p143, %p144
      %p146 = scmp.ne.s32.totalorder %s138, %s141
      %p147 = scmp.eq.s32.totalorder %s18, 0
      %p148 = por %p146, %p147
      %p149 = scmp.ne.s32.totalorder %s138, %s141
      %p150 = scmp.eq.s32.totalorder %s23, 2
      %p151 = por %p149, %p150
      %p152 = scmp.ne.s32.totalorder %s141, %s142
      %p153 = scmp.eq.s32.totalorder %s23, 0
      %p154 = por %p152, %p153
      %p155 = scmp.ne.s32.totalorder %s141, %s142
      %p156 = scmp.eq.s32.totalorder %s24, 2
      %p157 = por %p155, %p156
      %p159 = scmp.ne.s32.totalorder %s142, %s158
      %p160 = scmp.eq.s32.totalorder %s24, 0
      %p161 = por %p159, %p160
      %p162 = scmp.le.s32.totalorder 1, %s18
      %p163 = scmp.lt.s32.totalorder %s18, 4
      %p164 = pnand %p162, %p163
      %p165 = pneg %p164
      // Predicated region
      $region9: #{tpu_custom_call.1} parent=5 // pred_check
        _
      $region10: #{tpu_custom_call.1} parent=5 // pred_check_branch
        %167 = sbr.rel (%p164) target = $region12
      $region11: #{tpu_custom_call.1} parent=5 // pred_region
        %s168 = ssub.s32 %s18, 1
        // Predicated region
        $region13: #{tpu_custom_call.1} parent=11 // pred_check
          %p169 = pneg %p65
        $region14: #{tpu_custom_call.1} parent=11 // pred_check_branch
          %171 = sbr.rel (%p169) target = $region16
        $region15: #{tpu_custom_call.1} parent=11 // pred_region
          %s173 = ssub.s32 2048, 2048
          %174 = vsyncadd [#allocation6], %s173
          %s175 = sshll.u32 [#allocation5], 4
          %s176 = int_to_ptr.vmem [resolvable:$true] %s175
          %181 = dma.hbm_to_vmem [thread:$0]  %s1, 2048, %s176, [#allocation6], 128, 128, 8
        $region16: #{tpu_custom_call.1} parent=11 // pred_fallthru
          _
        // Predicated region
        $region17: #{tpu_custom_call.1} parent=11 // pred_check
          %p182 = pneg %p86
        $region18: #{tpu_custom_call.1} parent=11 // pred_check_branch
          %184 = sbr.rel (%p182) target = $region20
        $region19: #{tpu_custom_call.1} parent=11 // pred_region
          _
        $region20: #{tpu_custom_call.1} parent=11 // pred_fallthru
          _
        // Predicated region
        $region21: #{tpu_custom_call.1} parent=11 // pred_check
          %p185 = pneg %p107
        $region22: #{tpu_custom_call.1} parent=11 // pred_check_branch
          %187 = sbr.rel (%p185) target = $region24
        $region23: #{tpu_custom_call.1} parent=11 // pred_region
          %s189 = ssub.s32 2048, 2048
          %190 = vsyncadd [#allocation6], %s189
          %s191 = sshll.u32 [#allocation7], 4
          %s192 = int_to_ptr.vmem [resolvable:$true] %s191
          %197 = dma.hbm_to_vmem [thread:$0]  %s3, 2048, %s192, [#allocation6], 64, 64, 4
        $region24: #{tpu_custom_call.1} parent=11 // pred_fallthru
          _
        // Predicated region
        $region25: #{tpu_custom_call.1} parent=11 // pred_check
          %p198 = pneg %p128
        $region26: #{tpu_custom_call.1} parent=11 // pred_check_branch
          %200 = sbr.rel (%p198) target = $region28
        $region27: #{tpu_custom_call.1} parent=11 // pred_region
          _
        $region28: #{tpu_custom_call.1} parent=11 // pred_fallthru
          _
      $region12: #{tpu_custom_call.1} parent=5 // pred_fallthru
        _
      %p201 = scmp.lt.s32.totalorder %s18, 3
      // Predicated region
      $region29: #{tpu_custom_call.1} parent=5 // pred_check
        %p202 = pneg %p201
      $region30: #{tpu_custom_call.1} parent=5 // pred_check_branch
        %204 = sbr.rel (%p202) target = $region32
      $region31: #{tpu_custom_call.1} parent=5 // pred_region
        // Predicated region
        $region33: #{tpu_custom_call.1} parent=31 // pred_check
          %p205 = pneg %p38
        $region34: #{tpu_custom_call.1} parent=31 // pred_check_branch
          %207 = sbr.rel (%p205) target = $region36
        $region35: #{tpu_custom_call.1} parent=31 // pred_region
          %s208 = sand.u32 %s28, 1
          %s209 = scalar_lea.sflag [#allocation3], %s208
          %s210 = sand.u32 %s28, 1
          %s211 = smul.addr %s210, 512
          %s212 = scalar_lea.vmem [#allocation2], %s211
          %s213 = smul.u32 64, %s18
          %s214 = ssub.s32 150, %s213
          %p215 = scmp.lt.s32.totalorder %s214, 64
          %s216 = scalar_select %p215, %s214, 64
          %s217 = smul.u32 128, %s216
          %s219 = ssub.s32 8192, %s217
          %220 = vsyncadd %s209, %s219
          %p221 = scmp.ne.s32.totalorder 0, %s217
          %s222 = smul.addr %s213, 128
          %s223 = scalar_lea.hbm %s0, %s222
          %s224 = smul.u32 8, %s216
          %s225 = sshll.u32 %s212, 4
          %s226 = int_to_ptr.vmem [resolvable:$true] %s225
          %s227 = sshll.u32 %s224, 4
          %231 = dma.hbm_to_vmem [thread:$0]  (%p221), %s223, %s227, %s226, %s209, 128, 128, 8
        $region36: #{tpu_custom_call.1} parent=31 // pred_fallthru
          _
      $region32: #{tpu_custom_call.1} parent=5 // pred_fallthru
        _
      %p232 = scmp.le.s32.totalorder 1, %s18
      %p233 = scmp.lt.s32.totalorder %s18, 4
      %p234 = pnand %p232, %p233
      %p235 = pneg %p234
      // Predicated region
      $region37: #{tpu_custom_call.1} parent=5 // pred_check
        _
      $region38: #{tpu_custom_call.1} parent=5 // pred_check_branch
        %237 = sbr.rel (%p234) target = $region40
      $region39: #{tpu_custom_call.1} parent=5 // pred_region
        %s238 = ssub.s32 %s18, 1
        %s239 = sand.u32 %s31, 1
        %s240 = scalar_lea.sflag [#allocation3], %s239
        %s241 = sand.u32 %s31, 1
        %s242 = smul.addr %s241, 512
        %s243 = scalar_lea.vmem [#allocation2], %s242
        // Predicated region
        $region41: #{tpu_custom_call.1} parent=39 // pred_check
          %p244 = pneg %p44
        $region42: #{tpu_custom_call.1} parent=39 // pred_check_branch
          %246 = sbr.rel (%p244) target = $region44
        $region43: #{tpu_custom_call.1} parent=39 // pred_region
          %247 = dma.done %s240, 8192
        $region44: #{tpu_custom_call.1} parent=39 // pred_fallthru
          _
        // Predicated region
        $region45: #{tpu_custom_call.1} parent=39 // pred_check
          %p248 = pneg %p65
        $region46: #{tpu_custom_call.1} parent=39 // pred_check_branch
          %250 = sbr.rel (%p248) target = $region48
        $region47: #{tpu_custom_call.1} parent=39 // pred_region
          %251 = dma.done [#allocation6], 2048
        $region48: #{tpu_custom_call.1} parent=39 // pred_fallthru
          _
        // Predicated region
        $region49: #{tpu_custom_call.1} parent=39 // pred_check
          %p252 = pneg %p107
        $region50: #{tpu_custom_call.1} parent=39 // pred_check_branch
          %254 = sbr.rel (%p252) target = $region52
        $region51: #{tpu_custom_call.1} parent=39 // pred_region
          %255 = dma.done [#allocation6], 2048
        $region52: #{tpu_custom_call.1} parent=39 // pred_fallthru
          _
        %s256 = sand.u32 %s31, 1
        %s257 = scalar_lea.sflag [#allocation3], %s256
        %s258 = sand.u32 %s31, 1
        %s259 = smul.addr %s258, 512
        %s260 = scalar_lea.vmem [#allocation2], %s259
        %p261 = pneg %p44
        %p262 = pneg %p41
        %p263 = pneg %p65
        %p264 = pneg %p62
        %p265 = pneg %p86
        %p266 = pneg %p83
        %p267 = pneg %p107
        %p268 = pneg %p104
        %p269 = pneg %p128
        %p270 = pneg %p125
        %p271 = pneg %p154
        %p272 = pneg %p151
        %s273 = sand.u32 %s141, 1
        %s274 = scalar_lea.sflag [#allocation4], %s273
        %s275 = sand.u32 %s141, 1
        %s276 = smul.addr %s275, 512
        %s277 = scalar_lea.vmem [#allocation8], %s276
        %s278 = smul.u32 64, %s23
        %s279 = ssub.s32 150, %s278
        %p280 = scmp.lt.s32.totalorder %s279, 64
        %s281 = scalar_select %p280, %s279, 64
        %s282 = smul.u32 128, %s281
        %s283 = smul.u32 64, %s23
        %s284 = ssub.s32 150, %s283
        %p285 = scmp.lt.s32.totalorder %s284, 64
        %s286 = scalar_select %p285, %s284, 64
        %s287 = smul.u32 128, %s286
        %v289 = vld [vmem:[%s243] sm:$0xff]
        %v290 = vld [vmem:[%s243 + $0x8] sm:$0xff]
        %v291 = vld [vmem:[%s243 + $0x10] sm:$0xff]
        %v292 = vld [vmem:[%s243 + $0x18] sm:$0xff]
        %v293 = vld [vmem:[%s243 + $0x20] sm:$0xff]
        %v294 = vld [vmem:[%s243 + $0x28] sm:$0xff]
        %v295 = vld [vmem:[%s243 + $0x30] sm:$0xff]
        %v296 = vld [vmem:[%s243 + $0x38] sm:$0xff]
        %v297 = vld [vmem:[%s243 + $0x40] sm:$0xff]
        %v298 = vld [vmem:[%s243 + $0x48] sm:$0xff]
        %v299 = vld [vmem:[%s243 + $0x50] sm:$0xff]
        %v300 = vld [vmem:[%s243 + $0x58] sm:$0xff]
        %v301 = vld [vmem:[%s243 + $0x60] sm:$0xff]
        %v302 = vld [vmem:[%s243 + $0x68] sm:$0xff]
        %v303 = vld [vmem:[%s243 + $0x70] sm:$0xff]
        %v304 = vld [vmem:[%s243 + $0x78] sm:$0xff]
        %v305 = vld [vmem:[%s243 + $0x80] sm:$0xff]
        %v306 = vld [vmem:[%s243 + $0x88] sm:$0xff]
        %v307 = vld [vmem:[%s243 + $0x90] sm:$0xff]
        %v308 = vld [vmem:[%s243 + $0x98] sm:$0xff]
        %v309 = vld [vmem:[%s243 + $0xa0] sm:$0xff]
        %v310 = vld [vmem:[%s243 + $0xa8] sm:$0xff]
        %v311 = vld [vmem:[%s243 + $0xb0] sm:$0xff]
        %v312 = vld [vmem:[%s243 + $0xb8] sm:$0xff]
        %v313 = vld [vmem:[%s243 + $0xc0] sm:$0xff]
        %v314 = vld [vmem:[%s243 + $0xc8] sm:$0xff]
        %v315 = vld [vmem:[%s243 + $0xd0] sm:$0xff]
        %v316 = vld [vmem:[%s243 + $0xd8] sm:$0xff]
        %v317 = vld [vmem:[%s243 + $0xe0] sm:$0xff]
        %v318 = vld [vmem:[%s243 + $0xe8] sm:$0xff]
        %v319 = vld [vmem:[%s243 + $0xf0] sm:$0xff]
        %v320 = vld [vmem:[%s243 + $0xf8] sm:$0xff]
        %v321 = vld [vmem:[%s243 + $0x100] sm:$0xff]
        %v322 = vld [vmem:[%s243 + $0x108] sm:$0xff]
        %v323 = vld [vmem:[%s243 + $0x110] sm:$0xff]
        %v324 = vld [vmem:[%s243 + $0x118] sm:$0xff]
        %v325 = vld [vmem:[%s243 + $0x120] sm:$0xff]
        %v326 = vld [vmem:[%s243 + $0x128] sm:$0xff]
        %v327 = vld [vmem:[%s243 + $0x130] sm:$0xff]
        %v328 = vld [vmem:[%s243 + $0x138] sm:$0xff]
        %v329 = vld [vmem:[%s243 + $0x140] sm:$0xff]
        %v330 = vld [vmem:[%s243 + $0x148] sm:$0xff]
        %v331 = vld [vmem:[%s243 + $0x150] sm:$0xff]
        %v332 = vld [vmem:[%s243 + $0x158] sm:$0xff]
        %v333 = vld [vmem:[%s243 + $0x160] sm:$0xff]
        %v334 = vld [vmem:[%s243 + $0x168] sm:$0xff]
        %v335 = vld [vmem:[%s243 + $0x170] sm:$0xff]
        %v336 = vld [vmem:[%s243 + $0x178] sm:$0xff]
        %v337 = vld [vmem:[%s243 + $0x180] sm:$0xff]
        %v338 = vld [vmem:[%s243 + $0x188] sm:$0xff]
        %v339 = vld [vmem:[%s243 + $0x190] sm:$0xff]
        %v340 = vld [vmem:[%s243 + $0x198] sm:$0xff]
        %v341 = vld [vmem:[%s243 + $0x1a0] sm:$0xff]
        %v342 = vld [vmem:[%s243 + $0x1a8] sm:$0xff]
        %v343 = vld [vmem:[%s243 + $0x1b0] sm:$0xff]
        %v344 = vld [vmem:[%s243 + $0x1b8] sm:$0xff]
        %v345 = vld [vmem:[%s243 + $0x1c0] sm:$0xff]
        %v346 = vld [vmem:[%s243 + $0x1c8] sm:$0xff]
        %v347 = vld [vmem:[%s243 + $0x1d0] sm:$0xff]
        %v348 = vld [vmem:[%s243 + $0x1d8] sm:$0xff]
        %v349 = vld [vmem:[%s243 + $0x1e0] sm:$0xff]
        %v350 = vld [vmem:[%s243 + $0x1e8] sm:$0xff]
        %v351 = vld [vmem:[%s243 + $0x1f0] sm:$0xff]
        %v352 = vld [vmem:[%s243 + $0x1f8] sm:$0xff]
        %v353 = vpack.c.bf16 %v290, %v289
        %v354 = vpack.c.bf16 %v292, %v291
        %v355 = vpack.c.bf16 %v294, %v293
        %v356 = vpack.c.bf16 %v296, %v295
        %v357 = vpack.c.bf16 %v298, %v297
        %v358 = vpack.c.bf16 %v300, %v299
        %v359 = vpack.c.bf16 %v302, %v301
        %v360 = vpack.c.bf16 %v304, %v303
        %v361 = vpack.c.bf16 %v306, %v305
        %v362 = vpack.c.bf16 %v308, %v307
        %v363 = vpack.c.bf16 %v310, %v309
        %v364 = vpack.c.bf16 %v312, %v311
        %v365 = vpack.c.bf16 %v314, %v313
        %v366 = vpack.c.bf16 %v316, %v315
        %v367 = vpack.c.bf16 %v318, %v317
        %v368 = vpack.c.bf16 %v320, %v319
        %v369 = vpack.c.bf16 %v322, %v321
        %v370 = vpack.c.bf16 %v324, %v323
        %v371 = vpack.c.bf16 %v326, %v325
        %v372 = vpack.c.bf16 %v328, %v327
        %v373 = vpack.c.bf16 %v330, %v329
        %v374 = vpack.c.bf16 %v332, %v331
        %v375 = vpack.c.bf16 %v334, %v333
        %v376 = vpack.c.bf16 %v336, %v335
        %v377 = vpack.c.bf16 %v338, %v337
        %v378 = vpack.c.bf16 %v340, %v339
        %v379 = vpack.c.bf16 %v342, %v341
        %v380 = vpack.c.bf16 %v344, %v343
        %v381 = vpack.c.bf16 %v346, %v345
        %v382 = vpack.c.bf16 %v348, %v347
        %v383 = vpack.c.bf16 %v350, %v349
        %v384 = vpack.c.bf16 %v352, %v351
        %v385 = vld [vmem:[#allocation5] sm:$0xff]
        %v386 = vld [vmem:[#allocation5 + $0x8] sm:$0xff]
        %v387 = vld [vmem:[#allocation5 + $0x10] sm:$0xff]
        %v388 = vld [vmem:[#allocation5 + $0x18] sm:$0xff]
        %v389 = vld [vmem:[#allocation5 + $0x20] sm:$0xff]
        %v390 = vld [vmem:[#allocation5 + $0x28] sm:$0xff]
        %v391 = vld [vmem:[#allocation5 + $0x30] sm:$0xff]
        %v392 = vld [vmem:[#allocation5 + $0x38] sm:$0xff]
        %v393 = vld [vmem:[#allocation5 + $0x40] sm:$0xff]
        %v394 = vld [vmem:[#allocation5 + $0x48] sm:$0xff]
        %v395 = vld [vmem:[#allocation5 + $0x50] sm:$0xff]
        %v396 = vld [vmem:[#allocation5 + $0x58] sm:$0xff]
        %v397 = vld [vmem:[#allocation5 + $0x60] sm:$0xff]
        %v398 = vld [vmem:[#allocation5 + $0x68] sm:$0xff]
        %v399 = vld [vmem:[#allocation5 + $0x70] sm:$0xff]
        %v400 = vld [vmem:[#allocation5 + $0x78] sm:$0xff]
        %v401 = vld [vmem:[%s2] sm:$0x3]
        %v403 = vlaneseq
        %v404 = vshrl.u32 %v403, 7
        %v405 = vsub.s32 0, %v404
        %v406 = vrot.slane %v401, %v405
        %v407 = vlaneseq
        %v408 = vshrl.u32 %v407, 7
        %v409 = vsub.s32 1, %v408
        %v410 = vrot.slane %v401, %v409
        %v429 = vunpack.c.l.b16 %v385
        %v430 = vunpack.c.h.b16 %v385
        %v431 = vunpack.c.l.b16 %v386
        %v432 = vunpack.c.h.b16 %v386
        %v433 = vunpack.c.l.b16 %v387
        %v434 = vunpack.c.h.b16 %v387
        %v435 = vunpack.c.l.b16 %v388
        %v436 = vunpack.c.h.b16 %v388
        %v437 = vunpack.c.l.b16 %v389
        %v438 = vunpack.c.h.b16 %v389
        %v439 = vunpack.c.l.b16 %v390
        %v440 = vunpack.c.h.b16 %v390
        %v441 = vunpack.c.l.b16 %v391
        %v442 = vunpack.c.h.b16 %v391
        %v443 = vunpack.c.l.b16 %v392
        %v444 = vunpack.c.h.b16 %v392
        %v445 = vunpack.c.l.b16 %v393
        %v446 = vunpack.c.h.b16 %v393
        %v447 = vunpack.c.l.b16 %v394
        %v448 = vunpack.c.h.b16 %v394
        %v449 = vunpack.c.l.b16 %v395
        %v450 = vunpack.c.h.b16 %v395
        %v451 = vunpack.c.l.b16 %v396
        %v452 = vunpack.c.h.b16 %v396
        %v453 = vunpack.c.l.b16 %v397
        %v454 = vunpack.c.h.b16 %v397
        %v455 = vunpack.c.l.b16 %v398
        %v456 = vunpack.c.h.b16 %v398
        %v457 = vunpack.c.l.b16 %v399
        %v458 = vunpack.c.h.b16 %v399
        %v459 = vunpack.c.l.b16 %v400
        %v460 = vunpack.c.h.b16 %v400
        %v461 = vpack.c.b16 %v431, %v429
        %v462 = vpack.c.b16 %v432, %v430
        %v463 = vpack.c.b16 %v435, %v433
        %v464 = vpack.c.b16 %v436, %v434
        %v465 = vpack.c.b16 %v439, %v437
        %v466 = vpack.c.b16 %v440, %v438
        %v467 = vpack.c.b16 %v443, %v441
        %v468 = vpack.c.b16 %v444, %v442
        %v469 = vpack.c.b16 %v447, %v445
        %v470 = vpack.c.b16 %v448, %v446
        %v471 = vpack.c.b16 %v451, %v449
        %v472 = vpack.c.b16 %v452, %v450
        %v473 = vpack.c.b16 %v455, %v453
        %v474 = vpack.c.b16 %v456, %v454
        %v475 = vpack.c.b16 %v459, %v457
        %v476 = vpack.c.b16 %v460, %v458
        %493 = vmatprep.subr.bf16.mxu0 %v462
        %494 = vmatpush1.bf16.msra.mxu0 %v461
        %495 = vmatprep.subr.bf16.mxu0 %v464
        %496 = vmatpush1.bf16.msra.mxu0 %v463
        %497 = vmatprep.subr.bf16.mxu0 %v466
        %498 = vmatpush1.bf16.msra.mxu0 %v465
        %499 = vmatprep.subr.bf16.mxu0 %v468
        %500 = vmatpush1.bf16.msra.mxu0 %v467
        %501 = vmatprep.subr.bf16.mxu0 %v470
        %502 = vmatpush1.bf16.msra.mxu0 %v469
        %503 = vmatprep.subr.bf16.mxu0 %v472
        %504 = vmatpush1.bf16.msra.mxu0 %v471
        %505 = vmatprep.subr.bf16.mxu0 %v474
        %506 = vmatpush1.bf16.msra.mxu0 %v473
        %507 = vmatprep.subr.bf16.mxu0 %v476
        %508 = vmatpush1.bf16.msra.mxu0 %v475
        %509 = vmatprep.subr.bf16.mxu0 0
        %510 = vmatpush1.bf16.msra.mxu0 0
        %511 = vmatprep.subr.bf16.mxu0 0
        %512 = vmatpush1.bf16.msra.mxu0 0
        %513 = vmatprep.subr.bf16.mxu0 0
        %514 = vmatpush1.bf16.msra.mxu0 0
        %515 = vmatprep.subr.bf16.mxu0 0
        %516 = vmatpush1.bf16.msra.mxu0 0
        %517 = vmatprep.subr.bf16.mxu0 0
        %518 = vmatpush1.bf16.msra.mxu0 0
        %519 = vmatprep.subr.bf16.mxu0 0
        %520 = vmatpush1.bf16.msra.mxu0 0
        %521 = vmatprep.subr.bf16.mxu0 0
        %522 = vmatpush1.bf16.msra.mxu0 0
        %523 = vmatprep.subr.bf16.mxu0 0
        %524 = vmatpush1.bf16.msra.mxu0 0
        %525 = vmatprep.mubr.bf16.mxu0 0
        %526 = vmatmul.mubr.bf16.gmra.mrb[0].mxu0 %v353
        %v527 = vpop.f32.mrb[0].mxu0
        %v528 = vadd.f32 %v406, %v527
        %v529 = vpop.f32.mrb[0].mxu0
        %v530 = vadd.f32 %v410, %v529
        %v531 = vpop.f32.mrb[0].mxu0
        %v532 = vadd.f32 %v406, %v531
        %v533 = vpop.f32.mrb[0].mxu0
        %v534 = vadd.f32 %v410, %v533
        %535 = vmatprep.mubr.bf16.mxu0 0
        %536 = vmatmul.mubr.bf16.gmra.mrb[0].mxu0 %v354
        %v537 = vpop.f32.mrb[0].mxu0
        %v538 = vadd.f32 %v406, %v537
        %v539 = vpop.f32.mrb[0].mxu0
        %v540 = vadd.f32 %v410, %v539
        %v541 = vpop.f32.mrb[0].mxu0
        %v542 = vadd.f32 %v406, %v541
        %v543 = vpop.f32.mrb[0].mxu0
        %v544 = vadd.f32 %v410, %v543
        %545 = vmatprep.mubr.bf16.mxu0 0
        %546 = vmatmul.mubr.bf16.gmra.mrb[0].mxu0 %v355
        %v547 = vpop.f32.mrb[0].mxu0
        %v548 = vadd.f32 %v406, %v547
        %v549 = vpop.f32.mrb[0].mxu0
        %v550 = vadd.f32 %v410, %v549
        %v551 = vpop.f32.mrb[0].mxu0
        %v552 = vadd.f32 %v406, %v551
        %v553 = vpop.f32.mrb[0].mxu0
        %v554 = vadd.f32 %v410, %v553
        %555 = vmatprep.mubr.bf16.mxu0 0
        %556 = vmatmul.mubr.bf16.gmra.mrb[0].mxu0 %v356
        %v557 = vpop.f32.mrb[0].mxu0
        %v558 = vadd.f32 %v406, %v557
        %v559 = vpop.f32.mrb[0].mxu0
        %v560 = vadd.f32 %v410, %v559
        %v561 = vpop.f32.mrb[0].mxu0
        %v562 = vadd.f32 %v406, %v561
        %v563 = vpop.f32.mrb[0].mxu0
        %v564 = vadd.f32 %v410, %v563
        %565 = vmatprep.mubr.bf16.mxu0 0
        %566 = vmatmul.mubr.bf16.gmra.mrb[0].mxu0 %v357
        %v567 = vpop.f32.mrb[0].mxu0
        %v568 = vadd.f32 %v406, %v567
        %v569 = vpop.f32.mrb[0].mxu0
        %v570 = vadd.f32 %v410, %v569
        %v571 = vpop.f32.mrb[0].mxu0
        %v572 = vadd.f32 %v406, %v571
        %v573 = vpop.f32.mrb[0].mxu0
        %v574 = vadd.f32 %v410, %v573
        %575 = vmatprep.mubr.bf16.mxu0 0
        %576 = vmatmul.mubr.bf16.gmra.mrb[0].mxu0 %v358
        %v577 = vpop.f32.mrb[0].mxu0
        %v578 = vadd.f32 %v406, %v577
        %v579 = vpop.f32.mrb[0].mxu0
        %v580 = vadd.f32 %v410, %v579
        %v581 = vpop.f32.mrb[0].mxu0
        %v582 = vadd.f32 %v406, %v581
        %v583 = vpop.f32.mrb[0].mxu0
        %v584 = vadd.f32 %v410, %v583
        %585 = vmatprep.mubr.bf16.mxu0 0
        %586 = vmatmul.mubr.bf16.gmra.mrb[0].mxu0 %v359
        %v587 = vpop.f32.mrb[0].mxu0
        %v588 = vadd.f32 %v406, %v587
        %v589 = vpop.f32.mrb[0].mxu0
        %v590 = vadd.f32 %v410, %v589
        %v591 = vpop.f32.mrb[0].mxu0
        %v592 = vadd.f32 %v406, %v591
        %v593 = vpop.f32.mrb[0].mxu0
        %v594 = vadd.f32 %v410, %v593
        %595 = vmatprep.mubr.bf16.mxu0 0
        %596 = vmatmul.mubr.bf16.gmra.mrb[0].mxu0 %v360
        %v597 = vpop.f32.mrb[0].mxu0
        %v598 = vadd.f32 %v406, %v597
        %v599 = vpop.f32.mrb[0].mxu0
        %v600 = vadd.f32 %v410, %v599
        %v601 = vpop.f32.mrb[0].mxu0
        %v602 = vadd.f32 %v406, %v601
        %v603 = vpop.f32.mrb[0].mxu0
        %v604 = vadd.f32 %v410, %v603
        %605 = vmatprep.mubr.bf16.mxu0 0
        %606 = vmatmul.mubr.bf16.gmra.mrb[0].mxu0 %v361
        %v607 = vpop.f32.mrb[0].mxu0
        %v608 = vadd.f32 %v406, %v607
        %v609 = vpop.f32.mrb[0].mxu0
        %v610 = vadd.f32 %v410, %v609
        %v611 = vpop.f32.mrb[0].mxu0
        %v612 = vadd.f32 %v406, %v611
        %v613 = vpop.f32.mrb[0].mxu0
        %v614 = vadd.f32 %v410, %v613
        %615 = vmatprep.mubr.bf16.mxu0 0
        %616 = vmatmul.mubr.bf16.gmra.mrb[0].mxu0 %v362
        %v617 = vpop.f32.mrb[0].mxu0
        %v618 = vadd.f32 %v406, %v617
        %v619 = vpop.f32.mrb[0].mxu0
        %v620 = vadd.f32 %v410, %v619
        %v621 = vpop.f32.mrb[0].mxu0
        %v622 = vadd.f32 %v406, %v621
        %v623 = vpop.f32.mrb[0].mxu0
        %v624 = vadd.f32 %v410, %v623
        %625 = vmatprep.mubr.bf16.mxu0 0
        %626 = vmatmul.mubr.bf16.gmra.mrb[0].mxu0 %v363
        %v627 = vpop.f32.mrb[0].mxu0
        %v628 = vadd.f32 %v406, %v627
        %v629 = vpop.f32.mrb[0].mxu0
        %v630 = vadd.f32 %v410, %v629
        %v631 = vpop.f32.mrb[0].mxu0
        %v632 = vadd.f32 %v406, %v631
        %v633 = vpop.f32.mrb[0].mxu0
        %v634 = vadd.f32 %v410, %v633
        %635 = vmatprep.mubr.bf16.mxu0 0
        %636 = vmatmul.mubr.bf16.gmra.mrb[0].mxu0 %v364
        %v637 = vpop.f32.mrb[0].mxu0
        %v638 = vadd.f32 %v406, %v637
        %v639 = vpop.f32.mrb[0].mxu0
        %v640 = vadd.f32 %v410, %v639
        %v641 = vpop.f32.mrb[0].mxu0
        %v642 = vadd.f32 %v406, %v641
        %v643 = vpop.f32.mrb[0].mxu0
        %v644 = vadd.f32 %v410, %v643
        %645 = vmatprep.mubr.bf16.mxu0 0
        %646 = vmatmul.mubr.bf16.gmra.mrb[0].mxu0 %v365
        %v647 = vpop.f32.mrb[0].mxu0
        %v648 = vadd.f32 %v406, %v647
        %v649 = vpop.f32.mrb[0].mxu0
        %v650 = vadd.f32 %v410, %v649
        %v651 = vpop.f32.mrb[0].mxu0
        %v652 = vadd.f32 %v406, %v651
        %v653 = vpop.f32.mrb[0].mxu0
        %v654 = vadd.f32 %v410, %v653
        %655 = vmatprep.mubr.bf16.mxu0 0
        %656 = vmatmul.mubr.bf16.gmra.mrb[0].mxu0 %v366
        %v657 = vpop.f32.mrb[0].mxu0
        %v658 = vadd.f32 %v406, %v657
        %v659 = vpop.f32.mrb[0].mxu0
        %v660 = vadd.f32 %v410, %v659
        %v661 = vpop.f32.mrb[0].mxu0
        %v662 = vadd.f32 %v406, %v661
        %v663 = vpop.f32.mrb[0].mxu0
        %v664 = vadd.f32 %v410, %v663
        %665 = vmatprep.mubr.bf16.mxu0 0
        %666 = vmatmul.mubr.bf16.gmra.mrb[0].mxu0 %v367
        %v667 = vpop.f32.mrb[0].mxu0
        %v668 = vadd.f32 %v406, %v667
        %v669 = vpop.f32.mrb[0].mxu0
        %v670 = vadd.f32 %v410, %v669
        %v671 = vpop.f32.mrb[0].mxu0
        %v672 = vadd.f32 %v406, %v671
        %v673 = vpop.f32.mrb[0].mxu0
        %v674 = vadd.f32 %v410, %v673
        %675 = vmatprep.mubr.bf16.mxu0 0
        %676 = vmatmul.mubr.bf16.gmra.mrb[0].mxu0 %v368
        %v677 = vpop.f32.mrb[0].mxu0
        %v678 = vadd.f32 %v406, %v677
        %v679 = vpop.f32.mrb[0].mxu0
        %v680 = vadd.f32 %v410, %v679
        %v681 = vpop.f32.mrb[0].mxu0
        %v682 = vadd.f32 %v406, %v681
        %v683 = vpop.f32.mrb[0].mxu0
        %v684 = vadd.f32 %v410, %v683
        %685 = vmatprep.mubr.bf16.mxu0 0
        %686 = vmatmul.mubr.bf16.gmra.mrb[0].mxu0 %v369
        %v687 = vpop.f32.mrb[0].mxu0
        %v688 = vadd.f32 %v406, %v687
        %v689 = vpop.f32.mrb[0].mxu0
        %v690 = vadd.f32 %v410, %v689
        %v691 = vpop.f32.mrb[0].mxu0
        %v692 = vadd.f32 %v406, %v691
        %v693 = vpop.f32.mrb[0].mxu0
        %v694 = vadd.f32 %v410, %v693
        %695 = vmatprep.mubr.bf16.mxu0 0
        %696 = vmatmul.mubr.bf16.gmra.mrb[0].mxu0 %v370
        %v697 = vpop.f32.mrb[0].mxu0
        %v698 = vadd.f32 %v406, %v697
        %v699 = vpop.f32.mrb[0].mxu0
        %v700 = vadd.f32 %v410, %v699
        %v701 = vpop.f32.mrb[0].mxu0
        %v702 = vadd.f32 %v406, %v701
        %v703 = vpop.f32.mrb[0].mxu0
        %v704 = vadd.f32 %v410, %v703
        %705 = vmatprep.mubr.bf16.mxu0 0
        %706 = vmatmul.mubr.bf16.gmra.mrb[0].mxu0 %v371
        %v707 = vpop.f32.mrb[0].mxu0
        %v708 = vadd.f32 %v406, %v707
        %v709 = vpop.f32.mrb[0].mxu0
        %v710 = vadd.f32 %v410, %v709
        %v711 = vpop.f32.mrb[0].mxu0
        %v712 = vadd.f32 %v406, %v711
        %v713 = vpop.f32.mrb[0].mxu0
        %v714 = vadd.f32 %v410, %v713
        %715 = vmatprep.mubr.bf16.mxu0 0
        %716 = vmatmul.mubr.bf16.gmra.mrb[0].mxu0 %v372
        %v717 = vpop.f32.mrb[0].mxu0
        %v718 = vadd.f32 %v406, %v717
        %v719 = vpop.f32.mrb[0].mxu0
        %v720 = vadd.f32 %v410, %v719
        %v721 = vpop.f32.mrb[0].mxu0
        %v722 = vadd.f32 %v406, %v721
        %v723 = vpop.f32.mrb[0].mxu0
        %v724 = vadd.f32 %v410, %v723
        %725 = vmatprep.mubr.bf16.mxu0 0
        %726 = vmatmul.mubr.bf16.gmra.mrb[0].mxu0 %v373
        %v727 = vpop.f32.mrb[0].mxu0
        %v728 = vadd.f32 %v406, %v727
        %v729 = vpop.f32.mrb[0].mxu0
        %v730 = vadd.f32 %v410, %v729
        %v731 = vpop.f32.mrb[0].mxu0
        %v732 = vadd.f32 %v406, %v731
        %v733 = vpop.f32.mrb[0].mxu0
        %v734 = vadd.f32 %v410, %v733
        %735 = vmatprep.mubr.bf16.mxu0 0
        %736 = vmatmul.mubr.bf16.gmra.mrb[0].mxu0 %v374
        %v737 = vpop.f32.mrb[0].mxu0
        %v738 = vadd.f32 %v406, %v737
        %v739 = vpop.f32.mrb[0].mxu0
        %v740 = vadd.f32 %v410, %v739
        %v741 = vpop.f32.mrb[0].mxu0
        %v742 = vadd.f32 %v406, %v741
        %v743 = vpop.f32.mrb[0].mxu0
        %v744 = vadd.f32 %v410, %v743
        %745 = vmatprep.mubr.bf16.mxu0 0
        %746 = vmatmul.mubr.bf16.gmra.mrb[0].mxu0 %v375
        %v747 = vpop.f32.mrb[0].mxu0
        %v748 = vadd.f32 %v406, %v747
        %v749 = vpop.f32.mrb[0].mxu0
        %v750 = vadd.f32 %v410, %v749
        %v751 = vpop.f32.mrb[0].mxu0
        %v752 = vadd.f32 %v406, %v751
        %v753 = vpop.f32.mrb[0].mxu0
        %v754 = vadd.f32 %v410, %v753
        %755 = vmatprep.mubr.bf16.mxu0 0
        %756 = vmatmul.mubr.bf16.gmra.mrb[0].mxu0 %v376
        %v757 = vpop.f32.mrb[0].mxu0
        %v758 = vadd.f32 %v406, %v757
        %v759 = vpop.f32.mrb[0].mxu0
        %v760 = vadd.f32 %v410, %v759
        %v761 = vpop.f32.mrb[0].mxu0
        %v762 = vadd.f32 %v406, %v761
        %v763 = vpop.f32.mrb[0].mxu0
        %v764 = vadd.f32 %v410, %v763
        %765 = vmatprep.mubr.bf16.mxu0 0
        %766 = vmatmul.mubr.bf16.gmra.mrb[0].mxu0 %v377
        %v767 = vpop.f32.mrb[0].mxu0
        %v768 = vadd.f32 %v406, %v767
        %v769 = vpop.f32.mrb[0].mxu0
        %v770 = vadd.f32 %v410, %v769
        %v771 = vpop.f32.mrb[0].mxu0
        %v772 = vadd.f32 %v406, %v771
        %v773 = vpop.f32.mrb[0].mxu0
        %v774 = vadd.f32 %v410, %v773
        %775 = vmatprep.mubr.bf16.mxu0 0
        %776 = vmatmul.mubr.bf16.gmra.mrb[0].mxu0 %v378
        %v777 = vpop.f32.mrb[0].mxu0
        %v778 = vadd.f32 %v406, %v777
        %v779 = vpop.f32.mrb[0].mxu0
        %v780 = vadd.f32 %v410, %v779
        %v781 = vpop.f32.mrb[0].mxu0
        %v782 = vadd.f32 %v406, %v781
        %v783 = vpop.f32.mrb[0].mxu0
        %v784 = vadd.f32 %v410, %v783
        %785 = vmatprep.mubr.bf16.mxu0 0
        %786 = vmatmul.mubr.bf16.gmra.mrb[0].mxu0 %v379
        %v787 = vpop.f32.mrb[0].mxu0
        %v788 = vadd.f32 %v406, %v787
        %v789 = vpop.f32.mrb[0].mxu0
        %v790 = vadd.f32 %v410, %v789
        %v791 = vpop.f32.mrb[0].mxu0
        %v792 = vadd.f32 %v406, %v791
        %v793 = vpop.f32.mrb[0].mxu0
        %v794 = vadd.f32 %v410, %v793
        %795 = vmatprep.mubr.bf16.mxu0 0
        %796 = vmatmul.mubr.bf16.gmra.mrb[0].mxu0 %v380
        %v797 = vpop.f32.mrb[0].mxu0
        %v798 = vadd.f32 %v406, %v797
        %v799 = vpop.f32.mrb[0].mxu0
        %v800 = vadd.f32 %v410, %v799
        %v801 = vpop.f32.mrb[0].mxu0
        %v802 = vadd.f32 %v406, %v801
        %v803 = vpop.f32.mrb[0].mxu0
        %v804 = vadd.f32 %v410, %v803
        %805 = vmatprep.mubr.bf16.mxu0 0
        %806 = vmatmul.mubr.bf16.gmra.mrb[0].mxu0 %v381
        %v807 = vpop.f32.mrb[0].mxu0
        %v808 = vadd.f32 %v406, %v807
        %v809 = vpop.f32.mrb[0].mxu0
        %v810 = vadd.f32 %v410, %v809
        %v811 = vpop.f32.mrb[0].mxu0
        %v812 = vadd.f32 %v406, %v811
        %v813 = vpop.f32.mrb[0].mxu0
        %v814 = vadd.f32 %v410, %v813
        %815 = vmatprep.mubr.bf16.mxu0 0
        %816 = vmatmul.mubr.bf16.gmra.mrb[0].mxu0 %v382
        %v817 = vpop.f32.mrb[0].mxu0
        %v818 = vadd.f32 %v406, %v817
        %v819 = vpop.f32.mrb[0].mxu0
        %v820 = vadd.f32 %v410, %v819
        %v821 = vpop.f32.mrb[0].mxu0
        %v822 = vadd.f32 %v406, %v821
        %v823 = vpop.f32.mrb[0].mxu0
        %v824 = vadd.f32 %v410, %v823
        %825 = vmatprep.mubr.bf16.mxu0 0
        %826 = vmatmul.mubr.bf16.gmra.mrb[0].mxu0 %v383
        %v827 = vpop.f32.mrb[0].mxu0
        %v828 = vadd.f32 %v406, %v827
        %v829 = vpop.f32.mrb[0].mxu0
        %v830 = vadd.f32 %v410, %v829
        %v831 = vpop.f32.mrb[0].mxu0
        %v832 = vadd.f32 %v406, %v831
        %v833 = vpop.f32.mrb[0].mxu0
        %v834 = vadd.f32 %v410, %v833
        %835 = vmatprep.mubr.bf16.mxu0 0
        %836 = vmatmul.mubr.bf16.gmra.mrb[0].mxu0 %v384
        %v837 = vpop.f32.mrb[0].mxu0
        %v838 = vadd.f32 %v406, %v837
        %v839 = vpop.f32.mrb[0].mxu0
        %v840 = vadd.f32 %v410, %v839
        %v841 = vpop.f32.mrb[0].mxu0
        %v842 = vadd.f32 %v406, %v841
        %v843 = vpop.f32.mrb[0].mxu0
        %v844 = vadd.f32 %v410, %v843
        %845 = vdwg.mxu0
        %v846 = vmul.f32 %v528, 0.5
        %v847 = vmul.f32 %v530, 0.5
        %v848 = vmul.f32 %v532, 0.5
        %v849 = vmul.f32 %v534, 0.5
        %v850 = vmul.f32 %v538, 0.5
        %v851 = vmul.f32 %v540, 0.5
        %v852 = vmul.f32 %v542, 0.5
        %v853 = vmul.f32 %v544, 0.5
        %v854 = vmul.f32 %v548, 0.5
        %v855 = vmul.f32 %v550, 0.5
        %v856 = vmul.f32 %v552, 0.5
        %v857 = vmul.f32 %v554, 0.5
        %v858 = vmul.f32 %v558, 0.5
        %v859 = vmul.f32 %v560, 0.5
        %v860 = vmul.f32 %v562, 0.5
        %v861 = vmul.f32 %v564, 0.5
        %v862 = vmul.f32 %v568, 0.5
        %v863 = vmul.f32 %v570, 0.5
        %v864 = vmul.f32 %v572, 0.5
        %v865 = vmul.f32 %v574, 0.5
        %v866 = vmul.f32 %v578, 0.5
        %v867 = vmul.f32 %v580, 0.5
        %v868 = vmul.f32 %v582, 0.5
        %v869 = vmul.f32 %v584, 0.5
        %v870 = vmul.f32 %v588, 0.5
        %v871 = vmul.f32 %v590, 0.5
        %v872 = vmul.f32 %v592, 0.5
        %v873 = vmul.f32 %v594, 0.5
        %v874 = vmul.f32 %v598, 0.5
        %v875 = vmul.f32 %v600, 0.5
        %v876 = vmul.f32 %v602, 0.5
        %v877 = vmul.f32 %v604, 0.5
        %v878 = vmul.f32 %v608, 0.5
        %v879 = vmul.f32 %v610, 0.5
        %v880 = vmul.f32 %v612, 0.5
        %v881 = vmul.f32 %v614, 0.5
        %v882 = vmul.f32 %v618, 0.5
        %v883 = vmul.f32 %v620, 0.5
        %v884 = vmul.f32 %v622, 0.5
        %v885 = vmul.f32 %v624, 0.5
        %v886 = vmul.f32 %v628, 0.5
        %v887 = vmul.f32 %v630, 0.5
        %v888 = vmul.f32 %v632, 0.5
        %v889 = vmul.f32 %v634, 0.5
        %v890 = vmul.f32 %v638, 0.5
        %v891 = vmul.f32 %v640, 0.5
        %v892 = vmul.f32 %v642, 0.5
        %v893 = vmul.f32 %v644, 0.5
        %v894 = vmul.f32 %v648, 0.5
        %v895 = vmul.f32 %v650, 0.5
        %v896 = vmul.f32 %v652, 0.5
        %v897 = vmul.f32 %v654, 0.5
        %v898 = vmul.f32 %v658, 0.5
        %v899 = vmul.f32 %v660, 0.5
        %v900 = vmul.f32 %v662, 0.5
        %v901 = vmul.f32 %v664, 0.5
        %v902 = vmul.f32 %v668, 0.5
        %v903 = vmul.f32 %v670, 0.5
        %v904 = vmul.f32 %v672, 0.5
        %v905 = vmul.f32 %v674, 0.5
        %v906 = vmul.f32 %v678, 0.5
        %v907 = vmul.f32 %v680, 0.5
        %v908 = vmul.f32 %v682, 0.5
        %v909 = vmul.f32 %v684, 0.5
        %v910 = vmul.f32 %v688, 0.5
        %v911 = vmul.f32 %v690, 0.5
        %v912 = vmul.f32 %v692, 0.5
        %v913 = vmul.f32 %v694, 0.5
        %v914 = vmul.f32 %v698, 0.5
        %v915 = vmul.f32 %v700, 0.5
        %v916 = vmul.f32 %v702, 0.5
        %v917 = vmul.f32 %v704, 0.5
        %v918 = vmul.f32 %v708, 0.5
        %v919 = vmul.f32 %v710, 0.5
        %v920 = vmul.f32 %v712, 0.5
        %v921 = vmul.f32 %v714, 0.5
        %v922 = vmul.f32 %v718, 0.5
        %v923 = vmul.f32 %v720, 0.5
        %v924 = vmul.f32 %v722, 0.5
        %v925 = vmul.f32 %v724, 0.5
        %v926 = vmul.f32 %v728, 0.5
        %v927 = vmul.f32 %v730, 0.5
        %v928 = vmul.f32 %v732, 0.5
        %v929 = vmul.f32 %v734, 0.5
        %v930 = vmul.f32 %v738, 0.5
        %v931 = vmul.f32 %v740, 0.5
        %v932 = vmul.f32 %v742, 0.5
        %v933 = vmul.f32 %v744, 0.5
        %v934 = vmul.f32 %v748, 0.5
        %v935 = vmul.f32 %v750, 0.5
        %v936 = vmul.f32 %v752, 0.5
        %v937 = vmul.f32 %v754, 0.5
        %v938 = vmul.f32 %v758, 0.5
        %v939 = vmul.f32 %v760, 0.5
        %v940 = vmul.f32 %v762, 0.5
        %v941 = vmul.f32 %v764, 0.5
        %v942 = vmul.f32 %v768, 0.5
        %v943 = vmul.f32 %v770, 0.5
        %v944 = vmul.f32 %v772, 0.5
        %v945 = vmul.f32 %v774, 0.5
        %v946 = vmul.f32 %v778, 0.5
        %v947 = vmul.f32 %v780, 0.5
        %v948 = vmul.f32 %v782, 0.5
        %v949 = vmul.f32 %v784, 0.5
        %v950 = vmul.f32 %v788, 0.5
        %v951 = vmul.f32 %v790, 0.5
        %v952 = vmul.f32 %v792, 0.5
        %v953 = vmul.f32 %v794, 0.5
        %v954 = vmul.f32 %v798, 0.5
        %v955 = vmul.f32 %v800, 0.5
        %v956 = vmul.f32 %v802, 0.5
        %v957 = vmul.f32 %v804, 0.5
        %v958 = vmul.f32 %v808, 0.5
        %v959 = vmul.f32 %v810, 0.5
        %v960 = vmul.f32 %v812, 0.5
        %v961 = vmul.f32 %v814, 0.5
        %v962 = vmul.f32 %v818, 0.5
        %v963 = vmul.f32 %v820, 0.5
        %v964 = vmul.f32 %v822, 0.5
        %v965 = vmul.f32 %v824, 0.5
        %v966 = vmul.f32 %v828, 0.5
        %v967 = vmul.f32 %v830, 0.5
        %v968 = vmul.f32 %v832, 0.5
        %v969 = vmul.f32 %v834, 0.5
        %v970 = vmul.f32 %v838, 0.5
        %v971 = vmul.f32 %v840, 0.5
        %v972 = vmul.f32 %v842, 0.5
        %v973 = vmul.f32 %v844, 0.5
        %v974 = vmul.f32 %v528, 0.044715
        %v975 = vmul.f32 %v530, 0.044715
        %v976 = vmul.f32 %v532, 0.044715
        %v977 = vmul.f32 %v534, 0.044715
        %v978 = vmul.f32 %v538, 0.044715
        %v979 = vmul.f32 %v540, 0.044715
        %v980 = vmul.f32 %v542, 0.044715
        %v981 = vmul.f32 %v544, 0.044715
        %v982 = vmul.f32 %v548, 0.044715
        %v983 = vmul.f32 %v550, 0.044715
        %v984 = vmul.f32 %v552, 0.044715
        %v985 = vmul.f32 %v554, 0.044715
        %v986 = vmul.f32 %v558, 0.044715
        %v987 = vmul.f32 %v560, 0.044715
        %v988 = vmul.f32 %v562, 0.044715
        %v989 = vmul.f32 %v564, 0.044715
        %v990 = vmul.f32 %v568, 0.044715
        %v991 = vmul.f32 %v570, 0.044715
        %v992 = vmul.f32 %v572, 0.044715
        %v993 = vmul.f32 %v574, 0.044715
        %v994 = vmul.f32 %v578, 0.044715
        %v995 = vmul.f32 %v580, 0.044715
        %v996 = vmul.f32 %v582, 0.044715
        %v997 = vmul.f32 %v584, 0.044715
        %v998 = vmul.f32 %v588, 0.044715
        %v999 = vmul.f32 %v590, 0.044715
        %v1000 = vmul.f32 %v592, 0.044715
        %v1001 = vmul.f32 %v594, 0.044715
        %v1002 = vmul.f32 %v598, 0.044715
        %v1003 = vmul.f32 %v600, 0.044715
        %v1004 = vmul.f32 %v602, 0.044715
        %v1005 = vmul.f32 %v604, 0.044715
        %v1006 = vmul.f32 %v608, 0.044715
        %v1007 = vmul.f32 %v610, 0.044715
        %v1008 = vmul.f32 %v612, 0.044715
        %v1009 = vmul.f32 %v614, 0.044715
        %v1010 = vmul.f32 %v618, 0.044715
        %v1011 = vmul.f32 %v620, 0.044715
        %v1012 = vmul.f32 %v622, 0.044715
        %v1013 = vmul.f32 %v624, 0.044715
        %v1014 = vmul.f32 %v628, 0.044715
        %v1015 = vmul.f32 %v630, 0.044715
        %v1016 = vmul.f32 %v632, 0.044715
        %v1017 = vmul.f32 %v634, 0.044715
        %v1018 = vmul.f32 %v638, 0.044715
        %v1019 = vmul.f32 %v640, 0.044715
        %v1020 = vmul.f32 %v642, 0.044715
        %v1021 = vmul.f32 %v644, 0.044715
        %v1022 = vmul.f32 %v648, 0.044715
        %v1023 = vmul.f32 %v650, 0.044715
        %v1024 = vmul.f32 %v652, 0.044715
        %v1025 = vmul.f32 %v654, 0.044715
        %v1026 = vmul.f32 %v658, 0.044715
        %v1027 = vmul.f32 %v660, 0.044715
        %v1028 = vmul.f32 %v662, 0.044715
        %v1029 = vmul.f32 %v664, 0.044715
        %v1030 = vmul.f32 %v668, 0.044715
        %v1031 = vmul.f32 %v670, 0.044715
        %v1032 = vmul.f32 %v672, 0.044715
        %v1033 = vmul.f32 %v674, 0.044715
        %v1034 = vmul.f32 %v678, 0.044715
        %v1035 = vmul.f32 %v680, 0.044715
        %v1036 = vmul.f32 %v682, 0.044715
        %v1037 = vmul.f32 %v684, 0.044715
        %v1038 = vmul.f32 %v688, 0.044715
        %v1039 = vmul.f32 %v690, 0.044715
        %v1040 = vmul.f32 %v692, 0.044715
        %v1041 = vmul.f32 %v694, 0.044715
        %v1042 = vmul.f32 %v698, 0.044715
        %v1043 = vmul.f32 %v700, 0.044715
        %v1044 = vmul.f32 %v702, 0.044715
        %v1045 = vmul.f32 %v704, 0.044715
        %v1046 = vmul.f32 %v708, 0.044715
        %v1047 = vmul.f32 %v710, 0.044715
        %v1048 = vmul.f32 %v712, 0.044715
        %v1049 = vmul.f32 %v714, 0.044715
        %v1050 = vmul.f32 %v718, 0.044715
        %v1051 = vmul.f32 %v720, 0.044715
        %v1052 = vmul.f32 %v722, 0.044715
        %v1053 = vmul.f32 %v724, 0.044715
        %v1054 = vmul.f32 %v728, 0.044715
        %v1055 = vmul.f32 %v730, 0.044715
        %v1056 = vmul.f32 %v732, 0.044715
        %v1057 = vmul.f32 %v734, 0.044715
        %v1058 = vmul.f32 %v738, 0.044715
        %v1059 = vmul.f32 %v740, 0.044715
        %v1060 = vmul.f32 %v742, 0.044715
        %v1061 = vmul.f32 %v744, 0.044715
        %v1062 = vmul.f32 %v748, 0.044715
        %v1063 = vmul.f32 %v750, 0.044715
        %v1064 = vmul.f32 %v752, 0.044715
        %v1065 = vmul.f32 %v754, 0.044715
        %v1066 = vmul.f32 %v758, 0.044715
        %v1067 = vmul.f32 %v760, 0.044715
        %v1068 = vmul.f32 %v762, 0.044715
        %v1069 = vmul.f32 %v764, 0.044715
        %v1070 = vmul.f32 %v768, 0.044715
        %v1071 = vmul.f32 %v770, 0.044715
        %v1072 = vmul.f32 %v772, 0.044715
        %v1073 = vmul.f32 %v774, 0.044715
        %v1074 = vmul.f32 %v778, 0.044715
        %v1075 = vmul.f32 %v780, 0.044715
        %v1076 = vmul.f32 %v782, 0.044715
        %v1077 = vmul.f32 %v784, 0.044715
        %v1078 = vmul.f32 %v788, 0.044715
        %v1079 = vmul.f32 %v790, 0.044715
        %v1080 = vmul.f32 %v792, 0.044715
        %v1081 = vmul.f32 %v794, 0.044715
        %v1082 = vmul.f32 %v798, 0.044715
        %v1083 = vmul.f32 %v800, 0.044715
        %v1084 = vmul.f32 %v802, 0.044715
        %v1085 = vmul.f32 %v804, 0.044715
        %v1086 = vmul.f32 %v808, 0.044715
        %v1087 = vmul.f32 %v810, 0.044715
        %v1088 = vmul.f32 %v812, 0.044715
        %v1089 = vmul.f32 %v814, 0.044715
        %v1090 = vmul.f32 %v818, 0.044715
        %v1091 = vmul.f32 %v820, 0.044715
        %v1092 = vmul.f32 %v822, 0.044715
        %v1093 = vmul.f32 %v824, 0.044715
        %v1094 = vmul.f32 %v828, 0.044715
        %v1095 = vmul.f32 %v830, 0.044715
        %v1096 = vmul.f32 %v832, 0.044715
        %v1097 = vmul.f32 %v834, 0.044715
        %v1098 = vmul.f32 %v838, 0.044715
        %v1099 = vmul.f32 %v840, 0.044715
        %v1100 = vmul.f32 %v842, 0.044715
        %v1101 = vmul.f32 %v844, 0.044715
        %v1102 = vmul.f32 %v974, %v528
        %v1103 = vmul.f32 %v975, %v530
        %v1104 = vmul.f32 %v976, %v532
        %v1105 = vmul.f32 %v977, %v534
        %v1106 = vmul.f32 %v978, %v538
        %v1107 = vmul.f32 %v979, %v540
        %v1108 = vmul.f32 %v980, %v542
        %v1109 = vmul.f32 %v981, %v544
        %v1110 = vmul.f32 %v982, %v548
        %v1111 = vmul.f32 %v983, %v550
        %v1112 = vmul.f32 %v984, %v552
        %v1113 = vmul.f32 %v985, %v554
        %v1114 = vmul.f32 %v986, %v558
        %v1115 = vmul.f32 %v987, %v560
        %v1116 = vmul.f32 %v988, %v562
        %v1117 = vmul.f32 %v989, %v564
        %v1118 = vmul.f32 %v990, %v568
        %v1119 = vmul.f32 %v991, %v570
        %v1120 = vmul.f32 %v992, %v572
        %v1121 = vmul.f32 %v993, %v574
        %v1122 = vmul.f32 %v994, %v578
        %v1123 = vmul.f32 %v995, %v580
        %v1124 = vmul.f32 %v996, %v582
        %v1125 = vmul.f32 %v997, %v584
        %v1126 = vmul.f32 %v998, %v588
        %v1127 = vmul.f32 %v999, %v590
        %v1128 = vmul.f32 %v1000, %v592
        %v1129 = vmul.f32 %v1001, %v594
        %v1130 = vmul.f32 %v1002, %v598
        %v1131 = vmul.f32 %v1003, %v600
        %v1132 = vmul.f32 %v1004, %v602
        %v1133 = vmul.f32 %v1005, %v604
        %v1134 = vmul.f32 %v1006, %v608
        %v1135 = vmul.f32 %v1007, %v610
        %v1136 = vmul.f32 %v1008, %v612
        %v1137 = vmul.f32 %v1009, %v614
        %v1138 = vmul.f32 %v1010, %v618
        %v1139 = vmul.f32 %v1011, %v620
        %v1140 = vmul.f32 %v1012, %v622
        %v1141 = vmul.f32 %v1013, %v624
        %v1142 = vmul.f32 %v1014, %v628
        %v1143 = vmul.f32 %v1015, %v630
        %v1144 = vmul.f32 %v1016, %v632
        %v1145 = vmul.f32 %v1017, %v634
        %v1146 = vmul.f32 %v1018, %v638
        %v1147 = vmul.f32 %v1019, %v640
        %v1148 = vmul.f32 %v1020, %v642
        %v1149 = vmul.f32 %v1021, %v644
        %v1150 = vmul.f32 %v1022, %v648
        %v1151 = vmul.f32 %v1023, %v650
        %v1152 = vmul.f32 %v1024, %v652
        %v1153 = vmul.f32 %v1025, %v654
        %v1154 = vmul.f32 %v1026, %v658
        %v1155 = vmul.f32 %v1027, %v660
        %v1156 = vmul.f32 %v1028, %v662
        %v1157 = vmul.f32 %v1029, %v664
        %v1158 = vmul.f32 %v1030, %v668
        %v1159 = vmul.f32 %v1031, %v670
        %v1160 = vmul.f32 %v1032, %v672
        %v1161 = vmul.f32 %v1033, %v674
        %v1162 = vmul.f32 %v1034, %v678
        %v1163 = vmul.f32 %v1035, %v680
        %v1164 = vmul.f32 %v1036, %v682
        %v1165 = vmul.f32 %v1037, %v684
        %v1166 = vmul.f32 %v1038, %v688
        %v1167 = vmul.f32 %v1039, %v690
        %v1168 = vmul.f32 %v1040, %v692
        %v1169 = vmul.f32 %v1041, %v694
        %v1170 = vmul.f32 %v1042, %v698
        %v1171 = vmul.f32 %v1043, %v700
        %v1172 = vmul.f32 %v1044, %v702
        %v1173 = vmul.f32 %v1045, %v704
        %v1174 = vmul.f32 %v1046, %v708
        %v1175 = vmul.f32 %v1047, %v710
        %v1176 = vmul.f32 %v1048, %v712
        %v1177 = vmul.f32 %v1049, %v714
        %v1178 = vmul.f32 %v1050, %v718
        %v1179 = vmul.f32 %v1051, %v720
        %v1180 = vmul.f32 %v1052, %v722
        %v1181 = vmul.f32 %v1053, %v724
        %v1182 = vmul.f32 %v1054, %v728
        %v1183 = vmul.f32 %v1055, %v730
        %v1184 = vmul.f32 %v1056, %v732
        %v1185 = vmul.f32 %v1057, %v734
        %v1186 = vmul.f32 %v1058, %v738
        %v1187 = vmul.f32 %v1059, %v740
        %v1188 = vmul.f32 %v1060, %v742
        %v1189 = vmul.f32 %v1061, %v744
        %v1190 = vmul.f32 %v1062, %v748
        %v1191 = vmul.f32 %v1063, %v750
        %v1192 = vmul.f32 %v1064, %v752
        %v1193 = vmul.f32 %v1065, %v754
        %v1194 = vmul.f32 %v1066, %v758
        %v1195 = vmul.f32 %v1067, %v760
        %v1196 = vmul.f32 %v1068, %v762
        %v1197 = vmul.f32 %v1069, %v764
        %v1198 = vmul.f32 %v1070, %v768
        %v1199 = vmul.f32 %v1071, %v770
        %v1200 = vmul.f32 %v1072, %v772
        %v1201 = vmul.f32 %v1073, %v774
        %v1202 = vmul.f32 %v1074, %v778
        %v1203 = vmul.f32 %v1075, %v780
        %v1204 = vmul.f32 %v1076, %v782
        %v1205 = vmul.f32 %v1077, %v784
        %v1206 = vmul.f32 %v1078, %v788
        %v1207 = vmul.f32 %v1079, %v790
        %v1208 = vmul.f32 %v1080, %v792
        %v1209 = vmul.f32 %v1081, %v794
        %v1210 = vmul.f32 %v1082, %v798
        %v1211 = vmul.f32 %v1083, %v800
        %v1212 = vmul.f32 %v1084, %v802
        %v1213 = vmul.f32 %v1085, %v804
        %v1214 = vmul.f32 %v1086, %v808
        %v1215 = vmul.f32 %v1087, %v810
        %v1216 = vmul.f32 %v1088, %v812
        %v1217 = vmul.f32 %v1089, %v814
        %v1218 = vmul.f32 %v1090, %v818
        %v1219 = vmul.f32 %v1091, %v820
        %v1220 = vmul.f32 %v1092, %v822
        %v1221 = vmul.f32 %v1093, %v824
        %v1222 = vmul.f32 %v1094, %v828
        %v1223 = vmul.f32 %v1095, %v830
        %v1224 = vmul.f32 %v1096, %v832
        %v1225 = vmul.f32 %v1097, %v834
        %v1226 = vmul.f32 %v1098, %v838
        %v1227 = vmul.f32 %v1099, %v840
        %v1228 = vmul.f32 %v1100, %v842
        %v1229 = vmul.f32 %v1101, %v844
        %v1230 = vmul.f32 %v1102, %v528
        %v1231 = vmul.f32 %v1103, %v530
        %v1232 = vmul.f32 %v1104, %v532
        %v1233 = vmul.f32 %v1105, %v534
        %v1234 = vmul.f32 %v1106, %v538
        %v1235 = vmul.f32 %v1107, %v540
        %v1236 = vmul.f32 %v1108, %v542
        %v1237 = vmul.f32 %v1109, %v544
        %v1238 = vmul.f32 %v1110, %v548
        %v1239 = vmul.f32 %v1111, %v550
        %v1240 = vmul.f32 %v1112, %v552
        %v1241 = vmul.f32 %v1113, %v554
        %v1242 = vmul.f32 %v1114, %v558
        %v1243 = vmul.f32 %v1115, %v560
        %v1244 = vmul.f32 %v1116, %v562
        %v1245 = vmul.f32 %v1117, %v564
        %v1246 = vmul.f32 %v1118, %v568
        %v1247 = vmul.f32 %v1119, %v570
        %v1248 = vmul.f32 %v1120, %v572
        %v1249 = vmul.f32 %v1121, %v574
        %v1250 = vmul.f32 %v1122, %v578
        %v1251 = vmul.f32 %v1123, %v580
        %v1252 = vmul.f32 %v1124, %v582
        %v1253 = vmul.f32 %v1125, %v584
        %v1254 = vmul.f32 %v1126, %v588
        %v1255 = vmul.f32 %v1127, %v590
        %v1256 = vmul.f32 %v1128, %v592
        %v1257 = vmul.f32 %v1129, %v594
        %v1258 = vmul.f32 %v1130, %v598
        %v1259 = vmul.f32 %v1131, %v600
        %v1260 = vmul.f32 %v1132, %v602
        %v1261 = vmul.f32 %v1133, %v604
        %v1262 = vmul.f32 %v1134, %v608
        %v1263 = vmul.f32 %v1135, %v610
        %v1264 = vmul.f32 %v1136, %v612
        %v1265 = vmul.f32 %v1137, %v614
        %v1266 = vmul.f32 %v1138, %v618
        %v1267 = vmul.f32 %v1139, %v620
        %v1268 = vmul.f32 %v1140, %v622
        %v1269 = vmul.f32 %v1141, %v624
        %v1270 = vmul.f32 %v1142, %v628
        %v1271 = vmul.f32 %v1143, %v630
        %v1272 = vmul.f32 %v1144, %v632
        %v1273 = vmul.f32 %v1145, %v634
        %v1274 = vmul.f32 %v1146, %v638
        %v1275 = vmul.f32 %v1147, %v640
        %v1276 = vmul.f32 %v1148, %v642
        %v1277 = vmul.f32 %v1149, %v644
        %v1278 = vmul.f32 %v1150, %v648
        %v1279 = vmul.f32 %v1151, %v650
        %v1280 = vmul.f32 %v1152, %v652
        %v1281 = vmul.f32 %v1153, %v654
        %v1282 = vmul.f32 %v1154, %v658
        %v1283 = vmul.f32 %v1155, %v660
        %v1284 = vmul.f32 %v1156, %v662
        %v1285 = vmul.f32 %v1157, %v664
        %v1286 = vmul.f32 %v1158, %v668
        %v1287 = vmul.f32 %v1159, %v670
        %v1288 = vmul.f32 %v1160, %v672
        %v1289 = vmul.f32 %v1161, %v674
        %v1290 = vmul.f32 %v1162, %v678
        %v1291 = vmul.f32 %v1163, %v680
        %v1292 = vmul.f32 %v1164, %v682
        %v1293 = vmul.f32 %v1165, %v684
        %v1294 = vmul.f32 %v1166, %v688
        %v1295 = vmul.f32 %v1167, %v690
        %v1296 = vmul.f32 %v1168, %v692
        %v1297 = vmul.f32 %v1169, %v694
        %v1298 = vmul.f32 %v1170, %v698
        %v1299 = vmul.f32 %v1171, %v700
        %v1300 = vmul.f32 %v1172, %v702
        %v1301 = vmul.f32 %v1173, %v704
        %v1302 = vmul.f32 %v1174, %v708
        %v1303 = vmul.f32 %v1175, %v710
        %v1304 = vmul.f32 %v1176, %v712
        %v1305 = vmul.f32 %v1177, %v714
        %v1306 = vmul.f32 %v1178, %v718
        %v1307 = vmul.f32 %v1179, %v720
        %v1308 = vmul.f32 %v1180, %v722
        %v1309 = vmul.f32 %v1181, %v724
        %v1310 = vmul.f32 %v1182, %v728
        %v1311 = vmul.f32 %v1183, %v730
        %v1312 = vmul.f32 %v1184, %v732
        %v1313 = vmul.f32 %v1185, %v734
        %v1314 = vmul.f32 %v1186, %v738
        %v1315 = vmul.f32 %v1187, %v740
        %v1316 = vmul.f32 %v1188, %v742
        %v1317 = vmul.f32 %v1189, %v744
        %v1318 = vmul.f32 %v1190, %v748
        %v1319 = vmul.f32 %v1191, %v750
        %v1320 = vmul.f32 %v1192, %v752
        %v1321 = vmul.f32 %v1193, %v754
        %v1322 = vmul.f32 %v1194, %v758
        %v1323 = vmul.f32 %v1195, %v760
        %v1324 = vmul.f32 %v1196, %v762
        %v1325 = vmul.f32 %v1197, %v764
        %v1326 = vmul.f32 %v1198, %v768
        %v1327 = vmul.f32 %v1199, %v770
        %v1328 = vmul.f32 %v1200, %v772
        %v1329 = vmul.f32 %v1201, %v774
        %v1330 = vmul.f32 %v1202, %v778
        %v1331 = vmul.f32 %v1203, %v780
        %v1332 = vmul.f32 %v1204, %v782
        %v1333 = vmul.f32 %v1205, %v784
        %v1334 = vmul.f32 %v1206, %v788
        %v1335 = vmul.f32 %v1207, %v790
        %v1336 = vmul.f32 %v1208, %v792
        %v1337 = vmul.f32 %v1209, %v794
        %v1338 = vmul.f32 %v1210, %v798
        %v1339 = vmul.f32 %v1211, %v800
        %v1340 = vmul.f32 %v1212, %v802
        %v1341 = vmul.f32 %v1213, %v804
        %v1342 = vmul.f32 %v1214, %v808
        %v1343 = vmul.f32 %v1215, %v810
        %v1344 = vmul.f32 %v1216, %v812
        %v1345 = vmul.f32 %v1217, %v814
        %v1346 = vmul.f32 %v1218, %v818
        %v1347 = vmul.f32 %v1219, %v820
        %v1348 = vmul.f32 %v1220, %v822
        %v1349 = vmul.f32 %v1221, %v824
        %v1350 = vmul.f32 %v1222, %v828
        %v1351 = vmul.f32 %v1223, %v830
        %v1352 = vmul.f32 %v1224, %v832
        %v1353 = vmul.f32 %v1225, %v834
        %v1354 = vmul.f32 %v1226, %v838
        %v1355 = vmul.f32 %v1227, %v840
        %v1356 = vmul.f32 %v1228, %v842
        %v1357 = vmul.f32 %v1229, %v844
        %v1358 = vadd.f32 %v528, %v1230
        %v1359 = vadd.f32 %v530, %v1231
        %v1360 = vadd.f32 %v532, %v1232
        %v1361 = vadd.f32 %v534, %v1233
        %v1362 = vadd.f32 %v538, %v1234
        %v1363 = vadd.f32 %v540, %v1235
        %v1364 = vadd.f32 %v542, %v1236
        %v1365 = vadd.f32 %v544, %v1237
        %v1366 = vadd.f32 %v548, %v1238
        %v1367 = vadd.f32 %v550, %v1239
        %v1368 = vadd.f32 %v552, %v1240
        %v1369 = vadd.f32 %v554, %v1241
        %v1370 = vadd.f32 %v558, %v1242
        %v1371 = vadd.f32 %v560, %v1243
        %v1372 = vadd.f32 %v562, %v1244
        %v1373 = vadd.f32 %v564, %v1245
        %v1374 = vadd.f32 %v568, %v1246
        %v1375 = vadd.f32 %v570, %v1247
        %v1376 = vadd.f32 %v572, %v1248
        %v1377 = vadd.f32 %v574, %v1249
        %v1378 = vadd.f32 %v578, %v1250
        %v1379 = vadd.f32 %v580, %v1251
        %v1380 = vadd.f32 %v582, %v1252
        %v1381 = vadd.f32 %v584, %v1253
        %v1382 = vadd.f32 %v588, %v1254
        %v1383 = vadd.f32 %v590, %v1255
        %v1384 = vadd.f32 %v592, %v1256
        %v1385 = vadd.f32 %v594, %v1257
        %v1386 = vadd.f32 %v598, %v1258
        %v1387 = vadd.f32 %v600, %v1259
        %v1388 = vadd.f32 %v602, %v1260
        %v1389 = vadd.f32 %v604, %v1261
        %v1390 = vadd.f32 %v608, %v1262
        %v1391 = vadd.f32 %v610, %v1263
        %v1392 = vadd.f32 %v612, %v1264
        %v1393 = vadd.f32 %v614, %v1265
        %v1394 = vadd.f32 %v618, %v1266
        %v1395 = vadd.f32 %v620, %v1267
        %v1396 = vadd.f32 %v622, %v1268
        %v1397 = vadd.f32 %v624, %v1269
        %v1398 = vadd.f32 %v628, %v1270
        %v1399 = vadd.f32 %v630, %v1271
        %v1400 = vadd.f32 %v632, %v1272
        %v1401 = vadd.f32 %v634, %v1273
        %v1402 = vadd.f32 %v638, %v1274
        %v1403 = vadd.f32 %v640, %v1275
        %v1404 = vadd.f32 %v642, %v1276
        %v1405 = vadd.f32 %v644, %v1277
        %v1406 = vadd.f32 %v648, %v1278
        %v1407 = vadd.f32 %v650, %v1279
        %v1408 = vadd.f32 %v652, %v1280
        %v1409 = vadd.f32 %v654, %v1281
        %v1410 = vadd.f32 %v658, %v1282
        %v1411 = vadd.f32 %v660, %v1283
        %v1412 = vadd.f32 %v662, %v1284
        %v1413 = vadd.f32 %v664, %v1285
        %v1414 = vadd.f32 %v668, %v1286
        %v1415 = vadd.f32 %v670, %v1287
        %v1416 = vadd.f32 %v672, %v1288
        %v1417 = vadd.f32 %v674, %v1289
        %v1418 = vadd.f32 %v678, %v1290
        %v1419 = vadd.f32 %v680, %v1291
        %v1420 = vadd.f32 %v682, %v1292
        %v1421 = vadd.f32 %v684, %v1293
        %v1422 = vadd.f32 %v688, %v1294
        %v1423 = vadd.f32 %v690, %v1295
        %v1424 = vadd.f32 %v692, %v1296
        %v1425 = vadd.f32 %v694, %v1297
        %v1426 = vadd.f32 %v698, %v1298
        %v1427 = vadd.f32 %v700, %v1299
        %v1428 = vadd.f32 %v702, %v1300
        %v1429 = vadd.f32 %v704, %v1301
        %v1430 = vadd.f32 %v708, %v1302
        %v1431 = vadd.f32 %v710, %v1303
        %v1432 = vadd.f32 %v712, %v1304
        %v1433 = vadd.f32 %v714, %v1305
        %v1434 = vadd.f32 %v718, %v1306
        %v1435 = vadd.f32 %v720, %v1307
        %v1436 = vadd.f32 %v722, %v1308
        %v1437 = vadd.f32 %v724, %v1309
        %v1438 = vadd.f32 %v728, %v1310
        %v1439 = vadd.f32 %v730, %v1311
        %v1440 = vadd.f32 %v732, %v1312
        %v1441 = vadd.f32 %v734, %v1313
        %v1442 = vadd.f32 %v738, %v1314
        %v1443 = vadd.f32 %v740, %v1315
        %v1444 = vadd.f32 %v742, %v1316
        %v1445 = vadd.f32 %v744, %v1317
        %v1446 = vadd.f32 %v748, %v1318
        %v1447 = vadd.f32 %v750, %v1319
        %v1448 = vadd.f32 %v752, %v1320
        %v1449 = vadd.f32 %v754, %v1321
        %v1450 = vadd.f32 %v758, %v1322
        %v1451 = vadd.f32 %v760, %v1323
        %v1452 = vadd.f32 %v762, %v1324
        %v1453 = vadd.f32 %v764, %v1325
        %v1454 = vadd.f32 %v768, %v1326
        %v1455 = vadd.f32 %v770, %v1327
        %v1456 = vadd.f32 %v772, %v1328
        %v1457 = vadd.f32 %v774, %v1329
        %v1458 = vadd.f32 %v778, %v1330
        %v1459 = vadd.f32 %v780, %v1331
        %v1460 = vadd.f32 %v782, %v1332
        %v1461 = vadd.f32 %v784, %v1333
        %v1462 = vadd.f32 %v788, %v1334
        %v1463 = vadd.f32 %v790, %v1335
        %v1464 = vadd.f32 %v792, %v1336
        %v1465 = vadd.f32 %v794, %v1337
        %v1466 = vadd.f32 %v798, %v1338
        %v1467 = vadd.f32 %v800, %v1339
        %v1468 = vadd.f32 %v802, %v1340
        %v1469 = vadd.f32 %v804, %v1341
        %v1470 = vadd.f32 %v808, %v1342
        %v1471 = vadd.f32 %v810, %v1343
        %v1472 = vadd.f32 %v812, %v1344
        %v1473 = vadd.f32 %v814, %v1345
        %v1474 = vadd.f32 %v818, %v1346
        %v1475 = vadd.f32 %v820, %v1347
        %v1476 = vadd.f32 %v822, %v1348
        %v1477 = vadd.f32 %v824, %v1349
        %v1478 = vadd.f32 %v828, %v1350
        %v1479 = vadd.f32 %v830, %v1351
        %v1480 = vadd.f32 %v832, %v1352
        %v1481 = vadd.f32 %v834, %v1353
        %v1482 = vadd.f32 %v838, %v1354
        %v1483 = vadd.f32 %v840, %v1355
        %v1484 = vadd.f32 %v842, %v1356
        %v1485 = vadd.f32 %v844, %v1357
        %v1486 = vmul.f32 %v1358, 0.7978846
        %v1487 = vmul.f32 %v1359, 0.7978846
        %v1488 = vmul.f32 %v1360, 0.7978846
        %v1489 = vmul.f32 %v1361, 0.7978846
        %v1490 = vmul.f32 %v1362, 0.7978846
        %v1491 = vmul.f32 %v1363, 0.7978846
        %v1492 = vmul.f32 %v1364, 0.7978846
        %v1493 = vmul.f32 %v1365, 0.7978846
        %v1494 = vmul.f32 %v1366, 0.7978846
        %v1495 = vmul.f32 %v1367, 0.7978846
        %v1496 = vmul.f32 %v1368, 0.7978846
        %v1497 = vmul.f32 %v1369, 0.7978846
        %v1498 = vmul.f32 %v1370, 0.7978846
        %v1499 = vmul.f32 %v1371, 0.7978846
        %v1500 = vmul.f32 %v1372, 0.7978846
        %v1501 = vmul.f32 %v1373, 0.7978846
        %v1502 = vmul.f32 %v1374, 0.7978846
        %v1503 = vmul.f32 %v1375, 0.7978846
        %v1504 = vmul.f32 %v1376, 0.7978846
        %v1505 = vmul.f32 %v1377, 0.7978846
        %v1506 = vmul.f32 %v1378, 0.7978846
        %v1507 = vmul.f32 %v1379, 0.7978846
        %v1508 = vmul.f32 %v1380, 0.7978846
        %v1509 = vmul.f32 %v1381, 0.7978846
        %v1510 = vmul.f32 %v1382, 0.7978846
        %v1511 = vmul.f32 %v1383, 0.7978846
        %v1512 = vmul.f32 %v1384, 0.7978846
        %v1513 = vmul.f32 %v1385, 0.7978846
        %v1514 = vmul.f32 %v1386, 0.7978846
        %v1515 = vmul.f32 %v1387, 0.7978846
        %v1516 = vmul.f32 %v1388, 0.7978846
        %v1517 = vmul.f32 %v1389, 0.7978846
        %v1518 = vmul.f32 %v1390, 0.7978846
        %v1519 = vmul.f32 %v1391, 0.7978846
        %v1520 = vmul.f32 %v1392, 0.7978846
        %v1521 = vmul.f32 %v1393, 0.7978846
        %v1522 = vmul.f32 %v1394, 0.7978846
        %v1523 = vmul.f32 %v1395, 0.7978846
        %v1524 = vmul.f32 %v1396, 0.7978846
        %v1525 = vmul.f32 %v1397, 0.7978846
        %v1526 = vmul.f32 %v1398, 0.7978846
        %v1527 = vmul.f32 %v1399, 0.7978846
        %v1528 = vmul.f32 %v1400, 0.7978846
        %v1529 = vmul.f32 %v1401, 0.7978846
        %v1530 = vmul.f32 %v1402, 0.7978846
        %v1531 = vmul.f32 %v1403, 0.7978846
        %v1532 = vmul.f32 %v1404, 0.7978846
        %v1533 = vmul.f32 %v1405, 0.7978846
        %v1534 = vmul.f32 %v1406, 0.7978846
        %v1535 = vmul.f32 %v1407, 0.7978846
        %v1536 = vmul.f32 %v1408, 0.7978846
        %v1537 = vmul.f32 %v1409, 0.7978846
        %v1538 = vmul.f32 %v1410, 0.7978846
        %v1539 = vmul.f32 %v1411, 0.7978846
        %v1540 = vmul.f32 %v1412, 0.7978846
        %v1541 = vmul.f32 %v1413, 0.7978846
        %v1542 = vmul.f32 %v1414, 0.7978846
        %v1543 = vmul.f32 %v1415, 0.7978846
        %v1544 = vmul.f32 %v1416, 0.7978846
        %v1545 = vmul.f32 %v1417, 0.7978846
        %v1546 = vmul.f32 %v1418, 0.7978846
        %v1547 = vmul.f32 %v1419, 0.7978846
        %v1548 = vmul.f32 %v1420, 0.7978846
        %v1549 = vmul.f32 %v1421, 0.7978846
        %v1550 = vmul.f32 %v1422, 0.7978846
        %v1551 = vmul.f32 %v1423, 0.7978846
        %v1552 = vmul.f32 %v1424, 0.7978846
        %v1553 = vmul.f32 %v1425, 0.7978846
        %v1554 = vmul.f32 %v1426, 0.7978846
        %v1555 = vmul.f32 %v1427, 0.7978846
        %v1556 = vmul.f32 %v1428, 0.7978846
        %v1557 = vmul.f32 %v1429, 0.7978846
        %v1558 = vmul.f32 %v1430, 0.7978846
        %v1559 = vmul.f32 %v1431, 0.7978846
        %v1560 = vmul.f32 %v1432, 0.7978846
        %v1561 = vmul.f32 %v1433, 0.7978846
        %v1562 = vmul.f32 %v1434, 0.7978846
        %v1563 = vmul.f32 %v1435, 0.7978846
        %v1564 = vmul.f32 %v1436, 0.7978846
        %v1565 = vmul.f32 %v1437, 0.7978846
        %v1566 = vmul.f32 %v1438, 0.7978846
        %v1567 = vmul.f32 %v1439, 0.7978846
        %v1568 = vmul.f32 %v1440, 0.7978846
        %v1569 = vmul.f32 %v1441, 0.7978846
        %v1570 = vmul.f32 %v1442, 0.7978846
        %v1571 = vmul.f32 %v1443, 0.7978846
        %v1572 = vmul.f32 %v1444, 0.7978846
        %v1573 = vmul.f32 %v1445, 0.7978846
        %v1574 = vmul.f32 %v1446, 0.7978846
        %v1575 = vmul.f32 %v1447, 0.7978846
        %v1576 = vmul.f32 %v1448, 0.7978846
        %v1577 = vmul.f32 %v1449, 0.7978846
        %v1578 = vmul.f32 %v1450, 0.7978846
        %v1579 = vmul.f32 %v1451, 0.7978846
        %v1580 = vmul.f32 %v1452, 0.7978846
        %v1581 = vmul.f32 %v1453, 0.7978846
        %v1582 = vmul.f32 %v1454, 0.7978846
        %v1583 = vmul.f32 %v1455, 0.7978846
        %v1584 = vmul.f32 %v1456, 0.7978846
        %v1585 = vmul.f32 %v1457, 0.7978846
        %v1586 = vmul.f32 %v1458, 0.7978846
        %v1587 = vmul.f32 %v1459, 0.7978846
        %v1588 = vmul.f32 %v1460, 0.7978846
        %v1589 = vmul.f32 %v1461, 0.7978846
        %v1590 = vmul.f32 %v1462, 0.7978846
        %v1591 = vmul.f32 %v1463, 0.7978846
        %v1592 = vmul.f32 %v1464, 0.7978846
        %v1593 = vmul.f32 %v1465, 0.7978846
        %v1594 = vmul.f32 %v1466, 0.7978846
        %v1595 = vmul.f32 %v1467, 0.7978846
        %v1596 = vmul.f32 %v1468, 0.7978846
        %v1597 = vmul.f32 %v1469, 0.7978846
        %v1598 = vmul.f32 %v1470, 0.7978846
        %v1599 = vmul.f32 %v1471, 0.7978846
        %v1600 = vmul.f32 %v1472, 0.7978846
        %v1601 = vmul.f32 %v1473, 0.7978846
        %v1602 = vmul.f32 %v1474, 0.7978846
        %v1603 = vmul.f32 %v1475, 0.7978846
        %v1604 = vmul.f32 %v1476, 0.7978846
        %v1605 = vmul.f32 %v1477, 0.7978846
        %v1606 = vmul.f32 %v1478, 0.7978846
        %v1607 = vmul.f32 %v1479, 0.7978846
        %v1608 = vmul.f32 %v1480, 0.7978846
        %v1609 = vmul.f32 %v1481, 0.7978846
        %v1610 = vmul.f32 %v1482, 0.7978846
        %v1611 = vmul.f32 %v1483, 0.7978846
        %v1612 = vmul.f32 %v1484, 0.7978846
        %v1613 = vmul.f32 %v1485, 0.7978846
        %v1614 = vtanh.pop %v1486
        %v1615 = vtanh.pop %v1487
        %v1616 = vtanh.pop %v1488
        %v1617 = vtanh.pop %v1489
        %v1618 = vtanh.pop %v1490
        %v1619 = vtanh.pop %v1491
        %v1620 = vtanh.pop %v1492
        %v1621 = vtanh.pop %v1493
        %v1622 = vtanh.pop %v1494
        %v1623 = vtanh.pop %v1495
        %v1624 = vtanh.pop %v1496
        %v1625 = vtanh.pop %v1497
        %v1626 = vtanh.pop %v1498
        %v1627 = vtanh.pop %v1499
        %v1628 = vtanh.pop %v1500
        %v1629 = vtanh.pop %v1501
        %v1630 = vtanh.pop %v1502
        %v1631 = vtanh.pop %v1503
        %v1632 = vtanh.pop %v1504
        %v1633 = vtanh.pop %v1505
        %v1634 = vtanh.pop %v1506
        %v1635 = vtanh.pop %v1507
        %v1636 = vtanh.pop %v1508
        %v1637 = vtanh.pop %v1509
        %v1638 = vtanh.pop %v1510
        %v1639 = vtanh.pop %v1511
        %v1640 = vtanh.pop %v1512
        %v1641 = vtanh.pop %v1513
        %v1642 = vtanh.pop %v1514
        %v1643 = vtanh.pop %v1515
        %v1644 = vtanh.pop %v1516
        %v1645 = vtanh.pop %v1517
        %v1646 = vtanh.pop %v1518
        %v1647 = vtanh.pop %v1519
        %v1648 = vtanh.pop %v1520
        %v1649 = vtanh.pop %v1521
        %v1650 = vtanh.pop %v1522
        %v1651 = vtanh.pop %v1523
        %v1652 = vtanh.pop %v1524
        %v1653 = vtanh.pop %v1525
        %v1654 = vtanh.pop %v1526
        %v1655 = vtanh.pop %v1527
        %v1656 = vtanh.pop %v1528
        %v1657 = vtanh.pop %v1529
        %v1658 = vtanh.pop %v1530
        %v1659 = vtanh.pop %v1531
        %v1660 = vtanh.pop %v1532
        %v1661 = vtanh.pop %v1533
        %v1662 = vtanh.pop %v1534
        %v1663 = vtanh.pop %v1535
        %v1664 = vtanh.pop %v1536
        %v1665 = vtanh.pop %v1537
        %v1666 = vtanh.pop %v1538
        %v1667 = vtanh.pop %v1539
        %v1668 = vtanh.pop %v1540
        %v1669 = vtanh.pop %v1541
        %v1670 = vtanh.pop %v1542
        %v1671 = vtanh.pop %v1543
        %v1672 = vtanh.pop %v1544
        %v1673 = vtanh.pop %v1545
        %v1674 = vtanh.pop %v1546
        %v1675 = vtanh.pop %v1547
        %v1676 = vtanh.pop %v1548
        %v1677 = vtanh.pop %v1549
        %v1678 = vtanh.pop %v1550
        %v1679 = vtanh.pop %v1551
        %v1680 = vtanh.pop %v1552
        %v1681 = vtanh.pop %v1553
        %v1682 = vtanh.pop %v1554
        %v1683 = vtanh.pop %v1555
        %v1684 = vtanh.pop %v1556
        %v1685 = vtanh.pop %v1557
        %v1686 = vtanh.pop %v1558
        %v1687 = vtanh.pop %v1559
        %v1688 = vtanh.pop %v1560
        %v1689 = vtanh.pop %v1561
        %v1690 = vtanh.pop %v1562
        %v1691 = vtanh.pop %v1563
        %v1692 = vtanh.pop %v1564
        %v1693 = vtanh.pop %v1565
        %v1694 = vtanh.pop %v1566
        %v1695 = vtanh.pop %v1567
        %v1696 = vtanh.pop %v1568
        %v1697 = vtanh.pop %v1569
        %v1698 = vtanh.pop %v1570
        %v1699 = vtanh.pop %v1571
        %v1700 = vtanh.pop %v1572
        %v1701 = vtanh.pop %v1573
        %v1702 = vtanh.pop %v1574
        %v1703 = vtanh.pop %v1575
        %v1704 = vtanh.pop %v1576
        %v1705 = vtanh.pop %v1577
        %v1706 = vtanh.pop %v1578
        %v1707 = vtanh.pop %v1579
        %v1708 = vtanh.pop %v1580
        %v1709 = vtanh.pop %v1581
        %v1710 = vtanh.pop %v1582
        %v1711 = vtanh.pop %v1583
        %v1712 = vtanh.pop %v1584
        %v1713 = vtanh.pop %v1585
        %v1714 = vtanh.pop %v1586
        %v1715 = vtanh.pop %v1587
        %v1716 = vtanh.pop %v1588
        %v1717 = vtanh.pop %v1589
        %v1718 = vtanh.pop %v1590
        %v1719 = vtanh.pop %v1591
        %v1720 = vtanh.pop %v1592
        %v1721 = vtanh.pop %v1593
        %v1722 = vtanh.pop %v1594
        %v1723 = vtanh.pop %v1595
        %v1724 = vtanh.pop %v1596
        %v1725 = vtanh.pop %v1597
        %v1726 = vtanh.pop %v1598
        %v1727 = vtanh.pop %v1599
        %v1728 = vtanh.pop %v1600
        %v1729 = vtanh.pop %v1601
        %v1730 = vtanh.pop %v1602
        %v1731 = vtanh.pop %v1603
        %v1732 = vtanh.pop %v1604
        %v1733 = vtanh.pop %v1605
        %v1734 = vtanh.pop %v1606
        %v1735 = vtanh.pop %v1607
        %v1736 = vtanh.pop %v1608
        %v1737 = vtanh.pop %v1609
        %v1738 = vtanh.pop %v1610
        %v1739 = vtanh.pop %v1611
        %v1740 = vtanh.pop %v1612
        %v1741 = vtanh.pop %v1613
        %v1742 = vadd.f32 %v1614, 1.0
        %v1743 = vadd.f32 %v1615, 1.0
        %v1744 = vadd.f32 %v1616, 1.0
        %v1745 = vadd.f32 %v1617, 1.0
        %v1746 = vadd.f32 %v1618, 1.0
        %v1747 = vadd.f32 %v1619, 1.0
        %v1748 = vadd.f32 %v1620, 1.0
        %v1749 = vadd.f32 %v1621, 1.0
        %v1750 = vadd.f32 %v1622, 1.0
        %v1751 = vadd.f32 %v1623, 1.0
        %v1752 = vadd.f32 %v1624, 1.0
        %v1753 = vadd.f32 %v1625, 1.0
        %v1754 = vadd.f32 %v1626, 1.0
        %v1755 = vadd.f32 %v1627, 1.0
        %v1756 = vadd.f32 %v1628, 1.0
        %v1757 = vadd.f32 %v1629, 1.0
        %v1758 = vadd.f32 %v1630, 1.0
        %v1759 = vadd.f32 %v1631, 1.0
        %v1760 = vadd.f32 %v1632, 1.0
        %v1761 = vadd.f32 %v1633, 1.0
        %v1762 = vadd.f32 %v1634, 1.0
        %v1763 = vadd.f32 %v1635, 1.0
        %v1764 = vadd.f32 %v1636, 1.0
        %v1765 = vadd.f32 %v1637, 1.0
        %v1766 = vadd.f32 %v1638, 1.0
        %v1767 = vadd.f32 %v1639, 1.0
        %v1768 = vadd.f32 %v1640, 1.0
        %v1769 = vadd.f32 %v1641, 1.0
        %v1770 = vadd.f32 %v1642, 1.0
        %v1771 = vadd.f32 %v1643, 1.0
        %v1772 = vadd.f32 %v1644, 1.0
        %v1773 = vadd.f32 %v1645, 1.0
        %v1774 = vadd.f32 %v1646, 1.0
        %v1775 = vadd.f32 %v1647, 1.0
        %v1776 = vadd.f32 %v1648, 1.0
        %v1777 = vadd.f32 %v1649, 1.0
        %v1778 = vadd.f32 %v1650, 1.0
        %v1779 = vadd.f32 %v1651, 1.0
        %v1780 = vadd.f32 %v1652, 1.0
        %v1781 = vadd.f32 %v1653, 1.0
        %v1782 = vadd.f32 %v1654, 1.0
        %v1783 = vadd.f32 %v1655, 1.0
        %v1784 = vadd.f32 %v1656, 1.0
        %v1785 = vadd.f32 %v1657, 1.0
        %v1786 = vadd.f32 %v1658, 1.0
        %v1787 = vadd.f32 %v1659, 1.0
        %v1788 = vadd.f32 %v1660, 1.0
        %v1789 = vadd.f32 %v1661, 1.0
        %v1790 = vadd.f32 %v1662, 1.0
        %v1791 = vadd.f32 %v1663, 1.0
        %v1792 = vadd.f32 %v1664, 1.0
        %v1793 = vadd.f32 %v1665, 1.0
        %v1794 = vadd.f32 %v1666, 1.0
        %v1795 = vadd.f32 %v1667, 1.0
        %v1796 = vadd.f32 %v1668, 1.0
        %v1797 = vadd.f32 %v1669, 1.0
        %v1798 = vadd.f32 %v1670, 1.0
        %v1799 = vadd.f32 %v1671, 1.0
        %v1800 = vadd.f32 %v1672, 1.0
        %v1801 = vadd.f32 %v1673, 1.0
        %v1802 = vadd.f32 %v1674, 1.0
        %v1803 = vadd.f32 %v1675, 1.0
        %v1804 = vadd.f32 %v1676, 1.0
        %v1805 = vadd.f32 %v1677, 1.0
        %v1806 = vadd.f32 %v1678, 1.0
        %v1807 = vadd.f32 %v1679, 1.0
        %v1808 = vadd.f32 %v1680, 1.0
        %v1809 = vadd.f32 %v1681, 1.0
        %v1810 = vadd.f32 %v1682, 1.0
        %v1811 = vadd.f32 %v1683, 1.0
        %v1812 = vadd.f32 %v1684, 1.0
        %v1813 = vadd.f32 %v1685, 1.0
        %v1814 = vadd.f32 %v1686, 1.0
        %v1815 = vadd.f32 %v1687, 1.0
        %v1816 = vadd.f32 %v1688, 1.0
        %v1817 = vadd.f32 %v1689, 1.0
        %v1818 = vadd.f32 %v1690, 1.0
        %v1819 = vadd.f32 %v1691, 1.0
        %v1820 = vadd.f32 %v1692, 1.0
        %v1821 = vadd.f32 %v1693, 1.0
        %v1822 = vadd.f32 %v1694, 1.0
        %v1823 = vadd.f32 %v1695, 1.0
        %v1824 = vadd.f32 %v1696, 1.0
        %v1825 = vadd.f32 %v1697, 1.0
        %v1826 = vadd.f32 %v1698, 1.0
        %v1827 = vadd.f32 %v1699, 1.0
        %v1828 = vadd.f32 %v1700, 1.0
        %v1829 = vadd.f32 %v1701, 1.0
        %v1830 = vadd.f32 %v1702, 1.0
        %v1831 = vadd.f32 %v1703, 1.0
        %v1832 = vadd.f32 %v1704, 1.0
        %v1833 = vadd.f32 %v1705, 1.0
        %v1834 = vadd.f32 %v1706, 1.0
        %v1835 = vadd.f32 %v1707, 1.0
        %v1836 = vadd.f32 %v1708, 1.0
        %v1837 = vadd.f32 %v1709, 1.0
        %v1838 = vadd.f32 %v1710, 1.0
        %v1839 = vadd.f32 %v1711, 1.0
        %v1840 = vadd.f32 %v1712, 1.0
        %v1841 = vadd.f32 %v1713, 1.0
        %v1842 = vadd.f32 %v1714, 1.0
        %v1843 = vadd.f32 %v1715, 1.0
        %v1844 = vadd.f32 %v1716, 1.0
        %v1845 = vadd.f32 %v1717, 1.0
        %v1846 = vadd.f32 %v1718, 1.0
        %v1847 = vadd.f32 %v1719, 1.0
        %v1848 = vadd.f32 %v1720, 1.0
        %v1849 = vadd.f32 %v1721, 1.0
        %v1850 = vadd.f32 %v1722, 1.0
        %v1851 = vadd.f32 %v1723, 1.0
        %v1852 = vadd.f32 %v1724, 1.0
        %v1853 = vadd.f32 %v1725, 1.0
        %v1854 = vadd.f32 %v1726, 1.0
        %v1855 = vadd.f32 %v1727, 1.0
        %v1856 = vadd.f32 %v1728, 1.0
        %v1857 = vadd.f32 %v1729, 1.0
        %v1858 = vadd.f32 %v1730, 1.0
        %v1859 = vadd.f32 %v1731, 1.0
        %v1860 = vadd.f32 %v1732, 1.0
        %v1861 = vadd.f32 %v1733, 1.0
        %v1862 = vadd.f32 %v1734, 1.0
        %v1863 = vadd.f32 %v1735, 1.0
        %v1864 = vadd.f32 %v1736, 1.0
        %v1865 = vadd.f32 %v1737, 1.0
        %v1866 = vadd.f32 %v1738, 1.0
        %v1867 = vadd.f32 %v1739, 1.0
        %v1868 = vadd.f32 %v1740, 1.0
        %v1869 = vadd.f32 %v1741, 1.0
        %v1870 = vmul.f32 %v846, %v1742
        %v1871 = vmul.f32 %v847, %v1743
        %v1872 = vmul.f32 %v848, %v1744
        %v1873 = vmul.f32 %v849, %v1745
        %v1874 = vmul.f32 %v850, %v1746
        %v1875 = vmul.f32 %v851, %v1747
        %v1876 = vmul.f32 %v852, %v1748
        %v1877 = vmul.f32 %v853, %v1749
        %v1878 = vmul.f32 %v854, %v1750
        %v1879 = vmul.f32 %v855, %v1751
        %v1880 = vmul.f32 %v856, %v1752
        %v1881 = vmul.f32 %v857, %v1753
        %v1882 = vmul.f32 %v858, %v1754
        %v1883 = vmul.f32 %v859, %v1755
        %v1884 = vmul.f32 %v860, %v1756
        %v1885 = vmul.f32 %v861, %v1757
        %v1886 = vmul.f32 %v862, %v1758
        %v1887 = vmul.f32 %v863, %v1759
        %v1888 = vmul.f32 %v864, %v1760
        %v1889 = vmul.f32 %v865, %v1761
        %v1890 = vmul.f32 %v866, %v1762
        %v1891 = vmul.f32 %v867, %v1763
        %v1892 = vmul.f32 %v868, %v1764
        %v1893 = vmul.f32 %v869, %v1765
        %v1894 = vmul.f32 %v870, %v1766
        %v1895 = vmul.f32 %v871, %v1767
        %v1896 = vmul.f32 %v872, %v1768
        %v1897 = vmul.f32 %v873, %v1769
        %v1898 = vmul.f32 %v874, %v1770
        %v1899 = vmul.f32 %v875, %v1771
        %v1900 = vmul.f32 %v876, %v1772
        %v1901 = vmul.f32 %v877, %v1773
        %v1902 = vmul.f32 %v878, %v1774
        %v1903 = vmul.f32 %v879, %v1775
        %v1904 = vmul.f32 %v880, %v1776
        %v1905 = vmul.f32 %v881, %v1777
        %v1906 = vmul.f32 %v882, %v1778
        %v1907 = vmul.f32 %v883, %v1779
        %v1908 = vmul.f32 %v884, %v1780
        %v1909 = vmul.f32 %v885, %v1781
        %v1910 = vmul.f32 %v886, %v1782
        %v1911 = vmul.f32 %v887, %v1783
        %v1912 = vmul.f32 %v888, %v1784
        %v1913 = vmul.f32 %v889, %v1785
        %v1914 = vmul.f32 %v890, %v1786
        %v1915 = vmul.f32 %v891, %v1787
        %v1916 = vmul.f32 %v892, %v1788
        %v1917 = vmul.f32 %v893, %v1789
        %v1918 = vmul.f32 %v894, %v1790
        %v1919 = vmul.f32 %v895, %v1791
        %v1920 = vmul.f32 %v896, %v1792
        %v1921 = vmul.f32 %v897, %v1793
        %v1922 = vmul.f32 %v898, %v1794
        %v1923 = vmul.f32 %v899, %v1795
        %v1924 = vmul.f32 %v900, %v1796
        %v1925 = vmul.f32 %v901, %v1797
        %v1926 = vmul.f32 %v902, %v1798
        %v1927 = vmul.f32 %v903, %v1799
        %v1928 = vmul.f32 %v904, %v1800
        %v1929 = vmul.f32 %v905, %v1801
        %v1930 = vmul.f32 %v906, %v1802
        %v1931 = vmul.f32 %v907, %v1803
        %v1932 = vmul.f32 %v908, %v1804
        %v1933 = vmul.f32 %v909, %v1805
        %v1934 = vmul.f32 %v910, %v1806
        %v1935 = vmul.f32 %v911, %v1807
        %v1936 = vmul.f32 %v912, %v1808
        %v1937 = vmul.f32 %v913, %v1809
        %v1938 = vmul.f32 %v914, %v1810
        %v1939 = vmul.f32 %v915, %v1811
        %v1940 = vmul.f32 %v916, %v1812
        %v1941 = vmul.f32 %v917, %v1813
        %v1942 = vmul.f32 %v918, %v1814
        %v1943 = vmul.f32 %v919, %v1815
        %v1944 = vmul.f32 %v920, %v1816
        %v1945 = vmul.f32 %v921, %v1817
        %v1946 = vmul.f32 %v922, %v1818
        %v1947 = vmul.f32 %v923, %v1819
        %v1948 = vmul.f32 %v924, %v1820
        %v1949 = vmul.f32 %v925, %v1821
        %v1950 = vmul.f32 %v926, %v1822
        %v1951 = vmul.f32 %v927, %v1823
        %v1952 = vmul.f32 %v928, %v1824
        %v1953 = vmul.f32 %v929, %v1825
        %v1954 = vmul.f32 %v930, %v1826
        %v1955 = vmul.f32 %v931, %v1827
        %v1956 = vmul.f32 %v932, %v1828
        %v1957 = vmul.f32 %v933, %v1829
        %v1958 = vmul.f32 %v934, %v1830
        %v1959 = vmul.f32 %v935, %v1831
        %v1960 = vmul.f32 %v936, %v1832
        %v1961 = vmul.f32 %v937, %v1833
        %v1962 = vmul.f32 %v938, %v1834
        %v1963 = vmul.f32 %v939, %v1835
        %v1964 = vmul.f32 %v940, %v1836
        %v1965 = vmul.f32 %v941, %v1837
        %v1966 = vmul.f32 %v942, %v1838
        %v1967 = vmul.f32 %v943, %v1839
        %v1968 = vmul.f32 %v944, %v1840
        %v1969 = vmul.f32 %v945, %v1841
        %v1970 = vmul.f32 %v946, %v1842
        %v1971 = vmul.f32 %v947, %v1843
        %v1972 = vmul.f32 %v948, %v1844
        %v1973 = vmul.f32 %v949, %v1845
        %v1974 = vmul.f32 %v950, %v1846
        %v1975 = vmul.f32 %v951, %v1847
        %v1976 = vmul.f32 %v952, %v1848
        %v1977 = vmul.f32 %v953, %v1849
        %v1978 = vmul.f32 %v954, %v1850
        %v1979 = vmul.f32 %v955, %v1851
        %v1980 = vmul.f32 %v956, %v1852
        %v1981 = vmul.f32 %v957, %v1853
        %v1982 = vmul.f32 %v958, %v1854
        %v1983 = vmul.f32 %v959, %v1855
        %v1984 = vmul.f32 %v960, %v1856
        %v1985 = vmul.f32 %v961, %v1857
        %v1986 = vmul.f32 %v962, %v1858
        %v1987 = vmul.f32 %v963, %v1859
        %v1988 = vmul.f32 %v964, %v1860
        %v1989 = vmul.f32 %v965, %v1861
        %v1990 = vmul.f32 %v966, %v1862
        %v1991 = vmul.f32 %v967, %v1863
        %v1992 = vmul.f32 %v968, %v1864
        %v1993 = vmul.f32 %v969, %v1865
        %v1994 = vmul.f32 %v970, %v1866
        %v1995 = vmul.f32 %v971, %v1867
        %v1996 = vmul.f32 %v972, %v1868
        %v1997 = vmul.f32 %v973, %v1869
        %v1998 = vpack.c.bf16 %v1872, %v1870
        %v1999 = vpack.c.bf16 %v1873, %v1871
        %v2000 = vpack.c.bf16 %v1876, %v1874
        %v2001 = vpack.c.bf16 %v1877, %v1875
        %v2002 = vpack.c.bf16 %v1880, %v1878
        %v2003 = vpack.c.bf16 %v1881, %v1879
        %v2004 = vpack.c.bf16 %v1884, %v1882
        %v2005 = vpack.c.bf16 %v1885, %v1883
        %v2006 = vpack.c.bf16 %v1888, %v1886
        %v2007 = vpack.c.bf16 %v1889, %v1887
        %v2008 = vpack.c.bf16 %v1892, %v1890
        %v2009 = vpack.c.bf16 %v1893, %v1891
        %v2010 = vpack.c.bf16 %v1896, %v1894
        %v2011 = vpack.c.bf16 %v1897, %v1895
        %v2012 = vpack.c.bf16 %v1900, %v1898
        %v2013 = vpack.c.bf16 %v1901, %v1899
        %v2014 = vpack.c.bf16 %v1904, %v1902
        %v2015 = vpack.c.bf16 %v1905, %v1903
        %v2016 = vpack.c.bf16 %v1908, %v1906
        %v2017 = vpack.c.bf16 %v1909, %v1907
        %v2018 = vpack.c.bf16 %v1912, %v1910
        %v2019 = vpack.c.bf16 %v1913, %v1911
        %v2020 = vpack.c.bf16 %v1916, %v1914
        %v2021 = vpack.c.bf16 %v1917, %v1915
        %v2022 = vpack.c.bf16 %v1920, %v1918
        %v2023 = vpack.c.bf16 %v1921, %v1919
        %v2024 = vpack.c.bf16 %v1924, %v1922
        %v2025 = vpack.c.bf16 %v1925, %v1923
        %v2026 = vpack.c.bf16 %v1928, %v1926
        %v2027 = vpack.c.bf16 %v1929, %v1927
        %v2028 = vpack.c.bf16 %v1932, %v1930
        %v2029 = vpack.c.bf16 %v1933, %v1931
        %v2030 = vpack.c.bf16 %v1936, %v1934
        %v2031 = vpack.c.bf16 %v1937, %v1935
        %v2032 = vpack.c.bf16 %v1940, %v1938
        %v2033 = vpack.c.bf16 %v1941, %v1939
        %v2034 = vpack.c.bf16 %v1944, %v1942
        %v2035 = vpack.c.bf16 %v1945, %v1943
        %v2036 = vpack.c.bf16 %v1948, %v1946
        %v2037 = vpack.c.bf16 %v1949, %v1947
        %v2038 = vpack.c.bf16 %v1952, %v1950
        %v2039 = vpack.c.bf16 %v1953, %v1951
        %v2040 = vpack.c.bf16 %v1956, %v1954
        %v2041 = vpack.c.bf16 %v1957, %v1955
        %v2042 = vpack.c.bf16 %v1960, %v1958
        %v2043 = vpack.c.bf16 %v1961, %v1959
        %v2044 = vpack.c.bf16 %v1964, %v1962
        %v2045 = vpack.c.bf16 %v1965, %v1963
        %v2046 = vpack.c.bf16 %v1968, %v1966
        %v2047 = vpack.c.bf16 %v1969, %v1967
        %v2048 = vpack.c.bf16 %v1972, %v1970
        %v2049 = vpack.c.bf16 %v1973, %v1971
        %v2050 = vpack.c.bf16 %v1976, %v1974
        %v2051 = vpack.c.bf16 %v1977, %v1975
        %v2052 = vpack.c.bf16 %v1980, %v1978
        %v2053 = vpack.c.bf16 %v1981, %v1979
        %v2054 = vpack.c.bf16 %v1984, %v1982
        %v2055 = vpack.c.bf16 %v1985, %v1983
        %v2056 = vpack.c.bf16 %v1988, %v1986
        %v2057 = vpack.c.bf16 %v1989, %v1987
        %v2058 = vpack.c.bf16 %v1992, %v1990
        %v2059 = vpack.c.bf16 %v1993, %v1991
        %v2060 = vpack.c.bf16 %v1996, %v1994
        %v2061 = vpack.c.bf16 %v1997, %v1995
        %v2062 = vld [vmem:[#allocation7] sm:$0xf]
        %v2063 = vld [vmem:[#allocation7 + $0x4] sm:$0xf]
        %v2064 = vld [vmem:[#allocation7 + $0x8] sm:$0xf]
        %v2065 = vld [vmem:[#allocation7 + $0xc] sm:$0xf]
        %v2066 = vld [vmem:[#allocation7 + $0x10] sm:$0xf]
        %v2067 = vld [vmem:[#allocation7 + $0x14] sm:$0xf]
        %v2068 = vld [vmem:[#allocation7 + $0x18] sm:$0xf]
        %v2069 = vld [vmem:[#allocation7 + $0x1c] sm:$0xf]
        %v2070 = vld [vmem:[#allocation7 + $0x20] sm:$0xf]
        %v2071 = vld [vmem:[#allocation7 + $0x24] sm:$0xf]
        %v2072 = vld [vmem:[#allocation7 + $0x28] sm:$0xf]
        %v2073 = vld [vmem:[#allocation7 + $0x2c] sm:$0xf]
        %v2074 = vld [vmem:[#allocation7 + $0x30] sm:$0xf]
        %v2075 = vld [vmem:[#allocation7 + $0x34] sm:$0xf]
        %v2076 = vld [vmem:[#allocation7 + $0x38] sm:$0xf]
        %v2077 = vld [vmem:[#allocation7 + $0x3c] sm:$0xf]
        %v2078 = vld [vmem:[#allocation7 + $0x40] sm:$0xf]
        %v2079 = vld [vmem:[#allocation7 + $0x44] sm:$0xf]
        %v2080 = vld [vmem:[#allocation7 + $0x48] sm:$0xf]
        %v2081 = vld [vmem:[#allocation7 + $0x4c] sm:$0xf]
        %v2082 = vld [vmem:[#allocation7 + $0x50] sm:$0xf]
        %v2083 = vld [vmem:[#allocation7 + $0x54] sm:$0xf]
        %v2084 = vld [vmem:[#allocation7 + $0x58] sm:$0xf]
        %v2085 = vld [vmem:[#allocation7 + $0x5c] sm:$0xf]
        %v2086 = vld [vmem:[#allocation7 + $0x60] sm:$0xf]
        %v2087 = vld [vmem:[#allocation7 + $0x64] sm:$0xf]
        %v2088 = vld [vmem:[#allocation7 + $0x68] sm:$0xf]
        %v2089 = vld [vmem:[#allocation7 + $0x6c] sm:$0xf]
        %v2090 = vld [vmem:[#allocation7 + $0x70] sm:$0xf]
        %v2091 = vld [vmem:[#allocation7 + $0x74] sm:$0xf]
        %v2092 = vld [vmem:[#allocation7 + $0x78] sm:$0xf]
        %v2093 = vld [vmem:[#allocation7 + $0x7c] sm:$0xf]
        %v2094 = vld [vmem:[%s4] sm:$0x1]
        %v2096 = vlaneseq
        %v2097 = vshrl.u32 %v2096, 7
        %v2098 = vsub.s32 0, %v2097
        %v2099 = vrot.slane %v2094, %v2098
        %v2133 = vunpack.c.l.b16 %v2062
        %v2134 = vunpack.c.l.b16 %v2063
        %v2135 = vunpack.c.l.b16 %v2064
        %v2136 = vunpack.c.l.b16 %v2065
        %v2137 = vunpack.c.l.b16 %v2066
        %v2138 = vunpack.c.l.b16 %v2067
        %v2139 = vunpack.c.l.b16 %v2068
        %v2140 = vunpack.c.l.b16 %v2069
        %v2141 = vunpack.c.l.b16 %v2070
        %v2142 = vunpack.c.l.b16 %v2071
        %v2143 = vunpack.c.l.b16 %v2072
        %v2144 = vunpack.c.l.b16 %v2073
        %v2145 = vunpack.c.l.b16 %v2074
        %v2146 = vunpack.c.l.b16 %v2075
        %v2147 = vunpack.c.l.b16 %v2076
        %v2148 = vunpack.c.l.b16 %v2077
        %v2149 = vunpack.c.l.b16 %v2078
        %v2150 = vunpack.c.l.b16 %v2079
        %v2151 = vunpack.c.l.b16 %v2080
        %v2152 = vunpack.c.l.b16 %v2081
        %v2153 = vunpack.c.l.b16 %v2082
        %v2154 = vunpack.c.l.b16 %v2083
        %v2155 = vunpack.c.l.b16 %v2084
        %v2156 = vunpack.c.l.b16 %v2085
        %v2157 = vunpack.c.l.b16 %v2086
        %v2158 = vunpack.c.l.b16 %v2087
        %v2159 = vunpack.c.l.b16 %v2088
        %v2160 = vunpack.c.l.b16 %v2089
        %v2161 = vunpack.c.l.b16 %v2090
        %v2162 = vunpack.c.l.b16 %v2091
        %v2163 = vunpack.c.l.b16 %v2092
        %v2164 = vunpack.c.l.b16 %v2093
        %v2165 = vpack.c.b16 %v2134, %v2133
        %v2166 = vpack.c.b16 %v2136, %v2135
        %v2167 = vpack.c.b16 %v2138, %v2137
        %v2168 = vpack.c.b16 %v2140, %v2139
        %v2169 = vpack.c.b16 %v2142, %v2141
        %v2170 = vpack.c.b16 %v2144, %v2143
        %v2171 = vpack.c.b16 %v2146, %v2145
        %v2172 = vpack.c.b16 %v2148, %v2147
        %v2173 = vpack.c.b16 %v2150, %v2149
        %v2174 = vpack.c.b16 %v2152, %v2151
        %v2175 = vpack.c.b16 %v2154, %v2153
        %v2176 = vpack.c.b16 %v2156, %v2155
        %v2177 = vpack.c.b16 %v2158, %v2157
        %v2178 = vpack.c.b16 %v2160, %v2159
        %v2179 = vpack.c.b16 %v2162, %v2161
        %v2180 = vpack.c.b16 %v2164, %v2163
        %2197 = vmatprep.subr.bf16.mxu0 0
        %2198 = vmatpush1.bf16.msra.mxu0 %v2165
        %2199 = vmatprep.subr.bf16.mxu0 0
        %2200 = vmatpush1.bf16.msra.mxu0 %v2166
        %2201 = vmatprep.subr.bf16.mxu0 0
        %2202 = vmatpush1.bf16.msra.mxu0 %v2167
        %2203 = vmatprep.subr.bf16.mxu0 0
        %2204 = vmatpush1.bf16.msra.mxu0 %v2168
        %2205 = vmatprep.subr.bf16.mxu0 0
        %2206 = vmatpush1.bf16.msra.mxu0 %v2169
        %2207 = vmatprep.subr.bf16.mxu0 0
        %2208 = vmatpush1.bf16.msra.mxu0 %v2170
        %2209 = vmatprep.subr.bf16.mxu0 0
        %2210 = vmatpush1.bf16.msra.mxu0 %v2171
        %2211 = vmatprep.subr.bf16.mxu0 0
        %2212 = vmatpush1.bf16.msra.mxu0 %v2172
        %2213 = vmatprep.subr.bf16.mxu0 0
        %2214 = vmatpush1.bf16.msra.mxu0 %v2173
        %2215 = vmatprep.subr.bf16.mxu0 0
        %2216 = vmatpush1.bf16.msra.mxu0 %v2174
        %2217 = vmatprep.subr.bf16.mxu0 0
        %2218 = vmatpush1.bf16.msra.mxu0 %v2175
        %2219 = vmatprep.subr.bf16.mxu0 0
        %2220 = vmatpush1.bf16.msra.mxu0 %v2176
        %2221 = vmatprep.subr.bf16.mxu0 0
        %2222 = vmatpush1.bf16.msra.mxu0 %v2177
        %2223 = vmatprep.subr.bf16.mxu0 0
        %2224 = vmatpush1.bf16.msra.mxu0 %v2178
        %2225 = vmatprep.subr.bf16.mxu0 0
        %2226 = vmatpush1.bf16.msra.mxu0 %v2179
        %2227 = vmatprep.subr.bf16.mxu0 0
        %2228 = vmatpush1.bf16.msra.mxu0 %v2180
        %2229 = vmatprep.mubr.bf16.mxu0 %v1999
        %2230 = vmatmul.mubr.bf16.gmra.mrb[0].mxu0 %v1998
        %v2231 = vpop.f32.mrb[0].mxu0
        %v2232 = vadd.f32 %v2099, %v2231
        %v2233 = vpop.f32.mrb[0].mxu0
        %v2234 = vpop.f32.mrb[0].mxu0
        %v2235 = vadd.f32 %v2099, %v2234
        %v2236 = vpop.f32.mrb[0].mxu0
        %2237 = vmatprep.mubr.bf16.mxu0 %v2001
        %2238 = vmatmul.mubr.bf16.gmra.mrb[0].mxu0 %v2000
        %v2239 = vpop.f32.mrb[0].mxu0
        %v2240 = vadd.f32 %v2099, %v2239
        %v2241 = vpop.f32.mrb[0].mxu0
        %v2242 = vpop.f32.mrb[0].mxu0
        %v2243 = vadd.f32 %v2099, %v2242
        %v2244 = vpop.f32.mrb[0].mxu0
        %2245 = vmatprep.mubr.bf16.mxu0 %v2003
        %2246 = vmatmul.mubr.bf16.gmra.mrb[0].mxu0 %v2002
        %v2247 = vpop.f32.mrb[0].mxu0
        %v2248 = vadd.f32 %v2099, %v2247
        %v2249 = vpop.f32.mrb[0].mxu0
        %v2250 = vpop.f32.mrb[0].mxu0
        %v2251 = vadd.f32 %v2099, %v2250
        %v2252 = vpop.f32.mrb[0].mxu0
        %2253 = vmatprep.mubr.bf16.mxu0 %v2005
        %2254 = vmatmul.mubr.bf16.gmra.mrb[0].mxu0 %v2004
        %v2255 = vpop.f32.mrb[0].mxu0
        %v2256 = vadd.f32 %v2099, %v2255
        %v2257 = vpop.f32.mrb[0].mxu0
        %v2258 = vpop.f32.mrb[0].mxu0
        %v2259 = vadd.f32 %v2099, %v2258
        %v2260 = vpop.f32.mrb[0].mxu0
        %2261 = vmatprep.mubr.bf16.mxu0 %v2007
        %2262 = vmatmul.mubr.bf16.gmra.mrb[0].mxu0 %v2006
        %v2263 = vpop.f32.mrb[0].mxu0
        %v2264 = vadd.f32 %v2099, %v2263
        %v2265 = vpop.f32.mrb[0].mxu0
        %v2266 = vpop.f32.mrb[0].mxu0
        %v2267 = vadd.f32 %v2099, %v2266
        %v2268 = vpop.f32.mrb[0].mxu0
        %2269 = vmatprep.mubr.bf16.mxu0 %v2009
        %2270 = vmatmul.mubr.bf16.gmra.mrb[0].mxu0 %v2008
        %v2271 = vpop.f32.mrb[0].mxu0
        %v2272 = vadd.f32 %v2099, %v2271
        %v2273 = vpop.f32.mrb[0].mxu0
        %v2274 = vpop.f32.mrb[0].mxu0
        %v2275 = vadd.f32 %v2099, %v2274
        %v2276 = vpop.f32.mrb[0].mxu0
        %2277 = vmatprep.mubr.bf16.mxu0 %v2011
        %2278 = vmatmul.mubr.bf16.gmra.mrb[0].mxu0 %v2010
        %v2279 = vpop.f32.mrb[0].mxu0
        %v2280 = vadd.f32 %v2099, %v2279
        %v2281 = vpop.f32.mrb[0].mxu0
        %v2282 = vpop.f32.mrb[0].mxu0
        %v2283 = vadd.f32 %v2099, %v2282
        %v2284 = vpop.f32.mrb[0].mxu0
        %2285 = vmatprep.mubr.bf16.mxu0 %v2013
        %2286 = vmatmul.mubr.bf16.gmra.mrb[0].mxu0 %v2012
        %v2287 = vpop.f32.mrb[0].mxu0
        %v2288 = vadd.f32 %v2099, %v2287
        %v2289 = vpop.f32.mrb[0].mxu0
        %v2290 = vpop.f32.mrb[0].mxu0
        %v2291 = vadd.f32 %v2099, %v2290
        %v2292 = vpop.f32.mrb[0].mxu0
        %2293 = vmatprep.mubr.bf16.mxu0 %v2015
        %2294 = vmatmul.mubr.bf16.gmra.mrb[0].mxu0 %v2014
        %v2295 = vpop.f32.mrb[0].mxu0
        %v2296 = vadd.f32 %v2099, %v2295
        %v2297 = vpop.f32.mrb[0].mxu0
        %v2298 = vpop.f32.mrb[0].mxu0
        %v2299 = vadd.f32 %v2099, %v2298
        %v2300 = vpop.f32.mrb[0].mxu0
        %2301 = vmatprep.mubr.bf16.mxu0 %v2017
        %2302 = vmatmul.mubr.bf16.gmra.mrb[0].mxu0 %v2016
        %v2303 = vpop.f32.mrb[0].mxu0
        %v2304 = vadd.f32 %v2099, %v2303
        %v2305 = vpop.f32.mrb[0].mxu0
        %v2306 = vpop.f32.mrb[0].mxu0
        %v2307 = vadd.f32 %v2099, %v2306
        %v2308 = vpop.f32.mrb[0].mxu0
        %2309 = vmatprep.mubr.bf16.mxu0 %v2019
        %2310 = vmatmul.mubr.bf16.gmra.mrb[0].mxu0 %v2018
        %v2311 = vpop.f32.mrb[0].mxu0
        %v2312 = vadd.f32 %v2099, %v2311
        %v2313 = vpop.f32.mrb[0].mxu0
        %v2314 = vpop.f32.mrb[0].mxu0
        %v2315 = vadd.f32 %v2099, %v2314
        %v2316 = vpop.f32.mrb[0].mxu0
        %2317 = vmatprep.mubr.bf16.mxu0 %v2021
        %2318 = vmatmul.mubr.bf16.gmra.mrb[0].mxu0 %v2020
        %v2319 = vpop.f32.mrb[0].mxu0
        %v2320 = vadd.f32 %v2099, %v2319
        %v2321 = vpop.f32.mrb[0].mxu0
        %v2322 = vpop.f32.mrb[0].mxu0
        %v2323 = vadd.f32 %v2099, %v2322
        %v2324 = vpop.f32.mrb[0].mxu0
        %2325 = vmatprep.mubr.bf16.mxu0 %v2023
        %2326 = vmatmul.mubr.bf16.gmra.mrb[0].mxu0 %v2022
        %v2327 = vpop.f32.mrb[0].mxu0
        %v2328 = vadd.f32 %v2099, %v2327
        %v2329 = vpop.f32.mrb[0].mxu0
        %v2330 = vpop.f32.mrb[0].mxu0
        %v2331 = vadd.f32 %v2099, %v2330
        %v2332 = vpop.f32.mrb[0].mxu0
        %2333 = vmatprep.mubr.bf16.mxu0 %v2025
        %2334 = vmatmul.mubr.bf16.gmra.mrb[0].mxu0 %v2024
        %v2335 = vpop.f32.mrb[0].mxu0
        %v2336 = vadd.f32 %v2099, %v2335
        %v2337 = vpop.f32.mrb[0].mxu0
        %v2338 = vpop.f32.mrb[0].mxu0
        %v2339 = vadd.f32 %v2099, %v2338
        %v2340 = vpop.f32.mrb[0].mxu0
        %2341 = vmatprep.mubr.bf16.mxu0 %v2027
        %2342 = vmatmul.mubr.bf16.gmra.mrb[0].mxu0 %v2026
        %v2343 = vpop.f32.mrb[0].mxu0
        %v2344 = vadd.f32 %v2099, %v2343
        %v2345 = vpop.f32.mrb[0].mxu0
        %v2346 = vpop.f32.mrb[0].mxu0
        %v2347 = vadd.f32 %v2099, %v2346
        %v2348 = vpop.f32.mrb[0].mxu0
        %2349 = vmatprep.mubr.bf16.mxu0 %v2029
        %2350 = vmatmul.mubr.bf16.gmra.mrb[0].mxu0 %v2028
        %v2351 = vpop.f32.mrb[0].mxu0
        %v2352 = vadd.f32 %v2099, %v2351
        %v2353 = vpop.f32.mrb[0].mxu0
        %v2354 = vpop.f32.mrb[0].mxu0
        %v2355 = vadd.f32 %v2099, %v2354
        %v2356 = vpop.f32.mrb[0].mxu0
        %2357 = vmatprep.mubr.bf16.mxu0 %v2031
        %2358 = vmatmul.mubr.bf16.gmra.mrb[0].mxu0 %v2030
        %v2359 = vpop.f32.mrb[0].mxu0
        %v2360 = vadd.f32 %v2099, %v2359
        %v2361 = vpop.f32.mrb[0].mxu0
        %v2362 = vpop.f32.mrb[0].mxu0
        %v2363 = vadd.f32 %v2099, %v2362
        %v2364 = vpop.f32.mrb[0].mxu0
        %2365 = vmatprep.mubr.bf16.mxu0 %v2033
        %2366 = vmatmul.mubr.bf16.gmra.mrb[0].mxu0 %v2032
        %v2367 = vpop.f32.mrb[0].mxu0
        %v2368 = vadd.f32 %v2099, %v2367
        %v2369 = vpop.f32.mrb[0].mxu0
        %v2370 = vpop.f32.mrb[0].mxu0
        %v2371 = vadd.f32 %v2099, %v2370
        %v2372 = vpop.f32.mrb[0].mxu0
        %2373 = vmatprep.mubr.bf16.mxu0 %v2035
        %2374 = vmatmul.mubr.bf16.gmra.mrb[0].mxu0 %v2034
        %v2375 = vpop.f32.mrb[0].mxu0
        %v2376 = vadd.f32 %v2099, %v2375
        %v2377 = vpop.f32.mrb[0].mxu0
        %v2378 = vpop.f32.mrb[0].mxu0
        %v2379 = vadd.f32 %v2099, %v2378
        %v2380 = vpop.f32.mrb[0].mxu0
        %2381 = vmatprep.mubr.bf16.mxu0 %v2037
        %2382 = vmatmul.mubr.bf16.gmra.mrb[0].mxu0 %v2036
        %v2383 = vpop.f32.mrb[0].mxu0
        %v2384 = vadd.f32 %v2099, %v2383
        %v2385 = vpop.f32.mrb[0].mxu0
        %v2386 = vpop.f32.mrb[0].mxu0
        %v2387 = vadd.f32 %v2099, %v2386
        %v2388 = vpop.f32.mrb[0].mxu0
        %2389 = vmatprep.mubr.bf16.mxu0 %v2039
        %2390 = vmatmul.mubr.bf16.gmra.mrb[0].mxu0 %v2038
        %v2391 = vpop.f32.mrb[0].mxu0
        %v2392 = vadd.f32 %v2099, %v2391
        %v2393 = vpop.f32.mrb[0].mxu0
        %v2394 = vpop.f32.mrb[0].mxu0
        %v2395 = vadd.f32 %v2099, %v2394
        %v2396 = vpop.f32.mrb[0].mxu0
        %2397 = vmatprep.mubr.bf16.mxu0 %v2041
        %2398 = vmatmul.mubr.bf16.gmra.mrb[0].mxu0 %v2040
        %v2399 = vpop.f32.mrb[0].mxu0
        %v2400 = vadd.f32 %v2099, %v2399
        %v2401 = vpop.f32.mrb[0].mxu0
        %v2402 = vpop.f32.mrb[0].mxu0
        %v2403 = vadd.f32 %v2099, %v2402
        %v2404 = vpop.f32.mrb[0].mxu0
        %2405 = vmatprep.mubr.bf16.mxu0 %v2043
        %2406 = vmatmul.mubr.bf16.gmra.mrb[0].mxu0 %v2042
        %v2407 = vpop.f32.mrb[0].mxu0
        %v2408 = vadd.f32 %v2099, %v2407
        %v2409 = vpop.f32.mrb[0].mxu0
        %v2410 = vpop.f32.mrb[0].mxu0
        %v2411 = vadd.f32 %v2099, %v2410
        %v2412 = vpop.f32.mrb[0].mxu0
        %2413 = vmatprep.mubr.bf16.mxu0 %v2045
        %2414 = vmatmul.mubr.bf16.gmra.mrb[0].mxu0 %v2044
        %v2415 = vpop.f32.mrb[0].mxu0
        %v2416 = vadd.f32 %v2099, %v2415
        %v2417 = vpop.f32.mrb[0].mxu0
        %v2418 = vpop.f32.mrb[0].mxu0
        %v2419 = vadd.f32 %v2099, %v2418
        %v2420 = vpop.f32.mrb[0].mxu0
        %2421 = vmatprep.mubr.bf16.mxu0 %v2047
        %2422 = vmatmul.mubr.bf16.gmra.mrb[0].mxu0 %v2046
        %v2423 = vpop.f32.mrb[0].mxu0
        %v2424 = vadd.f32 %v2099, %v2423
        %v2425 = vpop.f32.mrb[0].mxu0
        %v2426 = vpop.f32.mrb[0].mxu0
        %v2427 = vadd.f32 %v2099, %v2426
        %v2428 = vpop.f32.mrb[0].mxu0
        %2429 = vmatprep.mubr.bf16.mxu0 %v2049
        %2430 = vmatmul.mubr.bf16.gmra.mrb[0].mxu0 %v2048
        %v2431 = vpop.f32.mrb[0].mxu0
        %v2432 = vadd.f32 %v2099, %v2431
        %v2433 = vpop.f32.mrb[0].mxu0
        %v2434 = vpop.f32.mrb[0].mxu0
        %v2435 = vadd.f32 %v2099, %v2434
        %v2436 = vpop.f32.mrb[0].mxu0
        %2437 = vmatprep.mubr.bf16.mxu0 %v2051
        %2438 = vmatmul.mubr.bf16.gmra.mrb[0].mxu0 %v2050
        %v2439 = vpop.f32.mrb[0].mxu0
        %v2440 = vadd.f32 %v2099, %v2439
        %v2441 = vpop.f32.mrb[0].mxu0
        %v2442 = vpop.f32.mrb[0].mxu0
        %v2443 = vadd.f32 %v2099, %v2442
        %v2444 = vpop.f32.mrb[0].mxu0
        %2445 = vmatprep.mubr.bf16.mxu0 %v2053
        %2446 = vmatmul.mubr.bf16.gmra.mrb[0].mxu0 %v2052
        %v2447 = vpop.f32.mrb[0].mxu0
        %v2448 = vadd.f32 %v2099, %v2447
        %v2449 = vpop.f32.mrb[0].mxu0
        %v2450 = vpop.f32.mrb[0].mxu0
        %v2451 = vadd.f32 %v2099, %v2450
        %v2452 = vpop.f32.mrb[0].mxu0
        %2453 = vmatprep.mubr.bf16.mxu0 %v2055
        %2454 = vmatmul.mubr.bf16.gmra.mrb[0].mxu0 %v2054
        %v2455 = vpop.f32.mrb[0].mxu0
        %v2456 = vadd.f32 %v2099, %v2455
        %v2457 = vpop.f32.mrb[0].mxu0
        %v2458 = vpop.f32.mrb[0].mxu0
        %v2459 = vadd.f32 %v2099, %v2458
        %v2460 = vpop.f32.mrb[0].mxu0
        %2461 = vmatprep.mubr.bf16.mxu0 %v2057
        %2462 = vmatmul.mubr.bf16.gmra.mrb[0].mxu0 %v2056
        %v2463 = vpop.f32.mrb[0].mxu0
        %v2464 = vadd.f32 %v2099, %v2463
        %v2465 = vpop.f32.mrb[0].mxu0
        %v2466 = vpop.f32.mrb[0].mxu0
        %v2467 = vadd.f32 %v2099, %v2466
        %v2468 = vpop.f32.mrb[0].mxu0
        %2469 = vmatprep.mubr.bf16.mxu0 %v2059
        %2470 = vmatmul.mubr.bf16.gmra.mrb[0].mxu0 %v2058
        %v2471 = vpop.f32.mrb[0].mxu0
        %v2472 = vadd.f32 %v2099, %v2471
        %v2473 = vpop.f32.mrb[0].mxu0
        %v2474 = vpop.f32.mrb[0].mxu0
        %v2475 = vadd.f32 %v2099, %v2474
        %v2476 = vpop.f32.mrb[0].mxu0
        %2477 = vmatprep.mubr.bf16.mxu0 %v2061
        %2478 = vmatmul.mubr.bf16.gmra.mrb[0].mxu0 %v2060
        %v2479 = vpop.f32.mrb[0].mxu0
        %v2480 = vadd.f32 %v2099, %v2479
        %v2481 = vpop.f32.mrb[0].mxu0
        %v2482 = vpop.f32.mrb[0].mxu0
        %v2483 = vadd.f32 %v2099, %v2482
        %v2484 = vpop.f32.mrb[0].mxu0
        %2485 = vdwg.mxu0
        %v2486 = vadd.f32 %v2232, %v289
        %v2487 = vadd.f32 %v2235, %v290
        %v2488 = vadd.f32 %v2240, %v291
        %v2489 = vadd.f32 %v2243, %v292
        %v2490 = vadd.f32 %v2248, %v293
        %v2491 = vadd.f32 %v2251, %v294
        %v2492 = vadd.f32 %v2256, %v295
        %v2493 = vadd.f32 %v2259, %v296
        %v2494 = vadd.f32 %v2264, %v297
        %v2495 = vadd.f32 %v2267, %v298
        %v2496 = vadd.f32 %v2272, %v299
        %v2497 = vadd.f32 %v2275, %v300
        %v2498 = vadd.f32 %v2280, %v301
        %v2499 = vadd.f32 %v2283, %v302
        %v2500 = vadd.f32 %v2288, %v303
        %v2501 = vadd.f32 %v2291, %v304
        %v2502 = vadd.f32 %v2296, %v305
        %v2503 = vadd.f32 %v2299, %v306
        %v2504 = vadd.f32 %v2304, %v307
        %v2505 = vadd.f32 %v2307, %v308
        %v2506 = vadd.f32 %v2312, %v309
        %v2507 = vadd.f32 %v2315, %v310
        %v2508 = vadd.f32 %v2320, %v311
        %v2509 = vadd.f32 %v2323, %v312
        %v2510 = vadd.f32 %v2328, %v313
        %v2511 = vadd.f32 %v2331, %v314
        %v2512 = vadd.f32 %v2336, %v315
        %v2513 = vadd.f32 %v2339, %v316
        %v2514 = vadd.f32 %v2344, %v317
        %v2515 = vadd.f32 %v2347, %v318
        %v2516 = vadd.f32 %v2352, %v319
        %v2517 = vadd.f32 %v2355, %v320
        %v2518 = vadd.f32 %v2360, %v321
        %v2519 = vadd.f32 %v2363, %v322
        %v2520 = vadd.f32 %v2368, %v323
        %v2521 = vadd.f32 %v2371, %v324
        %v2522 = vadd.f32 %v2376, %v325
        %v2523 = vadd.f32 %v2379, %v326
        %v2524 = vadd.f32 %v2384, %v327
        %v2525 = vadd.f32 %v2387, %v328
        %v2526 = vadd.f32 %v2392, %v329
        %v2527 = vadd.f32 %v2395, %v330
        %v2528 = vadd.f32 %v2400, %v331
        %v2529 = vadd.f32 %v2403, %v332
        %v2530 = vadd.f32 %v2408, %v333
        %v2531 = vadd.f32 %v2411, %v334
        %v2532 = vadd.f32 %v2416, %v335
        %v2533 = vadd.f32 %v2419, %v336
        %v2534 = vadd.f32 %v2424, %v337
        %v2535 = vadd.f32 %v2427, %v338
        %v2536 = vadd.f32 %v2432, %v339
        %v2537 = vadd.f32 %v2435, %v340
        %v2538 = vadd.f32 %v2440, %v341
        %v2539 = vadd.f32 %v2443, %v342
        %v2540 = vadd.f32 %v2448, %v343
        %v2541 = vadd.f32 %v2451, %v344
        %v2542 = vadd.f32 %v2456, %v345
        %v2543 = vadd.f32 %v2459, %v346
        %v2544 = vadd.f32 %v2464, %v347
        %v2545 = vadd.f32 %v2467, %v348
        %v2546 = vadd.f32 %v2472, %v349
        %v2547 = vadd.f32 %v2475, %v350
        %v2548 = vadd.f32 %v2480, %v351
        %v2549 = vadd.f32 %v2483, %v352
        %2550 = vst [vmem:[%s277] sm:$0xff] %v2486
        %2551 = vst [vmem:[%s277 + $0x8] sm:$0xff] %v2487
        %2552 = vst [vmem:[%s277 + $0x10] sm:$0xff] %v2488
        %2553 = vst [vmem:[%s277 + $0x18] sm:$0xff] %v2489
        %2554 = vst [vmem:[%s277 + $0x20] sm:$0xff] %v2490
        %2555 = vst [vmem:[%s277 + $0x28] sm:$0xff] %v2491
        %2556 = vst [vmem:[%s277 + $0x30] sm:$0xff] %v2492
        %2557 = vst [vmem:[%s277 + $0x38] sm:$0xff] %v2493
        %2558 = vst [vmem:[%s277 + $0x40] sm:$0xff] %v2494
        %2559 = vst [vmem:[%s277 + $0x48] sm:$0xff] %v2495
        %2560 = vst [vmem:[%s277 + $0x50] sm:$0xff] %v2496
        %2561 = vst [vmem:[%s277 + $0x58] sm:$0xff] %v2497
        %2562 = vst [vmem:[%s277 + $0x60] sm:$0xff] %v2498
        %2563 = vst [vmem:[%s277 + $0x68] sm:$0xff] %v2499
        %2564 = vst [vmem:[%s277 + $0x70] sm:$0xff] %v2500
        %2565 = vst [vmem:[%s277 + $0x78] sm:$0xff] %v2501
        %2566 = vst [vmem:[%s277 + $0x80] sm:$0xff] %v2502
        %2567 = vst [vmem:[%s277 + $0x88] sm:$0xff] %v2503
        %2568 = vst [vmem:[%s277 + $0x90] sm:$0xff] %v2504
        %2569 = vst [vmem:[%s277 + $0x98] sm:$0xff] %v2505
        %2570 = vst [vmem:[%s277 + $0xa0] sm:$0xff] %v2506
        %2571 = vst [vmem:[%s277 + $0xa8] sm:$0xff] %v2507
        %2572 = vst [vmem:[%s277 + $0xb0] sm:$0xff] %v2508
        %2573 = vst [vmem:[%s277 + $0xb8] sm:$0xff] %v2509
        %2574 = vst [vmem:[%s277 + $0xc0] sm:$0xff] %v2510
        %2575 = vst [vmem:[%s277 + $0xc8] sm:$0xff] %v2511
        %2576 = vst [vmem:[%s277 + $0xd0] sm:$0xff] %v2512
        %2577 = vst [vmem:[%s277 + $0xd8] sm:$0xff] %v2513
        %2578 = vst [vmem:[%s277 + $0xe0] sm:$0xff] %v2514
        %2579 = vst [vmem:[%s277 + $0xe8] sm:$0xff] %v2515
        %2580 = vst [vmem:[%s277 + $0xf0] sm:$0xff] %v2516
        %2581 = vst [vmem:[%s277 + $0xf8] sm:$0xff] %v2517
        %2582 = vst [vmem:[%s277 + $0x100] sm:$0xff] %v2518
        %2583 = vst [vmem:[%s277 + $0x108] sm:$0xff] %v2519
        %2584 = vst [vmem:[%s277 + $0x110] sm:$0xff] %v2520
        %2585 = vst [vmem:[%s277 + $0x118] sm:$0xff] %v2521
        %2586 = vst [vmem:[%s277 + $0x120] sm:$0xff] %v2522
        %2587 = vst [vmem:[%s277 + $0x128] sm:$0xff] %v2523
        %2588 = vst [vmem:[%s277 + $0x130] sm:$0xff] %v2524
        %2589 = vst [vmem:[%s277 + $0x138] sm:$0xff] %v2525
        %2590 = vst [vmem:[%s277 + $0x140] sm:$0xff] %v2526
        %2591 = vst [vmem:[%s277 + $0x148] sm:$0xff] %v2527
        %2592 = vst [vmem:[%s277 + $0x150] sm:$0xff] %v2528
        %2593 = vst [vmem:[%s277 + $0x158] sm:$0xff] %v2529
        %2594 = vst [vmem:[%s277 + $0x160] sm:$0xff] %v2530
        %2595 = vst [vmem:[%s277 + $0x168] sm:$0xff] %v2531
        %2596 = vst [vmem:[%s277 + $0x170] sm:$0xff] %v2532
        %2597 = vst [vmem:[%s277 + $0x178] sm:$0xff] %v2533
        %2598 = vst [vmem:[%s277 + $0x180] sm:$0xff] %v2534
        %2599 = vst [vmem:[%s277 + $0x188] sm:$0xff] %v2535
        %2600 = vst [vmem:[%s277 + $0x190] sm:$0xff] %v2536
        %2601 = vst [vmem:[%s277 + $0x198] sm:$0xff] %v2537
        %2602 = vst [vmem:[%s277 + $0x1a0] sm:$0xff] %v2538
        %2603 = vst [vmem:[%s277 + $0x1a8] sm:$0xff] %v2539
        %2604 = vst [vmem:[%s277 + $0x1b0] sm:$0xff] %v2540
        %2605 = vst [vmem:[%s277 + $0x1b8] sm:$0xff] %v2541
        %2606 = vst [vmem:[%s277 + $0x1c0] sm:$0xff] %v2542
        %2607 = vst [vmem:[%s277 + $0x1c8] sm:$0xff] %v2543
        %2608 = vst [vmem:[%s277 + $0x1d0] sm:$0xff] %v2544
        %2609 = vst [vmem:[%s277 + $0x1d8] sm:$0xff] %v2545
        %2610 = vst [vmem:[%s277 + $0x1e0] sm:$0xff] %v2546
        %2611 = vst [vmem:[%s277 + $0x1e8] sm:$0xff] %v2547
        %2612 = vst [vmem:[%s277 + $0x1f0] sm:$0xff] %v2548
        %2613 = vst [vmem:[%s277 + $0x1f8] sm:$0xff] %v2549
        %s2614 = sand.u32 %s141, 1
        %s2615 = scalar_lea.sflag [#allocation4], %s2614
        %s2616 = sand.u32 %s141, 1
        %s2617 = smul.addr %s2616, 512
        %s2618 = scalar_lea.vmem [#allocation8], %s2617
        // Predicated region
        $region53: #{tpu_custom_call.1} parent=39 // pred_check
          %p2619 = pneg %p151
        $region54: #{tpu_custom_call.1} parent=39 // pred_check_branch
          %2621 = sbr.rel (%p2619) target = $region56
        $region55: #{tpu_custom_call.1} parent=39 // pred_region
          %s2622 = smul.u32 64, %s23
          %s2623 = ssub.s32 150, %s2622
          %p2624 = scmp.lt.s32.totalorder %s2623, 64
          %s2625 = scalar_select %p2624, %s2623, 64
          %s2626 = smul.u32 128, %s2625
          %s2628 = ssub.s32 8192, %s2626
          %2629 = vsyncadd %s2615, %s2628
          %p2630 = scmp.ne.s32.totalorder 0, %s2626
          %s2631 = smul.addr %s2622, 128
          %s2632 = scalar_lea.hbm %s5, %s2631
          %s2633 = smul.u32 8, %s2625
          %s2634 = sshll.u32 %s2618, 4
          %s2635 = int_to_ptr.vmem [resolvable:$true] %s2634
          %s2636 = sshll.u32 %s2633, 4
          %2640 = dma.vmem_to_hbm [thread:$0]  (%p2630), %s2635, %s2636, %s2632, %s2615, 128, 128, 8
        $region56: #{tpu_custom_call.1} parent=39 // pred_fallthru
          _
      $region40: #{tpu_custom_call.1} parent=5 // pred_fallthru
        _
      %p2641 = scmp.le.s32.totalorder 2, %s18
      // Predicated region
      $region57: #{tpu_custom_call.1} parent=5 // pred_check
        %p2642 = pneg %p2641
      $region58: #{tpu_custom_call.1} parent=5 // pred_check_branch
        %2644 = sbr.rel (%p2642) target = $region60
      $region59: #{tpu_custom_call.1} parent=5 // pred_region
        %s2645 = ssub.s32 %s18, 2
        // Predicated region
        $region61: #{tpu_custom_call.1} parent=59 // pred_check
          %p2646 = pneg %p157
        $region62: #{tpu_custom_call.1} parent=59 // pred_check_branch
          %2648 = sbr.rel (%p2646) target = $region64
        $region63: #{tpu_custom_call.1} parent=59 // pred_region
          %s2649 = sand.u32 %s142, 1
          %s2650 = scalar_lea.sflag [#allocation4], %s2649
          %s2651 = sand.u32 %s142, 1
          %s2652 = smul.addr %s2651, 512
          %s2653 = scalar_lea.vmem [#allocation8], %s2652
          %2654 = dma.done %s2650, 8192
        $region64: #{tpu_custom_call.1} parent=59 // pred_fallthru
          _
      $region60: #{tpu_custom_call.1} parent=5 // pred_fallthru
        _
    $region6: #{tpu_custom_call.1} parent=1 // loop_footer
      %s22 = sadd.s32 1, %s18
    $region7: #{tpu_custom_call.1} parent=1 // loop_footer_branch
      %17 = sbr.rel target = $region3
    $region8: #{tpu_custom_call.1} parent=1 // loop_exit
      _
    %2655 = vsyncpa [#allocation3], 1
    %s2656 = scalar_lea.sflag [#allocation3], 1
    %2657 = vsyncpa %s2656, 1
    %2658 = vsyncpa [#allocation6], 1
    %2659 = vsyncpa [#allocation4], 1
    %s2660 = scalar_lea.sflag [#allocation4], 1
    %2661 = vsyncpa %s2660, 1

// kernel: tpu_custom_call.1
$region0: #{tpu_custom_call.1}
  #allocation0 [shape = 'u32[]', space=smem, size = 0x4, offset = 0x4, fixed_abs, tag = 'smem constant byte address 0x4 - core index']
  #allocation1 [shape = 'u32[144,128]{1,0:T(1,128)}', space=vmem, size = 0x12000, scoped, tag = 'internal scratch']
  %s0 = inlined_call_operand.hbm [shape: f32[1200,128], index: 0, kind: input, shape index: {}]
  %s1 = inlined_call_operand.hbm [shape: bf16[128,256], index: 1, kind: input, shape index: {}]
  %s2 = inlined_call_operand.vmem [shape: f32[1,256], index: 2, kind: input, shape index: {}]
  %s3 = inlined_call_operand.hbm [shape: bf16[256,128], index: 3, kind: input, shape index: {}]
  %s4 = inlined_call_operand.vmem [shape: f32[1,128], index: 4, kind: input, shape index: {}]
  %s5 = inlined_call_operand.hbm [shape: f32[1200,128], index: 5, kind: output, shape index: {}]
  %s6 = sld [smem:[#allocation0]]
  $region65: #{tpu_custom_call.1} parent=0
    _
  %s8 = ssub.s32 1, %s6
  %s9 = scalar_select 0, %s8, %s6
  $region1: #{tpu_custom_call.1} parent=0
    #allocation2 [shape = 'u8[524288]{0}', space=vmem, size = 0x80000, scoped, tag = 'input window, operand 0']
    #allocation3 [shape = 's32[2]{0}', space=sflag, size = 0x8, scoped, tag = 'scoped memory for tpu_custom_call.1']
    #allocation4 [shape = 's32[2]{0}', space=sflag, size = 0x8, scoped, tag = 'scoped memory for tpu_custom_call.1']
    #allocation5 [shape = 'u8[65536]{0}', space=vmem, size = 0x10000, scoped, tag = 'input window, operand 1, single buffered']
    #allocation6 [shape = 's32[1]{0}', space=sflag, size = 0x4, scoped, tag = 'scoped memory for tpu_custom_call.1']
    #allocation7 [shape = 'u8[65536]{0}', space=vmem, size = 0x10000, scoped, tag = 'input window, operand 3, single buffered']
    #allocation8 [shape = 'u8[524288]{0}', space=vmem, size = 0x80000, scoped, tag = 'output window, operand 0']
    %10 = vsyncpa [#allocation3], 0
    %s11 = scalar_lea.sflag [#allocation3], 1
    %12 = vsyncpa %s11, 0
    %13 = vsyncpa [#allocation6], 0
    %14 = vsyncpa [#allocation4], 0
    %s15 = scalar_lea.sflag [#allocation4], 1
    %16 = vsyncpa %s15, 0
    loop: start=0, step=1, limit=5
    $region2: #{tpu_custom_call.1} parent=1 // loop_pre_header
      _
    $region3: #{tpu_custom_call.1} parent=1 // loop_header
      %s18 = sphi 0, %s22
      %p19 = scmp.ge.s32.totalorder %s18, 5
      %s28 = sphi 0, %s30
      %s31 = sphi 0, %s28
      %s32 = sphi 0, %s31
      %s48 = sphi 0, %s32
      %s52 = sphi 0, %s52
      %s54 = sphi 0, %s52
      %s55 = sphi 0, %s54
      %s69 = sphi 0, %s55
      %s73 = sphi 0, %s73
      %s75 = sphi 0, %s73
      %s76 = sphi 0, %s75
      %s90 = sphi 0, %s76
      %s94 = sphi 0, %s94
      %s96 = sphi 0, %s94
      %s97 = sphi 0, %s96
      %s111 = sphi 0, %s97
      %s115 = sphi 0, %s115
      %s117 = sphi 0, %s115
      %s118 = sphi 0, %s117
      %s132 = sphi 0, %s118
      %s138 = sphi 0, %s140
      %s141 = sphi 0, %s138
      %s142 = sphi 0, %s141
      %s158 = sphi 0, %s142
    $region4: #{tpu_custom_call.1} parent=1 // loop_header_branch
      %21 = sbr.rel (%p19) target = $region8
    $region5: #{tpu_custom_call.1} parent=1 // loop_body
      %s23 = ssub.s32 %s18, 1
      %s24 = ssub.s32 %s18, 2
      %s25 = sadd.s32 %s18, 1
      %s26 = ssub.s32 %s18, %s25
      %p27 = scmp.eq.s32.totalorder %s26, 0
      %s29 = sadd.s32 %s28, 1
      %s30 = scalar_select %p27, %s28, %s29
      %p33 = pneg %p27
      %p34 = scmp.eq.s32.totalorder %s18, 2
      %p35 = por %p33, %p34
      %p36 = scmp.ne.s32.totalorder %s28, %s31
      %p37 = scmp.eq.s32.totalorder %s18, 0
      %p38 = por %p36, %p37
      %p39 = scmp.ne.s32.totalorder %s28, %s31
      %p40 = scmp.eq.s32.totalorder %s23, 2
      %p41 = por %p39, %p40
      %p42 = scmp.ne.s32.totalorder %s31, %s32
      %p43 = scmp.eq.s32.totalorder %s23, 0
      %p44 = por %p42, %p43
      %p45 = scmp.ne.s32.totalorder %s31, %s32
      %p46 = scmp.eq.s32.totalorder %s24, 2
      %p47 = por %p45, %p46
      %p49 = scmp.ne.s32.totalorder %s32, %s48
      %p50 = scmp.eq.s32.totalorder %s24, 0
      %p51 = por %p49, %p50
      %s53 = sadd.s32 %s52, 1
      %p56 = scmp.eq.s32.totalorder %s18, 2
      %p57 = scmp.ne.s32.totalorder %s52, %s54
      %p58 = scmp.eq.s32.totalorder %s18, 0
      %p59 = por %p57, %p58
      %p60 = scmp.ne.s32.totalorder %s52, %s54
      %p61 = scmp.eq.s32.totalorder %s23, 2
      %p62 = por %p60, %p61
      %p63 = scmp.ne.s32.totalorder %s54, %s55
      %p64 = scmp.eq.s32.totalorder %s23, 0
      %p65 = por %p63, %p64
      %p66 = scmp.ne.s32.totalorder %s54, %s55
      %p67 = scmp.eq.s32.totalorder %s24, 2
      %p68 = por %p66, %p67
      %p70 = scmp.ne.s32.totalorder %s55, %s69
      %p71 = scmp.eq.s32.totalorder %s24, 0
      %p72 = por %p70, %p71
      %s74 = sadd.s32 %s73, 1
      %p77 = scmp.eq.s32.totalorder %s18, 2
      %p78 = scmp.ne.s32.totalorder %s73, %s75
      %p79 = scmp.eq.s32.totalorder %s18, 0
      %p80 = por %p78, %p79
      %p81 = scmp.ne.s32.totalorder %s73, %s75
      %p82 = scmp.eq.s32.totalorder %s23, 2
      %p83 = por %p81, %p82
      %p84 = scmp.ne.s32.totalorder %s75, %s76
      %p85 = scmp.eq.s32.totalorder %s23, 0
      %p86 = por %p84, %p85
      %p87 = scmp.ne.s32.totalorder %s75, %s76
      %p88 = scmp.eq.s32.totalorder %s24, 2
      %p89 = por %p87, %p88
      %p91 = scmp.ne.s32.totalorder %s76, %s90
      %p92 = scmp.eq.s32.totalorder %s24, 0
      %p93 = por %p91, %p92
      %s95 = sadd.s32 %s94, 1
      %p98 = scmp.eq.s32.totalorder %s18, 2
      %p99 = scmp.ne.s32.totalorder %s94, %s96
      %p100 = scmp.eq.s32.totalorder %s18, 0
      %p101 = por %p99, %p100
      %p102 = scmp.ne.s32.totalorder %s94, %s96
      %p103 = scmp.eq.s32.totalorder %s23, 2
      %p104 = por %p102, %p103
      %p105 = scmp.ne.s32.totalorder %s96, %s97
      %p106 = scmp.eq.s32.totalorder %s23, 0
      %p107 = por %p105, %p106
      %p108 = scmp.ne.s32.totalorder %s96, %s97
      %p109 = scmp.eq.s32.totalorder %s24, 2
      %p110 = por %p108, %p109
      %p112 = scmp.ne.s32.totalorder %s97, %s111
      %p113 = scmp.eq.s32.totalorder %s24, 0
      %p114 = por %p112, %p113
      %s116 = sadd.s32 %s115, 1
      %p119 = scmp.eq.s32.totalorder %s18, 2
      %p120 = scmp.ne.s32.totalorder %s115, %s117
      %p121 = scmp.eq.s32.totalorder %s18, 0
      %p122 = por %p120, %p121
      %p123 = scmp.ne.s32.totalorder %s115, %s117
      %p124 = scmp.eq.s32.totalorder %s23, 2
      %p125 = por %p123, %p124
      %p126 = scmp.ne.s32.totalorder %s117, %s118
      %p127 = scmp.eq.s32.totalorder %s23, 0
      %p128 = por %p126, %p127
      %p129 = scmp.ne.s32.totalorder %s117, %s118
      %p130 = scmp.eq.s32.totalorder %s24, 2
      %p131 = por %p129, %p130
      %p133 = scmp.ne.s32.totalorder %s118, %s132
      %p134 = scmp.eq.s32.totalorder %s24, 0
      %p135 = por %p133, %p134
      %s136 = ssub.s32 %s18, %s25
      %p137 = scmp.eq.s32.totalorder %s136, 0
      %s139 = sadd.s32 %s138, 1
      %s140 = scalar_select %p137, %s138, %s139
      %p143 = pneg %p137
      %p144 = scmp.eq.s32.totalorder %s18, 2
      %p145 = por %p143, %p144
      %p146 = scmp.ne.s32.totalorder %s138, %s141
      %p147 = scmp.eq.s32.totalorder %s18, 0
      %p148 = por %p146, %p147
      %p149 = scmp.ne.s32.totalorder %s138, %s141
      %p150 = scmp.eq.s32.totalorder %s23, 2
      %p151 = por %p149, %p150
      %p152 = scmp.ne.s32.totalorder %s141, %s142
      %p153 = scmp.eq.s32.totalorder %s23, 0
      %p154 = por %p152, %p153
      %p155 = scmp.ne.s32.totalorder %s141, %s142
      %p156 = scmp.eq.s32.totalorder %s24, 2
      %p157 = por %p155, %p156
      %p159 = scmp.ne.s32.totalorder %s142, %s158
      %p160 = scmp.eq.s32.totalorder %s24, 0
      %p161 = por %p159, %p160
      %p162 = scmp.le.s32.totalorder 1, %s18
      %p163 = scmp.lt.s32.totalorder %s18, 4
      %p164 = pnand %p162, %p163
      %p165 = pneg %p164
      // Predicated region
      $region9: #{tpu_custom_call.1} parent=5 // pred_check
        _
      $region10: #{tpu_custom_call.1} parent=5 // pred_check_branch
        %167 = sbr.rel (%p164) target = $region12
      $region11: #{tpu_custom_call.1} parent=5 // pred_region
        %s168 = ssub.s32 %s18, 1
        // Predicated region
        $region13: #{tpu_custom_call.1} parent=11 // pred_check
          %p169 = pneg %p65
        $region14: #{tpu_custom_call.1} parent=11 // pred_check_branch
          %171 = sbr.rel (%p169) target = $region16
        $region15: #{tpu_custom_call.1} parent=11 // pred_region
          %s173 = ssub.s32 2048, 2048
          %174 = vsyncadd [#allocation6], %s173
          %s175 = sshll.u32 [#allocation5], 4
          %s176 = int_to_ptr.vmem [resolvable:$true] %s175
          %181 = dma.hbm_to_vmem [thread:$0]  %s1, 2048, %s176, [#allocation6], 128, 128, 8
        $region16: #{tpu_custom_call.1} parent=11 // pred_fallthru
          _
        // Predicated region
        $region17: #{tpu_custom_call.1} parent=11 // pred_check
          %p182 = pneg %p86
        $region18: #{tpu_custom_call.1} parent=11 // pred_check_branch
          %184 = sbr.rel (%p182) target = $region20
        $region19: #{tpu_custom_call.1} parent=11 // pred_region
          _
        $region20: #{tpu_custom_call.1} parent=11 // pred_fallthru
          _
        // Predicated region
        $region21: #{tpu_custom_call.1} parent=11 // pred_check
          %p185 = pneg %p107
        $region22: #{tpu_custom_call.1} parent=11 // pred_check_branch
          %187 = sbr.rel (%p185) target = $region24
        $region23: #{tpu_custom_call.1} parent=11 // pred_region
          %s189 = ssub.s32 2048, 2048
          %190 = vsyncadd [#allocation6], %s189
          %s191 = sshll.u32 [#allocation7], 4
          %s192 = int_to_ptr.vmem [resolvable:$true] %s191
          %197 = dma.hbm_to_vmem [thread:$0]  %s3, 2048, %s192, [#allocation6], 64, 64, 4
        $region24: #{tpu_custom_call.1} parent=11 // pred_fallthru
          _
        // Predicated region
        $region25: #{tpu_custom_call.1} parent=11 // pred_check
          %p198 = pneg %p128
        $region26: #{tpu_custom_call.1} parent=11 // pred_check_branch
          %200 = sbr.rel (%p198) target = $region28
        $region27: #{tpu_custom_call.1} parent=11 // pred_region
          _
        $region28: #{tpu_custom_call.1} parent=11 // pred_fallthru
          _
      $region12: #{tpu_custom_call.1} parent=5 // pred_fallthru
        _
      %p201 = scmp.lt.s32.totalorder %s18, 3
      // Predicated region
      $region29: #{tpu_custom_call.1} parent=5 // pred_check
        %p202 = pneg %p201
      $region30: #{tpu_custom_call.1} parent=5 // pred_check_branch
        %204 = sbr.rel (%p202) target = $region32
      $region31: #{tpu_custom_call.1} parent=5 // pred_region
        // Predicated region
        $region33: #{tpu_custom_call.1} parent=31 // pred_check
          %p205 = pneg %p38
        $region34: #{tpu_custom_call.1} parent=31 // pred_check_branch
          %207 = sbr.rel (%p205) target = $region36
        $region35: #{tpu_custom_call.1} parent=31 // pred_region
          %s208 = sand.u32 %s28, 1
          %s209 = scalar_lea.sflag [#allocation3], %s208
          %s210 = sand.u32 %s28, 1
          %s211 = smul.addr %s210, 512
          %s212 = scalar_lea.vmem [#allocation2], %s211
          %s213 = smul.u32 64, %s18
          %s214 = ssub.s32 150, %s213
          %p215 = scmp.lt.s32.totalorder %s214, 64
          %s216 = scalar_select %p215, %s214, 64
          %s217 = smul.u32 128, %s216
          %s219 = ssub.s32 8192, %s217
          %220 = vsyncadd %s209, %s219
          %p221 = scmp.ne.s32.totalorder 0, %s217
          %s222 = smul.addr %s213, 128
          %s223 = scalar_lea.hbm %s0, %s222
          %s224 = smul.u32 8, %s216
          %s225 = sshll.u32 %s212, 4
          %s226 = int_to_ptr.vmem [resolvable:$true] %s225
          %s227 = sshll.u32 %s224, 4
          %231 = dma.hbm_to_vmem [thread:$0]  (%p221), %s223, %s227, %s226, %s209, 128, 128, 8
        $region36: #{tpu_custom_call.1} parent=31 // pred_fallthru
          _
      $region32: #{tpu_custom_call.1} parent=5 // pred_fallthru
        _
      %p232 = scmp.le.s32.totalorder 1, %s18
      %p233 = scmp.lt.s32.totalorder %s18, 4
      %p234 = pnand %p232, %p233
      %p235 = pneg %p234
      // Predicated region
      $region37: #{tpu_custom_call.1} parent=5 // pred_check
        _
      $region38: #{tpu_custom_call.1} parent=5 // pred_check_branch
        %237 = sbr.rel (%p234) target = $region40
      $region39: #{tpu_custom_call.1} parent=5 // pred_region
        %s238 = ssub.s32 %s18, 1
        %s239 = sand.u32 %s31, 1
        %s240 = scalar_lea.sflag [#allocation3], %s239
        %s241 = sand.u32 %s31, 1
        %s242 = smul.addr %s241, 512
        %s243 = scalar_lea.vmem [#allocation2], %s242
        // Predicated region
        $region41: #{tpu_custom_call.1} parent=39 // pred_check
          %p244 = pneg %p44
        $region42: #{tpu_custom_call.1} parent=39 // pred_check_branch
          %246 = sbr.rel (%p244) target = $region44
        $region43: #{tpu_custom_call.1} parent=39 // pred_region
          %247 = dma.done %s240, 8192
        $region44: #{tpu_custom_call.1} parent=39 // pred_fallthru
          _
        // Predicated region
        $region45: #{tpu_custom_call.1} parent=39 // pred_check
          %p248 = pneg %p65
        $region46: #{tpu_custom_call.1} parent=39 // pred_check_branch
          %250 = sbr.rel (%p248) target = $region48
        $region47: #{tpu_custom_call.1} parent=39 // pred_region
          %251 = dma.done [#allocation6], 2048
        $region48: #{tpu_custom_call.1} parent=39 // pred_fallthru
          _
        // Predicated region
        $region49: #{tpu_custom_call.1} parent=39 // pred_check
          %p252 = pneg %p107
        $region50: #{tpu_custom_call.1} parent=39 // pred_check_branch
          %254 = sbr.rel (%p252) target = $region52
        $region51: #{tpu_custom_call.1} parent=39 // pred_region
          %255 = dma.done [#allocation6], 2048
        $region52: #{tpu_custom_call.1} parent=39 // pred_fallthru
          _
        %s256 = sand.u32 %s31, 1
        %s257 = scalar_lea.sflag [#allocation3], %s256
        %s258 = sand.u32 %s31, 1
        %s259 = smul.addr %s258, 512
        %s260 = scalar_lea.vmem [#allocation2], %s259
        %p261 = pneg %p44
        %p262 = pneg %p41
        %p263 = pneg %p65
        %p264 = pneg %p62
        %p265 = pneg %p86
        %p266 = pneg %p83
        %p267 = pneg %p107
        %p268 = pneg %p104
        %p269 = pneg %p128
        %p270 = pneg %p125
        %p271 = pneg %p154
        %p272 = pneg %p151
        %s273 = sand.u32 %s141, 1
        %s274 = scalar_lea.sflag [#allocation4], %s273
        %s275 = sand.u32 %s141, 1
        %s276 = smul.addr %s275, 512
        %s277 = scalar_lea.vmem [#allocation8], %s276
        %s278 = smul.u32 64, %s23
        %s279 = ssub.s32 150, %s278
        %p280 = scmp.lt.s32.totalorder %s279, 64
        %s281 = scalar_select %p280, %s279, 64
        %s282 = smul.u32 128, %s281
        %s283 = smul.u32 64, %s23
        %s284 = ssub.s32 150, %s283
        %p285 = scmp.lt.s32.totalorder %s284, 64
        %s286 = scalar_select %p285, %s284, 64
        %s287 = smul.u32 128, %s286
        %v289 = vld [vmem:[%s243] sm:$0xff]
        %v290 = vld [vmem:[%s243 + $0x8] sm:$0xff]
        %v291 = vld [vmem:[%s243 + $0x10] sm:$0xff]
        %v292 = vld [vmem:[%s243 + $0x18] sm:$0xff]
        %v293 = vld [vmem:[%s243 + $0x20] sm:$0xff]
        %v294 = vld [vmem:[%s243 + $0x28] sm:$0xff]
        %v295 = vld [vmem:[%s243 + $0x30] sm:$0xff]
        %v296 = vld [vmem:[%s243 + $0x38] sm:$0xff]
        %v297 = vld [vmem:[%s243 + $0x40] sm:$0xff]
        %v298 = vld [vmem:[%s243 + $0x48] sm:$0xff]
        %v299 = vld [vmem:[%s243 + $0x50] sm:$0xff]
        %v300 = vld [vmem:[%s243 + $0x58] sm:$0xff]
        %v301 = vld [vmem:[%s243 + $0x60] sm:$0xff]
        %v302 = vld [vmem:[%s243 + $0x68] sm:$0xff]
        %v303 = vld [vmem:[%s243 + $0x70] sm:$0xff]
        %v304 = vld [vmem:[%s243 + $0x78] sm:$0xff]
        %v305 = vld [vmem:[%s243 + $0x80] sm:$0xff]
        %v306 = vld [vmem:[%s243 + $0x88] sm:$0xff]
        %v307 = vld [vmem:[%s243 + $0x90] sm:$0xff]
        %v308 = vld [vmem:[%s243 + $0x98] sm:$0xff]
        %v309 = vld [vmem:[%s243 + $0xa0] sm:$0xff]
        %v310 = vld [vmem:[%s243 + $0xa8] sm:$0xff]
        %v311 = vld [vmem:[%s243 + $0xb0] sm:$0xff]
        %v312 = vld [vmem:[%s243 + $0xb8] sm:$0xff]
        %v313 = vld [vmem:[%s243 + $0xc0] sm:$0xff]
        %v314 = vld [vmem:[%s243 + $0xc8] sm:$0xff]
        %v315 = vld [vmem:[%s243 + $0xd0] sm:$0xff]
        %v316 = vld [vmem:[%s243 + $0xd8] sm:$0xff]
        %v317 = vld [vmem:[%s243 + $0xe0] sm:$0xff]
        %v318 = vld [vmem:[%s243 + $0xe8] sm:$0xff]
        %v319 = vld [vmem:[%s243 + $0xf0] sm:$0xff]
        %v320 = vld [vmem:[%s243 + $0xf8] sm:$0xff]
        %v321 = vld [vmem:[%s243 + $0x100] sm:$0xff]
        %v322 = vld [vmem:[%s243 + $0x108] sm:$0xff]
        %v323 = vld [vmem:[%s243 + $0x110] sm:$0xff]
        %v324 = vld [vmem:[%s243 + $0x118] sm:$0xff]
        %v325 = vld [vmem:[%s243 + $0x120] sm:$0xff]
        %v326 = vld [vmem:[%s243 + $0x128] sm:$0xff]
        %v327 = vld [vmem:[%s243 + $0x130] sm:$0xff]
        %v328 = vld [vmem:[%s243 + $0x138] sm:$0xff]
        %v329 = vld [vmem:[%s243 + $0x140] sm:$0xff]
        %v330 = vld [vmem:[%s243 + $0x148] sm:$0xff]
        %v331 = vld [vmem:[%s243 + $0x150] sm:$0xff]
        %v332 = vld [vmem:[%s243 + $0x158] sm:$0xff]
        %v333 = vld [vmem:[%s243 + $0x160] sm:$0xff]
        %v334 = vld [vmem:[%s243 + $0x168] sm:$0xff]
        %v335 = vld [vmem:[%s243 + $0x170] sm:$0xff]
        %v336 = vld [vmem:[%s243 + $0x178] sm:$0xff]
        %v337 = vld [vmem:[%s243 + $0x180] sm:$0xff]
        %v338 = vld [vmem:[%s243 + $0x188] sm:$0xff]
        %v339 = vld [vmem:[%s243 + $0x190] sm:$0xff]
        %v340 = vld [vmem:[%s243 + $0x198] sm:$0xff]
        %v341 = vld [vmem:[%s243 + $0x1a0] sm:$0xff]
        %v342 = vld [vmem:[%s243 + $0x1a8] sm:$0xff]
        %v343 = vld [vmem:[%s243 + $0x1b0] sm:$0xff]
        %v344 = vld [vmem:[%s243 + $0x1b8] sm:$0xff]
        %v345 = vld [vmem:[%s243 + $0x1c0] sm:$0xff]
        %v346 = vld [vmem:[%s243 + $0x1c8] sm:$0xff]
        %v347 = vld [vmem:[%s243 + $0x1d0] sm:$0xff]
        %v348 = vld [vmem:[%s243 + $0x1d8] sm:$0xff]
        %v349 = vld [vmem:[%s243 + $0x1e0] sm:$0xff]
        %v350 = vld [vmem:[%s243 + $0x1e8] sm:$0xff]
        %v351 = vld [vmem:[%s243 + $0x1f0] sm:$0xff]
        %v352 = vld [vmem:[%s243 + $0x1f8] sm:$0xff]
        %v353 = vpack.c.bf16 %v290, %v289
        %v354 = vpack.c.bf16 %v292, %v291
        %v355 = vpack.c.bf16 %v294, %v293
        %v356 = vpack.c.bf16 %v296, %v295
        %v357 = vpack.c.bf16 %v298, %v297
        %v358 = vpack.c.bf16 %v300, %v299
        %v359 = vpack.c.bf16 %v302, %v301
        %v360 = vpack.c.bf16 %v304, %v303
        %v361 = vpack.c.bf16 %v306, %v305
        %v362 = vpack.c.bf16 %v308, %v307
        %v363 = vpack.c.bf16 %v310, %v309
        %v364 = vpack.c.bf16 %v312, %v311
        %v365 = vpack.c.bf16 %v314, %v313
        %v366 = vpack.c.bf16 %v316, %v315
        %v367 = vpack.c.bf16 %v318, %v317
        %v368 = vpack.c.bf16 %v320, %v319
        %v369 = vpack.c.bf16 %v322, %v321
        %v370 = vpack.c.bf16 %v324, %v323
        %v371 = vpack.c.bf16 %v326, %v325
        %v372 = vpack.c.bf16 %v328, %v327
        %v373 = vpack.c.bf16 %v330, %v329
        %v374 = vpack.c.bf16 %v332, %v331
        %v375 = vpack.c.bf16 %v334, %v333
        %v376 = vpack.c.bf16 %v336, %v335
        %v377 = vpack.c.bf16 %v338, %v337
        %v378 = vpack.c.bf16 %v340, %v339
        %v379 = vpack.c.bf16 %v342, %v341
        %v380 = vpack.c.bf16 %v344, %v343
        %v381 = vpack.c.bf16 %v346, %v345
        %v382 = vpack.c.bf16 %v348, %v347
        %v383 = vpack.c.bf16 %v350, %v349
        %v384 = vpack.c.bf16 %v352, %v351
        %v385 = vld [vmem:[#allocation5] sm:$0xff]
        %v386 = vld [vmem:[#allocation5 + $0x8] sm:$0xff]
        %v387 = vld [vmem:[#allocation5 + $0x10] sm:$0xff]
        %v388 = vld [vmem:[#allocation5 + $0x18] sm:$0xff]
        %v389 = vld [vmem:[#allocation5 + $0x20] sm:$0xff]
        %v390 = vld [vmem:[#allocation5 + $0x28] sm:$0xff]
        %v391 = vld [vmem:[#allocation5 + $0x30] sm:$0xff]
        %v392 = vld [vmem:[#allocation5 + $0x38] sm:$0xff]
        %v393 = vld [vmem:[#allocation5 + $0x40] sm:$0xff]
        %v394 = vld [vmem:[#allocation5 + $0x48] sm:$0xff]
        %v395 = vld [vmem:[#allocation5 + $0x50] sm:$0xff]
        %v396 = vld [vmem:[#allocation5 + $0x58] sm:$0xff]
        %v397 = vld [vmem:[#allocation5 + $0x60] sm:$0xff]
        %v398 = vld [vmem:[#allocation5 + $0x68] sm:$0xff]
        %v399 = vld [vmem:[#allocation5 + $0x70] sm:$0xff]
        %v400 = vld [vmem:[#allocation5 + $0x78] sm:$0xff]
        %v401 = vld [vmem:[%s2] sm:$0x3]
        %v403 = vlaneseq
        %v404 = vshrl.u32 %v403, 7
        %v405 = vsub.s32 0, %v404
        %v406 = vrot.slane %v401, %v405
        %v407 = vlaneseq
        %v408 = vshrl.u32 %v407, 7
        %v409 = vsub.s32 1, %v408
        %v410 = vrot.slane %v401, %v409
        %v429 = vunpack.c.l.b16 %v385
        %v430 = vunpack.c.h.b16 %v385
        %v431 = vunpack.c.l.b16 %v386
        %v432 = vunpack.c.h.b16 %v386
        %v433 = vunpack.c.l.b16 %v387
        %v434 = vunpack.c.h.b16 %v387
        %v435 = vunpack.c.l.b16 %v388
        %v436 = vunpack.c.h.b16 %v388
        %v437 = vunpack.c.l.b16 %v389
        %v438 = vunpack.c.h.b16 %v389
        %v439 = vunpack.c.l.b16 %v390
        %v440 = vunpack.c.h.b16 %v390
        %v441 = vunpack.c.l.b16 %v391
        %v442 = vunpack.c.h.b16 %v391
        %v443 = vunpack.c.l.b16 %v392
        %v444 = vunpack.c.h.b16 %v392
        %v445 = vunpack.c.l.b16 %v393
        %v446 = vunpack.c.h.b16 %v393
        %v447 = vunpack.c.l.b16 %v394
        %v448 = vunpack.c.h.b16 %v394
        %v449 = vunpack.c.l.b16 %v395
        %v450 = vunpack.c.h.b16 %v395
        %v451 = vunpack.c.l.b16 %v396
        %v452 = vunpack.c.h.b16 %v396
        %v453 = vunpack.c.l.b16 %v397
        %v454 = vunpack.c.h.b16 %v397
        %v455 = vunpack.c.l.b16 %v398
        %v456 = vunpack.c.h.b16 %v398
        %v457 = vunpack.c.l.b16 %v399
        %v458 = vunpack.c.h.b16 %v399
        %v459 = vunpack.c.l.b16 %v400
        %v460 = vunpack.c.h.b16 %v400
        %v461 = vpack.c.b16 %v431, %v429
        %v462 = vpack.c.b16 %v432, %v430
        %v463 = vpack.c.b16 %v435, %v433
        %v464 = vpack.c.b16 %v436, %v434
        %v465 = vpack.c.b16 %v439, %v437
        %v466 = vpack.c.b16 %v440, %v438
        %v467 = vpack.c.b16 %v443, %v441
        %v468 = vpack.c.b16 %v444, %v442
        %v469 = vpack.c.b16 %v447, %v445
        %v470 = vpack.c.b16 %v448, %v446
        %v471 = vpack.c.b16 %v451, %v449
        %v472 = vpack.c.b16 %v452, %v450
        %v473 = vpack.c.b16 %v455, %v453
        %v474 = vpack.c.b16 %v456, %v454
        %v475 = vpack.c.b16 %v459, %v457
        %v476 = vpack.c.b16 %v460, %v458
        %493 = vmatprep.subr.bf16.mxu0 %v462
        %494 = vmatpush1.bf16.msra.mxu0 %v461
        %495 = vmatprep.subr.bf16.mxu0 %v464
        %496 = vmatpush1.bf16.msra.mxu0 %v463
        %497 = vmatprep.subr.bf16.mxu0 %v466
        %498 = vmatpush1.bf16.msra.mxu0 %v465
        %499 = vmatprep.subr.bf16.mxu0 %v468
        %500 = vmatpush1.bf16.msra.mxu0 %v467
        %501 = vmatprep.subr.bf16.mxu0 %v470
        %502 = vmatpush1.bf16.msra.mxu0 %v469
        %503 = vmatprep.subr.bf16.mxu0 %v472
        %504 = vmatpush1.bf16.msra.mxu0 %v471
        %505 = vmatprep.subr.bf16.mxu0 %v474
        %506 = vmatpush1.bf16.msra.mxu0 %v473
        %507 = vmatprep.subr.bf16.mxu0 %v476
        %508 = vmatpush1.bf16.msra.mxu0 %v475
        %509 = vmatprep.subr.bf16.mxu0 0
        %510 = vmatpush1.bf16.msra.mxu0 0
        %511 = vmatprep.subr.bf16.mxu0 0
        %512 = vmatpush1.bf16.msra.mxu0 0
        %513 = vmatprep.subr.bf16.mxu0 0
        %514 = vmatpush1.bf16.msra.mxu0 0
        %515 = vmatprep.subr.bf16.mxu0 0
        %516 = vmatpush1.bf16.msra.mxu0 0
        %517 = vmatprep.subr.bf16.mxu0 0
        %518 = vmatpush1.bf16.msra.mxu0 0
        %519 = vmatprep.subr.bf16.mxu0 0
        %520 = vmatpush1.bf16.msra.mxu0 0
        %521 = vmatprep.subr.bf16.mxu0 0
        %522 = vmatpush1.bf16.msra.mxu0 0
        %523 = vmatprep.subr.bf16.mxu0 0
        %524 = vmatpush1.bf16.msra.mxu0 0
        %525 = vmatprep.mubr.bf16.mxu0 0
        %526 = vmatmul.mubr.bf16.gmra.mrb[0].mxu0 %v353
        %v527 = vpop.f32.mrb[0].mxu0
        %v528 = vadd.f32 %v406, %v527
        %v529 = vpop.f32.mrb[0].mxu0
        %v530 = vadd.f32 %v410, %v529
        %v531 = vpop.f32.mrb[0].mxu0
        %v532 = vadd.f32 %v406, %v531
        %v533 = vpop.f32.mrb[0].mxu0
        %v534 = vadd.f32 %v410, %v533
        %535 = vmatprep.mubr.bf16.mxu0 0
        %536 = vmatmul.mubr.bf16.gmra.mrb[0].mxu0 %v354
        %v537 = vpop.f32.mrb[0].mxu0
        %v538 = vadd.f32 %v406, %v537
        %v539 = vpop.f32.mrb[0].mxu0
        %v540 = vadd.f32 %v410, %v539
        %v541 = vpop.f32.mrb[0].mxu0
        %v542 = vadd.f32 %v406, %v541
        %v543 = vpop.f32.mrb[0].mxu0
        %v544 = vadd.f32 %v410, %v543
        %545 = vmatprep.mubr.bf16.mxu0 0
        %546 = vmatmul.mubr.bf16.gmra.mrb[0].mxu0 %v355
        %v547 = vpop.f32.mrb[0].mxu0
        %v548 = vadd.f32 %v406, %v547
        %v549 = vpop.f32.mrb[0].mxu0
        %v550 = vadd.f32 %v410, %v549
        %v551 = vpop.f32.mrb[0].mxu0
        %v552 = vadd.f32 %v406, %v551
        %v553 = vpop.f32.mrb[0].mxu0
        %v554 = vadd.f32 %v410, %v553
        %555 = vmatprep.mubr.bf16.mxu0 0
        %556 = vmatmul.mubr.bf16.gmra.mrb[0].mxu0 %v356
        %v557 = vpop.f32.mrb[0].mxu0
        %v558 = vadd.f32 %v406, %v557
        %v559 = vpop.f32.mrb[0].mxu0
        %v560 = vadd.f32 %v410, %v559
        %v561 = vpop.f32.mrb[0].mxu0
        %v562 = vadd.f32 %v406, %v561
        %v563 = vpop.f32.mrb[0].mxu0
        %v564 = vadd.f32 %v410, %v563
        %565 = vmatprep.mubr.bf16.mxu0 0
        %566 = vmatmul.mubr.bf16.gmra.mrb[0].mxu0 %v357
        %v567 = vpop.f32.mrb[0].mxu0
        %v568 = vadd.f32 %v406, %v567
        %v569 = vpop.f32.mrb[0].mxu0
        %v570 = vadd.f32 %v410, %v569
        %v571 = vpop.f32.mrb[0].mxu0
        %v572 = vadd.f32 %v406, %v571
        %v573 = vpop.f32.mrb[0].mxu0
        %v574 = vadd.f32 %v410, %v573
        %575 = vmatprep.mubr.bf16.mxu0 0
        %576 = vmatmul.mubr.bf16.gmra.mrb[0].mxu0 %v358
        %v577 = vpop.f32.mrb[0].mxu0
        %v578 = vadd.f32 %v406, %v577
        %v579 = vpop.f32.mrb[0].mxu0
        %v580 = vadd.f32 %v410, %v579
        %v581 = vpop.f32.mrb[0].mxu0
        %v582 = vadd.f32 %v406, %v581
        %v583 = vpop.f32.mrb[0].mxu0
        %v584 = vadd.f32 %v410, %v583
        %585 = vmatprep.mubr.bf16.mxu0 0
        %586 = vmatmul.mubr.bf16.gmra.mrb[0].mxu0 %v359
        %v587 = vpop.f32.mrb[0].mxu0
        %v588 = vadd.f32 %v406, %v587
        %v589 = vpop.f32.mrb[0].mxu0
        %v590 = vadd.f32 %v410, %v589
        %v591 = vpop.f32.mrb[0].mxu0
        %v592 = vadd.f32 %v406, %v591
        %v593 = vpop.f32.mrb[0].mxu0
        %v594 = vadd.f32 %v410, %v593
        %595 = vmatprep.mubr.bf16.mxu0 0
        %596 = vmatmul.mubr.bf16.gmra.mrb[0].mxu0 %v360
        %v597 = vpop.f32.mrb[0].mxu0
        %v598 = vadd.f32 %v406, %v597
        %v599 = vpop.f32.mrb[0].mxu0
        %v600 = vadd.f32 %v410, %v599
        %v601 = vpop.f32.mrb[0].mxu0
        %v602 = vadd.f32 %v406, %v601
        %v603 = vpop.f32.mrb[0].mxu0
        %v604 = vadd.f32 %v410, %v603
        %605 = vmatprep.mubr.bf16.mxu0 0
        %606 = vmatmul.mubr.bf16.gmra.mrb[0].mxu0 %v361
        %v607 = vpop.f32.mrb[0].mxu0
        %v608 = vadd.f32 %v406, %v607
        %v609 = vpop.f32.mrb[0].mxu0
        %v610 = vadd.f32 %v410, %v609
        %v611 = vpop.f32.mrb[0].mxu0
        %v612 = vadd.f32 %v406, %v611
        %v613 = vpop.f32.mrb[0].mxu0
        %v614 = vadd.f32 %v410, %v613
        %615 = vmatprep.mubr.bf16.mxu0 0
        %616 = vmatmul.mubr.bf16.gmra.mrb[0].mxu0 %v362
        %v617 = vpop.f32.mrb[0].mxu0
        %v618 = vadd.f32 %v406, %v617
        %v619 = vpop.f32.mrb[0].mxu0
        %v620 = vadd.f32 %v410, %v619
        %v621 = vpop.f32.mrb[0].mxu0
        %v622 = vadd.f32 %v406, %v621
        %v623 = vpop.f32.mrb[0].mxu0
        %v624 = vadd.f32 %v410, %v623
        %625 = vmatprep.mubr.bf16.mxu0 0
        %626 = vmatmul.mubr.bf16.gmra.mrb[0].mxu0 %v363
        %v627 = vpop.f32.mrb[0].mxu0
        %v628 = vadd.f32 %v406, %v627
        %v629 = vpop.f32.mrb[0].mxu0
        %v630 = vadd.f32 %v410, %v629
        %v631 = vpop.f32.mrb[0].mxu0
        %v632 = vadd.f32 %v406, %v631
        %v633 = vpop.f32.mrb[0].mxu0
        %v634 = vadd.f32 %v410, %v633
        %635 = vmatprep.mubr.bf16.mxu0 0
        %636 = vmatmul.mubr.bf16.gmra.mrb[0].mxu0 %v364
        %v637 = vpop.f32.mrb[0].mxu0
        %v638 = vadd.f32 %v406, %v637
        %v639 = vpop.f32.mrb[0].mxu0
        %v640 = vadd.f32 %v410, %v639
        %v641 = vpop.f32.mrb[0].mxu0
        %v642 = vadd.f32 %v406, %v641
        %v643 = vpop.f32.mrb[0].mxu0
        %v644 = vadd.f32 %v410, %v643
        %645 = vmatprep.mubr.bf16.mxu0 0
        %646 = vmatmul.mubr.bf16.gmra.mrb[0].mxu0 %v365
        %v647 = vpop.f32.mrb[0].mxu0
        %v648 = vadd.f32 %v406, %v647
        %v649 = vpop.f32.mrb[0].mxu0
        %v650 = vadd.f32 %v410, %v649
        %v651 = vpop.f32.mrb[0].mxu0
        %v652 = vadd.f32 %v406, %v651
        %v653 = vpop.f32.mrb[0].mxu0
        %v654 = vadd.f32 %v410, %v653
        %655 = vmatprep.mubr.bf16.mxu0 0
        %656 = vmatmul.mubr.bf16.gmra.mrb[0].mxu0 %v366
        %v657 = vpop.f32.mrb[0].mxu0
        %v658 = vadd.f32 %v406, %v657
        %v659 = vpop.f32.mrb[0].mxu0
        %v660 = vadd.f32 %v410, %v659
        %v661 = vpop.f32.mrb[0].mxu0
        %v662 = vadd.f32 %v406, %v661
        %v663 = vpop.f32.mrb[0].mxu0
        %v664 = vadd.f32 %v410, %v663
        %665 = vmatprep.mubr.bf16.mxu0 0
        %666 = vmatmul.mubr.bf16.gmra.mrb[0].mxu0 %v367
        %v667 = vpop.f32.mrb[0].mxu0
        %v668 = vadd.f32 %v406, %v667
        %v669 = vpop.f32.mrb[0].mxu0
        %v670 = vadd.f32 %v410, %v669
        %v671 = vpop.f32.mrb[0].mxu0
        %v672 = vadd.f32 %v406, %v671
        %v673 = vpop.f32.mrb[0].mxu0
        %v674 = vadd.f32 %v410, %v673
        %675 = vmatprep.mubr.bf16.mxu0 0
        %676 = vmatmul.mubr.bf16.gmra.mrb[0].mxu0 %v368
        %v677 = vpop.f32.mrb[0].mxu0
        %v678 = vadd.f32 %v406, %v677
        %v679 = vpop.f32.mrb[0].mxu0
        %v680 = vadd.f32 %v410, %v679
        %v681 = vpop.f32.mrb[0].mxu0
        %v682 = vadd.f32 %v406, %v681
        %v683 = vpop.f32.mrb[0].mxu0
        %v684 = vadd.f32 %v410, %v683
        %685 = vmatprep.mubr.bf16.mxu0 0
        %686 = vmatmul.mubr.bf16.gmra.mrb[0].mxu0 %v369
        %v687 = vpop.f32.mrb[0].mxu0
        %v688 = vadd.f32 %v406, %v687
        %v689 = vpop.f32.mrb[0].mxu0
        %v690 = vadd.f32 %v410, %v689
        %v691 = vpop.f32.mrb[0].mxu0
        %v692 = vadd.f32 %v406, %v691
        %v693 = vpop.f32.mrb[0].mxu0
        %v694 = vadd.f32 %v410, %v693
        %695 = vmatprep.mubr.bf16.mxu0 0
        %696 = vmatmul.mubr.bf16.gmra.mrb[0].mxu0 %v370
        %v697 = vpop.f32.mrb[0].mxu0
        %v698 = vadd.f32 %v406, %v697
        %v699 = vpop.f32.mrb[0].mxu0
        %v700 = vadd.f32 %v410, %v699
        %v701 = vpop.f32.mrb[0].mxu0
        %v702 = vadd.f32 %v406, %v701
        %v703 = vpop.f32.mrb[0].mxu0
        %v704 = vadd.f32 %v410, %v703
        %705 = vmatprep.mubr.bf16.mxu0 0
        %706 = vmatmul.mubr.bf16.gmra.mrb[0].mxu0 %v371
        %v707 = vpop.f32.mrb[0].mxu0
        %v708 = vadd.f32 %v406, %v707
        %v709 = vpop.f32.mrb[0].mxu0
        %v710 = vadd.f32 %v410, %v709
        %v711 = vpop.f32.mrb[0].mxu0
        %v712 = vadd.f32 %v406, %v711
        %v713 = vpop.f32.mrb[0].mxu0
        %v714 = vadd.f32 %v410, %v713
        %715 = vmatprep.mubr.bf16.mxu0 0
        %716 = vmatmul.mubr.bf16.gmra.mrb[0].mxu0 %v372
        %v717 = vpop.f32.mrb[0].mxu0
        %v718 = vadd.f32 %v406, %v717
        %v719 = vpop.f32.mrb[0].mxu0
        %v720 = vadd.f32 %v410, %v719
        %v721 = vpop.f32.mrb[0].mxu0
        %v722 = vadd.f32 %v406, %v721
        %v723 = vpop.f32.mrb[0].mxu0
        %v724 = vadd.f32 %v410, %v723
        %725 = vmatprep.mubr.bf16.mxu0 0
        %726 = vmatmul.mubr.bf16.gmra.mrb[0].mxu0 %v373
        %v727 = vpop.f32.mrb[0].mxu0
        %v728 = vadd.f32 %v406, %v727
        %v729 = vpop.f32.mrb[0].mxu0
        %v730 = vadd.f32 %v410, %v729
        %v731 = vpop.f32.mrb[0].mxu0
        %v732 = vadd.f32 %v406, %v731
        %v733 = vpop.f32.mrb[0].mxu0
        %v734 = vadd.f32 %v410, %v733
        %735 = vmatprep.mubr.bf16.mxu0 0
        %736 = vmatmul.mubr.bf16.gmra.mrb[0].mxu0 %v374
        %v737 = vpop.f32.mrb[0].mxu0
        %v738 = vadd.f32 %v406, %v737
        %v739 = vpop.f32.mrb[0].mxu0
        %v740 = vadd.f32 %v410, %v739
        %v741 = vpop.f32.mrb[0].mxu0
        %v742 = vadd.f32 %v406, %v741
        %v743 = vpop.f32.mrb[0].mxu0
        %v744 = vadd.f32 %v410, %v743
        %745 = vmatprep.mubr.bf16.mxu0 0
        %746 = vmatmul.mubr.bf16.gmra.mrb[0].mxu0 %v375
        %v747 = vpop.f32.mrb[0].mxu0
        %v748 = vadd.f32 %v406, %v747
        %v749 = vpop.f32.mrb[0].mxu0
        %v750 = vadd.f32 %v410, %v749
        %v751 = vpop.f32.mrb[0].mxu0
        %v752 = vadd.f32 %v406, %v751
        %v753 = vpop.f32.mrb[0].mxu0
        %v754 = vadd.f32 %v410, %v753
        %755 = vmatprep.mubr.bf16.mxu0 0
        %756 = vmatmul.mubr.bf16.gmra.mrb[0].mxu0 %v376
        %v757 = vpop.f32.mrb[0].mxu0
        %v758 = vadd.f32 %v406, %v757
        %v759 = vpop.f32.mrb[0].mxu0
        %v760 = vadd.f32 %v410, %v759
        %v761 = vpop.f32.mrb[0].mxu0
        %v762 = vadd.f32 %v406, %v761
        %v763 = vpop.f32.mrb[0].mxu0
        %v764 = vadd.f32 %v410, %v763
        %765 = vmatprep.mubr.bf16.mxu0 0
        %766 = vmatmul.mubr.bf16.gmra.mrb[0].mxu0 %v377
        %v767 = vpop.f32.mrb[0].mxu0
        %v768 = vadd.f32 %v406, %v767
        %v769 = vpop.f32.mrb[0].mxu0
        %v770 = vadd.f32 %v410, %v769
        %v771 = vpop.f32.mrb[0].mxu0
        %v772 = vadd.f32 %v406, %v771
        %v773 = vpop.f32.mrb[0].mxu0
        %v774 = vadd.f32 %v410, %v773
        %775 = vmatprep.mubr.bf16.mxu0 0
        %776 = vmatmul.mubr.bf16.gmra.mrb[0].mxu0 %v378
        %v777 = vpop.f32.mrb[0].mxu0
        %v778 = vadd.f32 %v406, %v777
        %v779 = vpop.f32.mrb[0].mxu0
        %v780 = vadd.f32 %v410, %v779
        %v781 = vpop.f32.mrb[0].mxu0
        %v782 = vadd.f32 %v406, %v781
        %v783 = vpop.f32.mrb[0].mxu0
        %v784 = vadd.f32 %v410, %v783
        %785 = vmatprep.mubr.bf16.mxu0 0
        %786 = vmatmul.mubr.bf16.gmra.mrb[0].mxu0 %v379
        %v787 = vpop.f32.mrb[0].mxu0
        %v788 = vadd.f32 %v406, %v787
        %v789 = vpop.f32.mrb[0].mxu0
        %v790 = vadd.f32 %v410, %v789
        %v791 = vpop.f32.mrb[0].mxu0
        %v792 = vadd.f32 %v406, %v791
        %v793 = vpop.f32.mrb[0].mxu0
        %v794 = vadd.f32 %v410, %v793
        %795 = vmatprep.mubr.bf16.mxu0 0
        %796 = vmatmul.mubr.bf16.gmra.mrb[0].mxu0 %v380
        %v797 = vpop.f32.mrb[0].mxu0
        %v798 = vadd.f32 %v406, %v797
        %v799 = vpop.f32.mrb[0].mxu0
        %v800 = vadd.f32 %v410, %v799
        %v801 = vpop.f32.mrb[0].mxu0
        %v802 = vadd.f32 %v406, %v801
        %v803 = vpop.f32.mrb[0].mxu0
        %v804 = vadd.f32 %v410, %v803
        %805 = vmatprep.mubr.bf16.mxu0 0
        %806 = vmatmul.mubr.bf16.gmra.mrb[0].mxu0 %v381
        %v807 = vpop.f32.mrb[0].mxu0
        %v808 = vadd.f32 %v406, %v807
        %v809 = vpop.f32.mrb[0].mxu0
        %v810 = vadd.f32 %v410, %v809
        %v811 = vpop.f32.mrb[0].mxu0
        %v812 = vadd.f32 %v406, %v811
        %v813 = vpop.f32.mrb[0].mxu0
        %v814 = vadd.f32 %v410, %v813
        %815 = vmatprep.mubr.bf16.mxu0 0
        %816 = vmatmul.mubr.bf16.gmra.mrb[0].mxu0 %v382
        %v817 = vpop.f32.mrb[0].mxu0
        %v818 = vadd.f32 %v406, %v817
        %v819 = vpop.f32.mrb[0].mxu0
        %v820 = vadd.f32 %v410, %v819
        %v821 = vpop.f32.mrb[0].mxu0
        %v822 = vadd.f32 %v406, %v821
        %v823 = vpop.f32.mrb[0].mxu0
        %v824 = vadd.f32 %v410, %v823
        %825 = vmatprep.mubr.bf16.mxu0 0
        %826 = vmatmul.mubr.bf16.gmra.mrb[0].mxu0 %v383
        %v827 = vpop.f32.mrb[0].mxu0
        %v828 = vadd.f32 %v406, %v827
        %v829 = vpop.f32.mrb[0].mxu0
        %v830 = vadd.f32 %v410, %v829
        %v831 = vpop.f32.mrb[0].mxu0
        %v832 = vadd.f32 %v406, %v831
        %v833 = vpop.f32.mrb[0].mxu0
        %v834 = vadd.f32 %v410, %v833
        %835 = vmatprep.mubr.bf16.mxu0 0
        %836 = vmatmul.mubr.bf16.gmra.mrb[0].mxu0 %v384
        %v837 = vpop.f32.mrb[0].mxu0
        %v838 = vadd.f32 %v406, %v837
        %v839 = vpop.f32.mrb[0].mxu0
        %v840 = vadd.f32 %v410, %v839
        %v841 = vpop.f32.mrb[0].mxu0
        %v842 = vadd.f32 %v406, %v841
        %v843 = vpop.f32.mrb[0].mxu0
        %v844 = vadd.f32 %v410, %v843
        %845 = vdwg.mxu0
        %v846 = vmul.f32 %v528, 0.5
        %v847 = vmul.f32 %v530, 0.5
        %v848 = vmul.f32 %v532, 0.5
        %v849 = vmul.f32 %v534, 0.5
        %v850 = vmul.f32 %v538, 0.5
        %v851 = vmul.f32 %v540, 0.5
        %v852 = vmul.f32 %v542, 0.5
        %v853 = vmul.f32 %v544, 0.5
        %v854 = vmul.f32 %v548, 0.5
        %v855 = vmul.f32 %v550, 0.5
        %v856 = vmul.f32 %v552, 0.5
        %v857 = vmul.f32 %v554, 0.5
        %v858 = vmul.f32 %v558, 0.5
        %v859 = vmul.f32 %v560, 0.5
        %v860 = vmul.f32 %v562, 0.5
        %v861 = vmul.f32 %v564, 0.5
        %v862 = vmul.f32 %v568, 0.5
        %v863 = vmul.f32 %v570, 0.5
        %v864 = vmul.f32 %v572, 0.5
        %v865 = vmul.f32 %v574, 0.5
        %v866 = vmul.f32 %v578, 0.5
        %v867 = vmul.f32 %v580, 0.5
        %v868 = vmul.f32 %v582, 0.5
        %v869 = vmul.f32 %v584, 0.5
        %v870 = vmul.f32 %v588, 0.5
        %v871 = vmul.f32 %v590, 0.5
        %v872 = vmul.f32 %v592, 0.5
        %v873 = vmul.f32 %v594, 0.5
        %v874 = vmul.f32 %v598, 0.5
        %v875 = vmul.f32 %v600, 0.5
        %v876 = vmul.f32 %v602, 0.5
        %v877 = vmul.f32 %v604, 0.5
        %v878 = vmul.f32 %v608, 0.5
        %v879 = vmul.f32 %v610, 0.5
        %v880 = vmul.f32 %v612, 0.5
        %v881 = vmul.f32 %v614, 0.5
        %v882 = vmul.f32 %v618, 0.5
        %v883 = vmul.f32 %v620, 0.5
        %v884 = vmul.f32 %v622, 0.5
        %v885 = vmul.f32 %v624, 0.5
        %v886 = vmul.f32 %v628, 0.5
        %v887 = vmul.f32 %v630, 0.5
        %v888 = vmul.f32 %v632, 0.5
        %v889 = vmul.f32 %v634, 0.5
        %v890 = vmul.f32 %v638, 0.5
        %v891 = vmul.f32 %v640, 0.5
        %v892 = vmul.f32 %v642, 0.5
        %v893 = vmul.f32 %v644, 0.5
        %v894 = vmul.f32 %v648, 0.5
        %v895 = vmul.f32 %v650, 0.5
        %v896 = vmul.f32 %v652, 0.5
        %v897 = vmul.f32 %v654, 0.5
        %v898 = vmul.f32 %v658, 0.5
        %v899 = vmul.f32 %v660, 0.5
        %v900 = vmul.f32 %v662, 0.5
        %v901 = vmul.f32 %v664, 0.5
        %v902 = vmul.f32 %v668, 0.5
        %v903 = vmul.f32 %v670, 0.5
        %v904 = vmul.f32 %v672, 0.5
        %v905 = vmul.f32 %v674, 0.5
        %v906 = vmul.f32 %v678, 0.5
        %v907 = vmul.f32 %v680, 0.5
        %v908 = vmul.f32 %v682, 0.5
        %v909 = vmul.f32 %v684, 0.5
        %v910 = vmul.f32 %v688, 0.5
        %v911 = vmul.f32 %v690, 0.5
        %v912 = vmul.f32 %v692, 0.5
        %v913 = vmul.f32 %v694, 0.5
        %v914 = vmul.f32 %v698, 0.5
        %v915 = vmul.f32 %v700, 0.5
        %v916 = vmul.f32 %v702, 0.5
        %v917 = vmul.f32 %v704, 0.5
        %v918 = vmul.f32 %v708, 0.5
        %v919 = vmul.f32 %v710, 0.5
        %v920 = vmul.f32 %v712, 0.5
        %v921 = vmul.f32 %v714, 0.5
        %v922 = vmul.f32 %v718, 0.5
        %v923 = vmul.f32 %v720, 0.5
        %v924 = vmul.f32 %v722, 0.5
        %v925 = vmul.f32 %v724, 0.5
        %v926 = vmul.f32 %v728, 0.5
        %v927 = vmul.f32 %v730, 0.5
        %v928 = vmul.f32 %v732, 0.5
        %v929 = vmul.f32 %v734, 0.5
        %v930 = vmul.f32 %v738, 0.5
        %v931 = vmul.f32 %v740, 0.5
        %v932 = vmul.f32 %v742, 0.5
        %v933 = vmul.f32 %v744, 0.5
        %v934 = vmul.f32 %v748, 0.5
        %v935 = vmul.f32 %v750, 0.5
        %v936 = vmul.f32 %v752, 0.5
        %v937 = vmul.f32 %v754, 0.5
        %v938 = vmul.f32 %v758, 0.5
        %v939 = vmul.f32 %v760, 0.5
        %v940 = vmul.f32 %v762, 0.5
        %v941 = vmul.f32 %v764, 0.5
        %v942 = vmul.f32 %v768, 0.5
        %v943 = vmul.f32 %v770, 0.5
        %v944 = vmul.f32 %v772, 0.5
        %v945 = vmul.f32 %v774, 0.5
        %v946 = vmul.f32 %v778, 0.5
        %v947 = vmul.f32 %v780, 0.5
        %v948 = vmul.f32 %v782, 0.5
        %v949 = vmul.f32 %v784, 0.5
        %v950 = vmul.f32 %v788, 0.5
        %v951 = vmul.f32 %v790, 0.5
        %v952 = vmul.f32 %v792, 0.5
        %v953 = vmul.f32 %v794, 0.5
        %v954 = vmul.f32 %v798, 0.5
        %v955 = vmul.f32 %v800, 0.5
        %v956 = vmul.f32 %v802, 0.5
        %v957 = vmul.f32 %v804, 0.5
        %v958 = vmul.f32 %v808, 0.5
        %v959 = vmul.f32 %v810, 0.5
        %v960 = vmul.f32 %v812, 0.5
        %v961 = vmul.f32 %v814, 0.5
        %v962 = vmul.f32 %v818, 0.5
        %v963 = vmul.f32 %v820, 0.5
        %v964 = vmul.f32 %v822, 0.5
        %v965 = vmul.f32 %v824, 0.5
        %v966 = vmul.f32 %v828, 0.5
        %v967 = vmul.f32 %v830, 0.5
        %v968 = vmul.f32 %v832, 0.5
        %v969 = vmul.f32 %v834, 0.5
        %v970 = vmul.f32 %v838, 0.5
        %v971 = vmul.f32 %v840, 0.5
        %v972 = vmul.f32 %v842, 0.5
        %v973 = vmul.f32 %v844, 0.5
        %v974 = vmul.f32 %v528, 0.044715
        %v975 = vmul.f32 %v530, 0.044715
        %v976 = vmul.f32 %v532, 0.044715
        %v977 = vmul.f32 %v534, 0.044715
        %v978 = vmul.f32 %v538, 0.044715
        %v979 = vmul.f32 %v540, 0.044715
        %v980 = vmul.f32 %v542, 0.044715
        %v981 = vmul.f32 %v544, 0.044715
        %v982 = vmul.f32 %v548, 0.044715
        %v983 = vmul.f32 %v550, 0.044715
        %v984 = vmul.f32 %v552, 0.044715
        %v985 = vmul.f32 %v554, 0.044715
        %v986 = vmul.f32 %v558, 0.044715
        %v987 = vmul.f32 %v560, 0.044715
        %v988 = vmul.f32 %v562, 0.044715
        %v989 = vmul.f32 %v564, 0.044715
        %v990 = vmul.f32 %v568, 0.044715
        %v991 = vmul.f32 %v570, 0.044715
        %v992 = vmul.f32 %v572, 0.044715
        %v993 = vmul.f32 %v574, 0.044715
        %v994 = vmul.f32 %v578, 0.044715
        %v995 = vmul.f32 %v580, 0.044715
        %v996 = vmul.f32 %v582, 0.044715
        %v997 = vmul.f32 %v584, 0.044715
        %v998 = vmul.f32 %v588, 0.044715
        %v999 = vmul.f32 %v590, 0.044715
        %v1000 = vmul.f32 %v592, 0.044715
        %v1001 = vmul.f32 %v594, 0.044715
        %v1002 = vmul.f32 %v598, 0.044715
        %v1003 = vmul.f32 %v600, 0.044715
        %v1004 = vmul.f32 %v602, 0.044715
        %v1005 = vmul.f32 %v604, 0.044715
        %v1006 = vmul.f32 %v608, 0.044715
        %v1007 = vmul.f32 %v610, 0.044715
        %v1008 = vmul.f32 %v612, 0.044715
        %v1009 = vmul.f32 %v614, 0.044715
        %v1010 = vmul.f32 %v618, 0.044715
        %v1011 = vmul.f32 %v620, 0.044715
        %v1012 = vmul.f32 %v622, 0.044715
        %v1013 = vmul.f32 %v624, 0.044715
        %v1014 = vmul.f32 %v628, 0.044715
        %v1015 = vmul.f32 %v630, 0.044715
        %v1016 = vmul.f32 %v632, 0.044715
        %v1017 = vmul.f32 %v634, 0.044715
        %v1018 = vmul.f32 %v638, 0.044715
        %v1019 = vmul.f32 %v640, 0.044715
        %v1020 = vmul.f32 %v642, 0.044715
        %v1021 = vmul.f32 %v644, 0.044715
        %v1022 = vmul.f32 %v648, 0.044715
        %v1023 = vmul.f32 %v650, 0.044715
        %v1024 = vmul.f32 %v652, 0.044715
        %v1025 = vmul.f32 %v654, 0.044715
        %v1026 = vmul.f32 %v658, 0.044715
        %v1027 = vmul.f32 %v660, 0.044715
        %v1028 = vmul.f32 %v662, 0.044715
        %v1029 = vmul.f32 %v664, 0.044715
        %v1030 = vmul.f32 %v668, 0.044715
        %v1031 = vmul.f32 %v670, 0.044715
        %v1032 = vmul.f32 %v672, 0.044715
        %v1033 = vmul.f32 %v674, 0.044715
        %v1034 = vmul.f32 %v678, 0.044715
        %v1035 = vmul.f32 %v680, 0.044715
        %v1036 = vmul.f32 %v682, 0.044715
        %v1037 = vmul.f32 %v684, 0.044715
        %v1038 = vmul.f32 %v688, 0.044715
        %v1039 = vmul.f32 %v690, 0.044715
        %v1040 = vmul.f32 %v692, 0.044715
        %v1041 = vmul.f32 %v694, 0.044715
        %v1042 = vmul.f32 %v698, 0.044715
        %v1043 = vmul.f32 %v700, 0.044715
        %v1044 = vmul.f32 %v702, 0.044715
        %v1045 = vmul.f32 %v704, 0.044715
        %v1046 = vmul.f32 %v708, 0.044715
        %v1047 = vmul.f32 %v710, 0.044715
        %v1048 = vmul.f32 %v712, 0.044715
        %v1049 = vmul.f32 %v714, 0.044715
        %v1050 = vmul.f32 %v718, 0.044715
        %v1051 = vmul.f32 %v720, 0.044715
        %v1052 = vmul.f32 %v722, 0.044715
        %v1053 = vmul.f32 %v724, 0.044715
        %v1054 = vmul.f32 %v728, 0.044715
        %v1055 = vmul.f32 %v730, 0.044715
        %v1056 = vmul.f32 %v732, 0.044715
        %v1057 = vmul.f32 %v734, 0.044715
        %v1058 = vmul.f32 %v738, 0.044715
        %v1059 = vmul.f32 %v740, 0.044715
        %v1060 = vmul.f32 %v742, 0.044715
        %v1061 = vmul.f32 %v744, 0.044715
        %v1062 = vmul.f32 %v748, 0.044715
        %v1063 = vmul.f32 %v750, 0.044715
        %v1064 = vmul.f32 %v752, 0.044715
        %v1065 = vmul.f32 %v754, 0.044715
        %v1066 = vmul.f32 %v758, 0.044715
        %v1067 = vmul.f32 %v760, 0.044715
        %v1068 = vmul.f32 %v762, 0.044715
        %v1069 = vmul.f32 %v764, 0.044715
        %v1070 = vmul.f32 %v768, 0.044715
        %v1071 = vmul.f32 %v770, 0.044715
        %v1072 = vmul.f32 %v772, 0.044715
        %v1073 = vmul.f32 %v774, 0.044715
        %v1074 = vmul.f32 %v778, 0.044715
        %v1075 = vmul.f32 %v780, 0.044715
        %v1076 = vmul.f32 %v782, 0.044715
        %v1077 = vmul.f32 %v784, 0.044715
        %v1078 = vmul.f32 %v788, 0.044715
        %v1079 = vmul.f32 %v790, 0.044715
        %v1080 = vmul.f32 %v792, 0.044715
        %v1081 = vmul.f32 %v794, 0.044715
        %v1082 = vmul.f32 %v798, 0.044715
        %v1083 = vmul.f32 %v800, 0.044715
        %v1084 = vmul.f32 %v802, 0.044715
        %v1085 = vmul.f32 %v804, 0.044715
        %v1086 = vmul.f32 %v808, 0.044715
        %v1087 = vmul.f32 %v810, 0.044715
        %v1088 = vmul.f32 %v812, 0.044715
        %v1089 = vmul.f32 %v814, 0.044715
        %v1090 = vmul.f32 %v818, 0.044715
        %v1091 = vmul.f32 %v820, 0.044715
        %v1092 = vmul.f32 %v822, 0.044715
        %v1093 = vmul.f32 %v824, 0.044715
        %v1094 = vmul.f32 %v828, 0.044715
        %v1095 = vmul.f32 %v830, 0.044715
        %v1096 = vmul.f32 %v832, 0.044715
        %v1097 = vmul.f32 %v834, 0.044715
        %v1098 = vmul.f32 %v838, 0.044715
        %v1099 = vmul.f32 %v840, 0.044715
        %v1100 = vmul.f32 %v842, 0.044715
        %v1101 = vmul.f32 %v844, 0.044715
        %v1102 = vmul.f32 %v974, %v528
        %v1103 = vmul.f32 %v975, %v530
        %v1104 = vmul.f32 %v976, %v532
        %v1105 = vmul.f32 %v977, %v534
        %v1106 = vmul.f32 %v978, %v538
        %v1107 = vmul.f32 %v979, %v540
        %v1108 = vmul.f32 %v980, %v542
        %v1109 = vmul.f32 %v981, %v544
        %v1110 = vmul.f32 %v982, %v548
        %v1111 = vmul.f32 %v983, %v550
        %v1112 = vmul.f32 %v984, %v552
        %v1113 = vmul.f32 %v985, %v554
        %v1114 = vmul.f32 %v986, %v558
        %v1115 = vmul.f32 %v987, %v560
        %v1116 = vmul.f32 %v988, %v562
        %v1117 = vmul.f32 %v989, %v564
        %v1118 = vmul.f32 %v990, %v568
        %v1119 = vmul.f32 %v991, %v570
        %v1120 = vmul.f32 %v992, %v572
        %v1121 = vmul.f32 %v993, %v574
        %v1122 = vmul.f32 %v994, %v578
        %v1123 = vmul.f32 %v995, %v580
        %v1124 = vmul.f32 %v996, %v582
        %v1125 = vmul.f32 %v997, %v584
        %v1126 = vmul.f32 %v998, %v588
        %v1127 = vmul.f32 %v999, %v590
        %v1128 = vmul.f32 %v1000, %v592
        %v1129 = vmul.f32 %v1001, %v594
        %v1130 = vmul.f32 %v1002, %v598
        %v1131 = vmul.f32 %v1003, %v600
        %v1132 = vmul.f32 %v1004, %v602
        %v1133 = vmul.f32 %v1005, %v604
        %v1134 = vmul.f32 %v1006, %v608
        %v1135 = vmul.f32 %v1007, %v610
        %v1136 = vmul.f32 %v1008, %v612
        %v1137 = vmul.f32 %v1009, %v614
        %v1138 = vmul.f32 %v1010, %v618
        %v1139 = vmul.f32 %v1011, %v620
        %v1140 = vmul.f32 %v1012, %v622
        %v1141 = vmul.f32 %v1013, %v624
        %v1142 = vmul.f32 %v1014, %v628
        %v1143 = vmul.f32 %v1015, %v630
        %v1144 = vmul.f32 %v1016, %v632
        %v1145 = vmul.f32 %v1017, %v634
        %v1146 = vmul.f32 %v1018, %v638
        %v1147 = vmul.f32 %v1019, %v640
        %v1148 = vmul.f32 %v1020, %v642
        %v1149 = vmul.f32 %v1021, %v644
        %v1150 = vmul.f32 %v1022, %v648
        %v1151 = vmul.f32 %v1023, %v650
        %v1152 = vmul.f32 %v1024, %v652
        %v1153 = vmul.f32 %v1025, %v654
        %v1154 = vmul.f32 %v1026, %v658
        %v1155 = vmul.f32 %v1027, %v660
        %v1156 = vmul.f32 %v1028, %v662
        %v1157 = vmul.f32 %v1029, %v664
        %v1158 = vmul.f32 %v1030, %v668
        %v1159 = vmul.f32 %v1031, %v670
        %v1160 = vmul.f32 %v1032, %v672
        %v1161 = vmul.f32 %v1033, %v674
        %v1162 = vmul.f32 %v1034, %v678
        %v1163 = vmul.f32 %v1035, %v680
        %v1164 = vmul.f32 %v1036, %v682
        %v1165 = vmul.f32 %v1037, %v684
        %v1166 = vmul.f32 %v1038, %v688
        %v1167 = vmul.f32 %v1039, %v690
        %v1168 = vmul.f32 %v1040, %v692
        %v1169 = vmul.f32 %v1041, %v694
        %v1170 = vmul.f32 %v1042, %v698
        %v1171 = vmul.f32 %v1043, %v700
        %v1172 = vmul.f32 %v1044, %v702
        %v1173 = vmul.f32 %v1045, %v704
        %v1174 = vmul.f32 %v1046, %v708
        %v1175 = vmul.f32 %v1047, %v710
        %v1176 = vmul.f32 %v1048, %v712
        %v1177 = vmul.f32 %v1049, %v714
        %v1178 = vmul.f32 %v1050, %v718
        %v1179 = vmul.f32 %v1051, %v720
        %v1180 = vmul.f32 %v1052, %v722
        %v1181 = vmul.f32 %v1053, %v724
        %v1182 = vmul.f32 %v1054, %v728
        %v1183 = vmul.f32 %v1055, %v730
        %v1184 = vmul.f32 %v1056, %v732
        %v1185 = vmul.f32 %v1057, %v734
        %v1186 = vmul.f32 %v1058, %v738
        %v1187 = vmul.f32 %v1059, %v740
        %v1188 = vmul.f32 %v1060, %v742
        %v1189 = vmul.f32 %v1061, %v744
        %v1190 = vmul.f32 %v1062, %v748
        %v1191 = vmul.f32 %v1063, %v750
        %v1192 = vmul.f32 %v1064, %v752
        %v1193 = vmul.f32 %v1065, %v754
        %v1194 = vmul.f32 %v1066, %v758
        %v1195 = vmul.f32 %v1067, %v760
        %v1196 = vmul.f32 %v1068, %v762
        %v1197 = vmul.f32 %v1069, %v764
        %v1198 = vmul.f32 %v1070, %v768
        %v1199 = vmul.f32 %v1071, %v770
        %v1200 = vmul.f32 %v1072, %v772
        %v1201 = vmul.f32 %v1073, %v774
        %v1202 = vmul.f32 %v1074, %v778
        %v1203 = vmul.f32 %v1075, %v780
        %v1204 = vmul.f32 %v1076, %v782
        %v1205 = vmul.f32 %v1077, %v784
        %v1206 = vmul.f32 %v1078, %v788
        %v1207 = vmul.f32 %v1079, %v790
        %v1208 = vmul.f32 %v1080, %v792
        %v1209 = vmul.f32 %v1081, %v794
        %v1210 = vmul.f32 %v1082, %v798
        %v1211 = vmul.f32 %v1083, %v800
        %v1212 = vmul.f32 %v1084, %v802
        %v1213 = vmul.f32 %v1085, %v804
        %v1214 = vmul.f32 %v1086, %v808
        %v1215 = vmul.f32 %v1087, %v810
        %v1216 = vmul.f32 %v1088, %v812
        %v1217 = vmul.f32 %v1089, %v814
        %v1218 = vmul.f32 %v1090, %v818
        %v1219 = vmul.f32 %v1091, %v820
        %v1220 = vmul.f32 %v1092, %v822
        %v1221 = vmul.f32 %v1093, %v824
        %v1222 = vmul.f32 %v1094, %v828
        %v1223 = vmul.f32 %v1095, %v830
        %v1224 = vmul.f32 %v1096, %v832
        %v1225 = vmul.f32 %v1097, %v834
        %v1226 = vmul.f32 %v1098, %v838
        %v1227 = vmul.f32 %v1099, %v840
        %v1228 = vmul.f32 %v1100, %v842
        %v1229 = vmul.f32 %v1101, %v844
        %v1230 = vmul.f32 %v1102, %v528
        %v1231 = vmul.f32 %v1103, %v530
        %v1232 = vmul.f32 %v1104, %v532
        %v1233 = vmul.f32 %v1105, %v534
        %v1234 = vmul.f32 %v1106, %v538
        %v1235 = vmul.f32 %v1107, %v540
        %v1236 = vmul.f32 %v1108, %v542
        %v1237 = vmul.f32 %v1109, %v544
        %v1238 = vmul.f32 %v1110, %v548
        %v1239 = vmul.f32 %v1111, %v550
        %v1240 = vmul.f32 %v1112, %v552
        %v1241 = vmul.f32 %v1113, %v554
        %v1242 = vmul.f32 %v1114, %v558
        %v1243 = vmul.f32 %v1115, %v560
        %v1244 = vmul.f32 %v1116, %v562
        %v1245 = vmul.f32 %v1117, %v564
        %v1246 = vmul.f32 %v1118, %v568
        %v1247 = vmul.f32 %v1119, %v570
        %v1248 = vmul.f32 %v1120, %v572
        %v1249 = vmul.f32 %v1121, %v574
        %v1250 = vmul.f32 %v1122, %v578
        %v1251 = vmul.f32 %v1123, %v580
        %v1252 = vmul.f32 %v1124, %v582
        %v1253 = vmul.f32 %v1125, %v584
        %v1254 = vmul.f32 %v1126, %v588
        %v1255 = vmul.f32 %v1127, %v590
        %v1256 = vmul.f32 %v1128, %v592
        %v1257 = vmul.f32 %v1129, %v594
        %v1258 = vmul.f32 %v1130, %v598
        %v1259 = vmul.f32 %v1131, %v600
        %v1260 = vmul.f32 %v1132, %v602
        %v1261 = vmul.f32 %v1133, %v604
        %v1262 = vmul.f32 %v1134, %v608
        %v1263 = vmul.f32 %v1135, %v610
        %v1264 = vmul.f32 %v1136, %v612
        %v1265 = vmul.f32 %v1137, %v614
        %v1266 = vmul.f32 %v1138, %v618
        %v1267 = vmul.f32 %v1139, %v620
        %v1268 = vmul.f32 %v1140, %v622
        %v1269 = vmul.f32 %v1141, %v624
        %v1270 = vmul.f32 %v1142, %v628
        %v1271 = vmul.f32 %v1143, %v630
        %v1272 = vmul.f32 %v1144, %v632
        %v1273 = vmul.f32 %v1145, %v634
        %v1274 = vmul.f32 %v1146, %v638
        %v1275 = vmul.f32 %v1147, %v640
        %v1276 = vmul.f32 %v1148, %v642
        %v1277 = vmul.f32 %v1149, %v644
        %v1278 = vmul.f32 %v1150, %v648
        %v1279 = vmul.f32 %v1151, %v650
        %v1280 = vmul.f32 %v1152, %v652
        %v1281 = vmul.f32 %v1153, %v654
        %v1282 = vmul.f32 %v1154, %v658
        %v1283 = vmul.f32 %v1155, %v660
        %v1284 = vmul.f32 %v1156, %v662
        %v1285 = vmul.f32 %v1157, %v664
        %v1286 = vmul.f32 %v1158, %v668
        %v1287 = vmul.f32 %v1159, %v670
        %v1288 = vmul.f32 %v1160, %v672
        %v1289 = vmul.f32 %v1161, %v674
        %v1290 = vmul.f32 %v1162, %v678
        %v1291 = vmul.f32 %v1163, %v680
        %v1292 = vmul.f32 %v1164, %v682
        %v1293 = vmul.f32 %v1165, %v684
        %v1294 = vmul.f32 %v1166, %v688
        %v1295 = vmul.f32 %v1167, %v690
        %v1296 = vmul.f32 %v1168, %v692
        %v1297 = vmul.f32 %v1169, %v694
        %v1298 = vmul.f32 %v1170, %v698
        %v1299 = vmul.f32 %v1171, %v700
        %v1300 = vmul.f32 %v1172, %v702
        %v1301 = vmul.f32 %v1173, %v704
        %v1302 = vmul.f32 %v1174, %v708
        %v1303 = vmul.f32 %v1175, %v710
        %v1304 = vmul.f32 %v1176, %v712
        %v1305 = vmul.f32 %v1177, %v714
        %v1306 = vmul.f32 %v1178, %v718
        %v1307 = vmul.f32 %v1179, %v720
        %v1308 = vmul.f32 %v1180, %v722
        %v1309 = vmul.f32 %v1181, %v724
        %v1310 = vmul.f32 %v1182, %v728
        %v1311 = vmul.f32 %v1183, %v730
        %v1312 = vmul.f32 %v1184, %v732
        %v1313 = vmul.f32 %v1185, %v734
        %v1314 = vmul.f32 %v1186, %v738
        %v1315 = vmul.f32 %v1187, %v740
        %v1316 = vmul.f32 %v1188, %v742
        %v1317 = vmul.f32 %v1189, %v744
        %v1318 = vmul.f32 %v1190, %v748
        %v1319 = vmul.f32 %v1191, %v750
        %v1320 = vmul.f32 %v1192, %v752
        %v1321 = vmul.f32 %v1193, %v754
        %v1322 = vmul.f32 %v1194, %v758
        %v1323 = vmul.f32 %v1195, %v760
        %v1324 = vmul.f32 %v1196, %v762
        %v1325 = vmul.f32 %v1197, %v764
        %v1326 = vmul.f32 %v1198, %v768
        %v1327 = vmul.f32 %v1199, %v770
        %v1328 = vmul.f32 %v1200, %v772
        %v1329 = vmul.f32 %v1201, %v774
        %v1330 = vmul.f32 %v1202, %v778
        %v1331 = vmul.f32 %v1203, %v780
        %v1332 = vmul.f32 %v1204, %v782
        %v1333 = vmul.f32 %v1205, %v784
        %v1334 = vmul.f32 %v1206, %v788
        %v1335 = vmul.f32 %v1207, %v790
        %v1336 = vmul.f32 %v1208, %v792
        %v1337 = vmul.f32 %v1209, %v794
        %v1338 = vmul.f32 %v1210, %v798
        %v1339 = vmul.f32 %v1211, %v800
        %v1340 = vmul.f32 %v1212, %v802
        %v1341 = vmul.f32 %v1213, %v804
        %v1342 = vmul.f32 %v1214, %v808
        %v1343 = vmul.f32 %v1215, %v810
        %v1344 = vmul.f32 %v1216, %v812
        %v1345 = vmul.f32 %v1217, %v814
        %v1346 = vmul.f32 %v1218, %v818
        %v1347 = vmul.f32 %v1219, %v820
        %v1348 = vmul.f32 %v1220, %v822
        %v1349 = vmul.f32 %v1221, %v824
        %v1350 = vmul.f32 %v1222, %v828
        %v1351 = vmul.f32 %v1223, %v830
        %v1352 = vmul.f32 %v1224, %v832
        %v1353 = vmul.f32 %v1225, %v834
        %v1354 = vmul.f32 %v1226, %v838
        %v1355 = vmul.f32 %v1227, %v840
        %v1356 = vmul.f32 %v1228, %v842
        %v1357 = vmul.f32 %v1229, %v844
        %v1358 = vadd.f32 %v528, %v1230
        %v1359 = vadd.f32 %v530, %v1231
        %v1360 = vadd.f32 %v532, %v1232
        %v1361 = vadd.f32 %v534, %v1233
        %v1362 = vadd.f32 %v538, %v1234
        %v1363 = vadd.f32 %v540, %v1235
        %v1364 = vadd.f32 %v542, %v1236
        %v1365 = vadd.f32 %v544, %v1237
        %v1366 = vadd.f32 %v548, %v1238
        %v1367 = vadd.f32 %v550, %v1239
        %v1368 = vadd.f32 %v552, %v1240
        %v1369 = vadd.f32 %v554, %v1241
        %v1370 = vadd.f32 %v558, %v1242
        %v1371 = vadd.f32 %v560, %v1243
        %v1372 = vadd.f32 %v562, %v1244
        %v1373 = vadd.f32 %v564, %v1245
        %v1374 = vadd.f32 %v568, %v1246
        %v1375 = vadd.f32 %v570, %v1247
        %v1376 = vadd.f32 %v572, %v1248
        %v1377 = vadd.f32 %v574, %v1249
        %v1378 = vadd.f32 %v578, %v1250
        %v1379 = vadd.f32 %v580, %v1251
        %v1380 = vadd.f32 %v582, %v1252
        %v1381 = vadd.f32 %v584, %v1253
        %v1382 = vadd.f32 %v588, %v1254
        %v1383 = vadd.f32 %v590, %v1255
        %v1384 = vadd.f32 %v592, %v1256
        %v1385 = vadd.f32 %v594, %v1257
        %v1386 = vadd.f32 %v598, %v1258
        %v1387 = vadd.f32 %v600, %v1259
        %v1388 = vadd.f32 %v602, %v1260
        %v1389 = vadd.f32 %v604, %v1261
        %v1390 = vadd.f32 %v608, %v1262
        %v1391 = vadd.f32 %v610, %v1263
        %v1392 = vadd.f32 %v612, %v1264
        %v1393 = vadd.f32 %v614, %v1265
        %v1394 = vadd.f32 %v618, %v1266
        %v1395 = vadd.f32 %v620, %v1267
        %v1396 = vadd.f32 %v622, %v1268
        %v1397 = vadd.f32 %v624, %v1269
        %v1398 = vadd.f32 %v628, %v1270
        %v1399 = vadd.f32 %v630, %v1271
        %v1400 = vadd.f32 %v632, %v1272
        %v1401 = vadd.f32 %v634, %v1273
        %v1402 = vadd.f32 %v638, %v1274
        %v1403 = vadd.f32 %v640, %v1275
        %v1404 = vadd.f32 %v642, %v1276
        %v1405 = vadd.f32 %v644, %v1277
        %v1406 = vadd.f32 %v648, %v1278
        %v1407 = vadd.f32 %v650, %v1279
        %v1408 = vadd.f32 %v652, %v1280
        %v1409 = vadd.f32 %v654, %v1281
        %v1410 = vadd.f32 %v658, %v1282
        %v1411 = vadd.f32 %v660, %v1283
        %v1412 = vadd.f32 %v662, %v1284
        %v1413 = vadd.f32 %v664, %v1285
        %v1414 = vadd.f32 %v668, %v1286
        %v1415 = vadd.f32 %v670, %v1287
        %v1416 = vadd.f32 %v672, %v1288
        %v1417 = vadd.f32 %v674, %v1289
        %v1418 = vadd.f32 %v678, %v1290
        %v1419 = vadd.f32 %v680, %v1291
        %v1420 = vadd.f32 %v682, %v1292
        %v1421 = vadd.f32 %v684, %v1293
        %v1422 = vadd.f32 %v688, %v1294
        %v1423 = vadd.f32 %v690, %v1295
        %v1424 = vadd.f32 %v692, %v1296
        %v1425 = vadd.f32 %v694, %v1297
        %v1426 = vadd.f32 %v698, %v1298
        %v1427 = vadd.f32 %v700, %v1299
        %v1428 = vadd.f32 %v702, %v1300
        %v1429 = vadd.f32 %v704, %v1301
        %v1430 = vadd.f32 %v708, %v1302
        %v1431 = vadd.f32 %v710, %v1303
        %v1432 = vadd.f32 %v712, %v1304
        %v1433 = vadd.f32 %v714, %v1305
        %v1434 = vadd.f32 %v718, %v1306
        %v1435 = vadd.f32 %v720, %v1307
        %v1436 = vadd.f32 %v722, %v1308
        %v1437 = vadd.f32 %v724, %v1309
        %v1438 = vadd.f32 %v728, %v1310
        %v1439 = vadd.f32 %v730, %v1311
        %v1440 = vadd.f32 %v732, %v1312
        %v1441 = vadd.f32 %v734, %v1313
        %v1442 = vadd.f32 %v738, %v1314
        %v1443 = vadd.f32 %v740, %v1315
        %v1444 = vadd.f32 %v742, %v1316
        %v1445 = vadd.f32 %v744, %v1317
        %v1446 = vadd.f32 %v748, %v1318
        %v1447 = vadd.f32 %v750, %v1319
        %v1448 = vadd.f32 %v752, %v1320
        %v1449 = vadd.f32 %v754, %v1321
        %v1450 = vadd.f32 %v758, %v1322
        %v1451 = vadd.f32 %v760, %v1323
        %v1452 = vadd.f32 %v762, %v1324
        %v1453 = vadd.f32 %v764, %v1325
        %v1454 = vadd.f32 %v768, %v1326
        %v1455 = vadd.f32 %v770, %v1327
        %v1456 = vadd.f32 %v772, %v1328
        %v1457 = vadd.f32 %v774, %v1329
        %v1458 = vadd.f32 %v778, %v1330
        %v1459 = vadd.f32 %v780, %v1331
        %v1460 = vadd.f32 %v782, %v1332
        %v1461 = vadd.f32 %v784, %v1333
        %v1462 = vadd.f32 %v788, %v1334
        %v1463 = vadd.f32 %v790, %v1335
        %v1464 = vadd.f32 %v792, %v1336
        %v1465 = vadd.f32 %v794, %v1337
        %v1466 = vadd.f32 %v798, %v1338
        %v1467 = vadd.f32 %v800, %v1339
        %v1468 = vadd.f32 %v802, %v1340
        %v1469 = vadd.f32 %v804, %v1341
        %v1470 = vadd.f32 %v808, %v1342
        %v1471 = vadd.f32 %v810, %v1343
        %v1472 = vadd.f32 %v812, %v1344
        %v1473 = vadd.f32 %v814, %v1345
        %v1474 = vadd.f32 %v818, %v1346
        %v1475 = vadd.f32 %v820, %v1347
        %v1476 = vadd.f32 %v822, %v1348
        %v1477 = vadd.f32 %v824, %v1349
        %v1478 = vadd.f32 %v828, %v1350
        %v1479 = vadd.f32 %v830, %v1351
        %v1480 = vadd.f32 %v832, %v1352
        %v1481 = vadd.f32 %v834, %v1353
        %v1482 = vadd.f32 %v838, %v1354
        %v1483 = vadd.f32 %v840, %v1355
        %v1484 = vadd.f32 %v842, %v1356
        %v1485 = vadd.f32 %v844, %v1357
        %v1486 = vmul.f32 %v1358, 0.7978846
        %v1487 = vmul.f32 %v1359, 0.7978846
        %v1488 = vmul.f32 %v1360, 0.7978846
        %v1489 = vmul.f32 %v1361, 0.7978846
        %v1490 = vmul.f32 %v1362, 0.7978846
        %v1491 = vmul.f32 %v1363, 0.7978846
        %v1492 = vmul.f32 %v1364, 0.7978846
        %v1493 = vmul.f32 %v1365, 0.7978846
        %v1494 = vmul.f32 %v1366, 0.7978846
        %v1495 = vmul.f32 %v1367, 0.7978846
        %v1496 = vmul.f32 %v1368, 0.7978846
        %v1497 = vmul.f32 %v1369, 0.7978846
        %v1498 = vmul.f32 %v1370, 0.7978846
        %v1499 = vmul.f32 %v1371, 0.7978846
        %v1500 = vmul.f32 %v1372, 0.7978846
        %v1501 = vmul.f32 %v1373, 0.7978846
        %v1502 = vmul.f32 %v1374, 0.7978846
        %v1503 = vmul.f32 %v1375, 0.7978846
        %v1504 = vmul.f32 %v1376, 0.7978846
        %v1505 = vmul.f32 %v1377, 0.7978846
        %v1506 = vmul.f32 %v1378, 0.7978846
        %v1507 = vmul.f32 %v1379, 0.7978846
        %v1508 = vmul.f32 %v1380, 0.7978846
        %v1509 = vmul.f32 %v1381, 0.7978846
        %v1510 = vmul.f32 %v1382, 0.7978846
        %v1511 = vmul.f32 %v1383, 0.7978846
        %v1512 = vmul.f32 %v1384, 0.7978846
        %v1513 = vmul.f32 %v1385, 0.7978846
        %v1514 = vmul.f32 %v1386, 0.7978846
        %v1515 = vmul.f32 %v1387, 0.7978846
        %v1516 = vmul.f32 %v1388, 0.7978846
        %v1517 = vmul.f32 %v1389, 0.7978846
        %v1518 = vmul.f32 %v1390, 0.7978846
        %v1519 = vmul.f32 %v1391, 0.7978846
        %v1520 = vmul.f32 %v1392, 0.7978846
        %v1521 = vmul.f32 %v1393, 0.7978846
        %v1522 = vmul.f32 %v1394, 0.7978846
        %v1523 = vmul.f32 %v1395, 0.7978846
        %v1524 = vmul.f32 %v1396, 0.7978846
        %v1525 = vmul.f32 %v1397, 0.7978846
        %v1526 = vmul.f32 %v1398, 0.7978846
        %v1527 = vmul.f32 %v1399, 0.7978846
        %v1528 = vmul.f32 %v1400, 0.7978846
        %v1529 = vmul.f32 %v1401, 0.7978846
        %v1530 = vmul.f32 %v1402, 0.7978846
        %v1531 = vmul.f32 %v1403, 0.7978846
        %v1532 = vmul.f32 %v1404, 0.7978846
        %v1533 = vmul.f32 %v1405, 0.7978846
        %v1534 = vmul.f32 %v1406, 0.7978846
        %v1535 = vmul.f32 %v1407, 0.7978846
        %v1536 = vmul.f32 %v1408, 0.7978846
        %v1537 = vmul.f32 %v1409, 0.7978846
        %v1538 = vmul.f32 %v1410, 0.7978846
        %v1539 = vmul.f32 %v1411, 0.7978846
        %v1540 = vmul.f32 %v1412, 0.7978846
        %v1541 = vmul.f32 %v1413, 0.7978846
        %v1542 = vmul.f32 %v1414, 0.7978846
        %v1543 = vmul.f32 %v1415, 0.7978846
        %v1544 = vmul.f32 %v1416, 0.7978846
        %v1545 = vmul.f32 %v1417, 0.7978846
        %v1546 = vmul.f32 %v1418, 0.7978846
        %v1547 = vmul.f32 %v1419, 0.7978846
        %v1548 = vmul.f32 %v1420, 0.7978846
        %v1549 = vmul.f32 %v1421, 0.7978846
        %v1550 = vmul.f32 %v1422, 0.7978846
        %v1551 = vmul.f32 %v1423, 0.7978846
        %v1552 = vmul.f32 %v1424, 0.7978846
        %v1553 = vmul.f32 %v1425, 0.7978846
        %v1554 = vmul.f32 %v1426, 0.7978846
        %v1555 = vmul.f32 %v1427, 0.7978846
        %v1556 = vmul.f32 %v1428, 0.7978846
        %v1557 = vmul.f32 %v1429, 0.7978846
        %v1558 = vmul.f32 %v1430, 0.7978846
        %v1559 = vmul.f32 %v1431, 0.7978846
        %v1560 = vmul.f32 %v1432, 0.7978846
        %v1561 = vmul.f32 %v1433, 0.7978846
        %v1562 = vmul.f32 %v1434, 0.7978846
        %v1563 = vmul.f32 %v1435, 0.7978846
        %v1564 = vmul.f32 %v1436, 0.7978846
        %v1565 = vmul.f32 %v1437, 0.7978846
        %v1566 = vmul.f32 %v1438, 0.7978846
        %v1567 = vmul.f32 %v1439, 0.7978846
        %v1568 = vmul.f32 %v1440, 0.7978846
        %v1569 = vmul.f32 %v1441, 0.7978846
        %v1570 = vmul.f32 %v1442, 0.7978846
        %v1571 = vmul.f32 %v1443, 0.7978846
        %v1572 = vmul.f32 %v1444, 0.7978846
        %v1573 = vmul.f32 %v1445, 0.7978846
        %v1574 = vmul.f32 %v1446, 0.7978846
        %v1575 = vmul.f32 %v1447, 0.7978846
        %v1576 = vmul.f32 %v1448, 0.7978846
        %v1577 = vmul.f32 %v1449, 0.7978846
        %v1578 = vmul.f32 %v1450, 0.7978846
        %v1579 = vmul.f32 %v1451, 0.7978846
        %v1580 = vmul.f32 %v1452, 0.7978846
        %v1581 = vmul.f32 %v1453, 0.7978846
        %v1582 = vmul.f32 %v1454, 0.7978846
        %v1583 = vmul.f32 %v1455, 0.7978846
        %v1584 = vmul.f32 %v1456, 0.7978846
        %v1585 = vmul.f32 %v1457, 0.7978846
        %v1586 = vmul.f32 %v1458, 0.7978846
        %v1587 = vmul.f32 %v1459, 0.7978846
        %v1588 = vmul.f32 %v1460, 0.7978846
        %v1589 = vmul.f32 %v1461, 0.7978846
        %v1590 = vmul.f32 %v1462, 0.7978846
        %v1591 = vmul.f32 %v1463, 0.7978846
        %v1592 = vmul.f32 %v1464, 0.7978846
        %v1593 = vmul.f32 %v1465, 0.7978846
        %v1594 = vmul.f32 %v1466, 0.7978846
        %v1595 = vmul.f32 %v1467, 0.7978846
        %v1596 = vmul.f32 %v1468, 0.7978846
        %v1597 = vmul.f32 %v1469, 0.7978846
        %v1598 = vmul.f32 %v1470, 0.7978846
        %v1599 = vmul.f32 %v1471, 0.7978846
        %v1600 = vmul.f32 %v1472, 0.7978846
        %v1601 = vmul.f32 %v1473, 0.7978846
        %v1602 = vmul.f32 %v1474, 0.7978846
        %v1603 = vmul.f32 %v1475, 0.7978846
        %v1604 = vmul.f32 %v1476, 0.7978846
        %v1605 = vmul.f32 %v1477, 0.7978846
        %v1606 = vmul.f32 %v1478, 0.7978846
        %v1607 = vmul.f32 %v1479, 0.7978846
        %v1608 = vmul.f32 %v1480, 0.7978846
        %v1609 = vmul.f32 %v1481, 0.7978846
        %v1610 = vmul.f32 %v1482, 0.7978846
        %v1611 = vmul.f32 %v1483, 0.7978846
        %v1612 = vmul.f32 %v1484, 0.7978846
        %v1613 = vmul.f32 %v1485, 0.7978846
        %v1614 = vtanh.pop %v1486
        %v1615 = vtanh.pop %v1487
        %v1616 = vtanh.pop %v1488
        %v1617 = vtanh.pop %v1489
        %v1618 = vtanh.pop %v1490
        %v1619 = vtanh.pop %v1491
        %v1620 = vtanh.pop %v1492
        %v1621 = vtanh.pop %v1493
        %v1622 = vtanh.pop %v1494
        %v1623 = vtanh.pop %v1495
        %v1624 = vtanh.pop %v1496
        %v1625 = vtanh.pop %v1497
        %v1626 = vtanh.pop %v1498
        %v1627 = vtanh.pop %v1499
        %v1628 = vtanh.pop %v1500
        %v1629 = vtanh.pop %v1501
        %v1630 = vtanh.pop %v1502
        %v1631 = vtanh.pop %v1503
        %v1632 = vtanh.pop %v1504
        %v1633 = vtanh.pop %v1505
        %v1634 = vtanh.pop %v1506
        %v1635 = vtanh.pop %v1507
        %v1636 = vtanh.pop %v1508
        %v1637 = vtanh.pop %v1509
        %v1638 = vtanh.pop %v1510
        %v1639 = vtanh.pop %v1511
        %v1640 = vtanh.pop %v1512
        %v1641 = vtanh.pop %v1513
        %v1642 = vtanh.pop %v1514
        %v1643 = vtanh.pop %v1515
        %v1644 = vtanh.pop %v1516
        %v1645 = vtanh.pop %v1517
        %v1646 = vtanh.pop %v1518
        %v1647 = vtanh.pop %v1519
        %v1648 = vtanh.pop %v1520
        %v1649 = vtanh.pop %v1521
        %v1650 = vtanh.pop %v1522
        %v1651 = vtanh.pop %v1523
        %v1652 = vtanh.pop %v1524
        %v1653 = vtanh.pop %v1525
        %v1654 = vtanh.pop %v1526
        %v1655 = vtanh.pop %v1527
        %v1656 = vtanh.pop %v1528
        %v1657 = vtanh.pop %v1529
        %v1658 = vtanh.pop %v1530
        %v1659 = vtanh.pop %v1531
        %v1660 = vtanh.pop %v1532
        %v1661 = vtanh.pop %v1533
        %v1662 = vtanh.pop %v1534
        %v1663 = vtanh.pop %v1535
        %v1664 = vtanh.pop %v1536
        %v1665 = vtanh.pop %v1537
        %v1666 = vtanh.pop %v1538
        %v1667 = vtanh.pop %v1539
        %v1668 = vtanh.pop %v1540
        %v1669 = vtanh.pop %v1541
        %v1670 = vtanh.pop %v1542
        %v1671 = vtanh.pop %v1543
        %v1672 = vtanh.pop %v1544
        %v1673 = vtanh.pop %v1545
        %v1674 = vtanh.pop %v1546
        %v1675 = vtanh.pop %v1547
        %v1676 = vtanh.pop %v1548
        %v1677 = vtanh.pop %v1549
        %v1678 = vtanh.pop %v1550
        %v1679 = vtanh.pop %v1551
        %v1680 = vtanh.pop %v1552
        %v1681 = vtanh.pop %v1553
        %v1682 = vtanh.pop %v1554
        %v1683 = vtanh.pop %v1555
        %v1684 = vtanh.pop %v1556
        %v1685 = vtanh.pop %v1557
        %v1686 = vtanh.pop %v1558
        %v1687 = vtanh.pop %v1559
        %v1688 = vtanh.pop %v1560
        %v1689 = vtanh.pop %v1561
        %v1690 = vtanh.pop %v1562
        %v1691 = vtanh.pop %v1563
        %v1692 = vtanh.pop %v1564
        %v1693 = vtanh.pop %v1565
        %v1694 = vtanh.pop %v1566
        %v1695 = vtanh.pop %v1567
        %v1696 = vtanh.pop %v1568
        %v1697 = vtanh.pop %v1569
        %v1698 = vtanh.pop %v1570
        %v1699 = vtanh.pop %v1571
        %v1700 = vtanh.pop %v1572
        %v1701 = vtanh.pop %v1573
        %v1702 = vtanh.pop %v1574
        %v1703 = vtanh.pop %v1575
        %v1704 = vtanh.pop %v1576
        %v1705 = vtanh.pop %v1577
        %v1706 = vtanh.pop %v1578
        %v1707 = vtanh.pop %v1579
        %v1708 = vtanh.pop %v1580
        %v1709 = vtanh.pop %v1581
        %v1710 = vtanh.pop %v1582
        %v1711 = vtanh.pop %v1583
        %v1712 = vtanh.pop %v1584
        %v1713 = vtanh.pop %v1585
        %v1714 = vtanh.pop %v1586
        %v1715 = vtanh.pop %v1587
        %v1716 = vtanh.pop %v1588
        %v1717 = vtanh.pop %v1589
        %v1718 = vtanh.pop %v1590
        %v1719 = vtanh.pop %v1591
        %v1720 = vtanh.pop %v1592
        %v1721 = vtanh.pop %v1593
        %v1722 = vtanh.pop %v1594
        %v1723 = vtanh.pop %v1595
        %v1724 = vtanh.pop %v1596
        %v1725 = vtanh.pop %v1597
        %v1726 = vtanh.pop %v1598
        %v1727 = vtanh.pop %v1599
        %v1728 = vtanh.pop %v1600
        %v1729 = vtanh.pop %v1601
        %v1730 = vtanh.pop %v1602
        %v1731 = vtanh.pop %v1603
        %v1732 = vtanh.pop %v1604
        %v1733 = vtanh.pop %v1605
        %v1734 = vtanh.pop %v1606
        %v1735 = vtanh.pop %v1607
        %v1736 = vtanh.pop %v1608
        %v1737 = vtanh.pop %v1609
        %v1738 = vtanh.pop %v1610
        %v1739 = vtanh.pop %v1611
        %v1740 = vtanh.pop %v1612
        %v1741 = vtanh.pop %v1613
        %v1742 = vadd.f32 %v1614, 1.0
        %v1743 = vadd.f32 %v1615, 1.0
        %v1744 = vadd.f32 %v1616, 1.0
        %v1745 = vadd.f32 %v1617, 1.0
        %v1746 = vadd.f32 %v1618, 1.0
        %v1747 = vadd.f32 %v1619, 1.0
        %v1748 = vadd.f32 %v1620, 1.0
        %v1749 = vadd.f32 %v1621, 1.0
        %v1750 = vadd.f32 %v1622, 1.0
        %v1751 = vadd.f32 %v1623, 1.0
        %v1752 = vadd.f32 %v1624, 1.0
        %v1753 = vadd.f32 %v1625, 1.0
        %v1754 = vadd.f32 %v1626, 1.0
        %v1755 = vadd.f32 %v1627, 1.0
        %v1756 = vadd.f32 %v1628, 1.0
        %v1757 = vadd.f32 %v1629, 1.0
        %v1758 = vadd.f32 %v1630, 1.0
        %v1759 = vadd.f32 %v1631, 1.0
        %v1760 = vadd.f32 %v1632, 1.0
        %v1761 = vadd.f32 %v1633, 1.0
        %v1762 = vadd.f32 %v1634, 1.0
        %v1763 = vadd.f32 %v1635, 1.0
        %v1764 = vadd.f32 %v1636, 1.0
        %v1765 = vadd.f32 %v1637, 1.0
        %v1766 = vadd.f32 %v1638, 1.0
        %v1767 = vadd.f32 %v1639, 1.0
        %v1768 = vadd.f32 %v1640, 1.0
        %v1769 = vadd.f32 %v1641, 1.0
        %v1770 = vadd.f32 %v1642, 1.0
        %v1771 = vadd.f32 %v1643, 1.0
        %v1772 = vadd.f32 %v1644, 1.0
        %v1773 = vadd.f32 %v1645, 1.0
        %v1774 = vadd.f32 %v1646, 1.0
        %v1775 = vadd.f32 %v1647, 1.0
        %v1776 = vadd.f32 %v1648, 1.0
        %v1777 = vadd.f32 %v1649, 1.0
        %v1778 = vadd.f32 %v1650, 1.0
        %v1779 = vadd.f32 %v1651, 1.0
        %v1780 = vadd.f32 %v1652, 1.0
        %v1781 = vadd.f32 %v1653, 1.0
        %v1782 = vadd.f32 %v1654, 1.0
        %v1783 = vadd.f32 %v1655, 1.0
        %v1784 = vadd.f32 %v1656, 1.0
        %v1785 = vadd.f32 %v1657, 1.0
        %v1786 = vadd.f32 %v1658, 1.0
        %v1787 = vadd.f32 %v1659, 1.0
        %v1788 = vadd.f32 %v1660, 1.0
        %v1789 = vadd.f32 %v1661, 1.0
        %v1790 = vadd.f32 %v1662, 1.0
        %v1791 = vadd.f32 %v1663, 1.0
        %v1792 = vadd.f32 %v1664, 1.0
        %v1793 = vadd.f32 %v1665, 1.0
        %v1794 = vadd.f32 %v1666, 1.0
        %v1795 = vadd.f32 %v1667, 1.0
        %v1796 = vadd.f32 %v1668, 1.0
        %v1797 = vadd.f32 %v1669, 1.0
        %v1798 = vadd.f32 %v1670, 1.0
        %v1799 = vadd.f32 %v1671, 1.0
        %v1800 = vadd.f32 %v1672, 1.0
        %v1801 = vadd.f32 %v1673, 1.0
        %v1802 = vadd.f32 %v1674, 1.0
        %v1803 = vadd.f32 %v1675, 1.0
        %v1804 = vadd.f32 %v1676, 1.0
        %v1805 = vadd.f32 %v1677, 1.0
        %v1806 = vadd.f32 %v1678, 1.0
        %v1807 = vadd.f32 %v1679, 1.0
        %v1808 = vadd.f32 %v1680, 1.0
        %v1809 = vadd.f32 %v1681, 1.0
        %v1810 = vadd.f32 %v1682, 1.0
        %v1811 = vadd.f32 %v1683, 1.0
        %v1812 = vadd.f32 %v1684, 1.0
        %v1813 = vadd.f32 %v1685, 1.0
        %v1814 = vadd.f32 %v1686, 1.0
        %v1815 = vadd.f32 %v1687, 1.0
        %v1816 = vadd.f32 %v1688, 1.0
        %v1817 = vadd.f32 %v1689, 1.0
        %v1818 = vadd.f32 %v1690, 1.0
        %v1819 = vadd.f32 %v1691, 1.0
        %v1820 = vadd.f32 %v1692, 1.0
        %v1821 = vadd.f32 %v1693, 1.0
        %v1822 = vadd.f32 %v1694, 1.0
        %v1823 = vadd.f32 %v1695, 1.0
        %v1824 = vadd.f32 %v1696, 1.0
        %v1825 = vadd.f32 %v1697, 1.0
        %v1826 = vadd.f32 %v1698, 1.0
        %v1827 = vadd.f32 %v1699, 1.0
        %v1828 = vadd.f32 %v1700, 1.0
        %v1829 = vadd.f32 %v1701, 1.0
        %v1830 = vadd.f32 %v1702, 1.0
        %v1831 = vadd.f32 %v1703, 1.0
        %v1832 = vadd.f32 %v1704, 1.0
        %v1833 = vadd.f32 %v1705, 1.0
        %v1834 = vadd.f32 %v1706, 1.0
        %v1835 = vadd.f32 %v1707, 1.0
        %v1836 = vadd.f32 %v1708, 1.0
        %v1837 = vadd.f32 %v1709, 1.0
        %v1838 = vadd.f32 %v1710, 1.0
        %v1839 = vadd.f32 %v1711, 1.0
        %v1840 = vadd.f32 %v1712, 1.0
        %v1841 = vadd.f32 %v1713, 1.0
        %v1842 = vadd.f32 %v1714, 1.0
        %v1843 = vadd.f32 %v1715, 1.0
        %v1844 = vadd.f32 %v1716, 1.0
        %v1845 = vadd.f32 %v1717, 1.0
        %v1846 = vadd.f32 %v1718, 1.0
        %v1847 = vadd.f32 %v1719, 1.0
        %v1848 = vadd.f32 %v1720, 1.0
        %v1849 = vadd.f32 %v1721, 1.0
        %v1850 = vadd.f32 %v1722, 1.0
        %v1851 = vadd.f32 %v1723, 1.0
        %v1852 = vadd.f32 %v1724, 1.0
        %v1853 = vadd.f32 %v1725, 1.0
        %v1854 = vadd.f32 %v1726, 1.0
        %v1855 = vadd.f32 %v1727, 1.0
        %v1856 = vadd.f32 %v1728, 1.0
        %v1857 = vadd.f32 %v1729, 1.0
        %v1858 = vadd.f32 %v1730, 1.0
        %v1859 = vadd.f32 %v1731, 1.0
        %v1860 = vadd.f32 %v1732, 1.0
        %v1861 = vadd.f32 %v1733, 1.0
        %v1862 = vadd.f32 %v1734, 1.0
        %v1863 = vadd.f32 %v1735, 1.0
        %v1864 = vadd.f32 %v1736, 1.0
        %v1865 = vadd.f32 %v1737, 1.0
        %v1866 = vadd.f32 %v1738, 1.0
        %v1867 = vadd.f32 %v1739, 1.0
        %v1868 = vadd.f32 %v1740, 1.0
        %v1869 = vadd.f32 %v1741, 1.0
        %v1870 = vmul.f32 %v846, %v1742
        %v1871 = vmul.f32 %v847, %v1743
        %v1872 = vmul.f32 %v848, %v1744
        %v1873 = vmul.f32 %v849, %v1745
        %v1874 = vmul.f32 %v850, %v1746
        %v1875 = vmul.f32 %v851, %v1747
        %v1876 = vmul.f32 %v852, %v1748
        %v1877 = vmul.f32 %v853, %v1749
        %v1878 = vmul.f32 %v854, %v1750
        %v1879 = vmul.f32 %v855, %v1751
        %v1880 = vmul.f32 %v856, %v1752
        %v1881 = vmul.f32 %v857, %v1753
        %v1882 = vmul.f32 %v858, %v1754
        %v1883 = vmul.f32 %v859, %v1755
        %v1884 = vmul.f32 %v860, %v1756
        %v1885 = vmul.f32 %v861, %v1757
        %v1886 = vmul.f32 %v862, %v1758
        %v1887 = vmul.f32 %v863, %v1759
        %v1888 = vmul.f32 %v864, %v1760
        %v1889 = vmul.f32 %v865, %v1761
        %v1890 = vmul.f32 %v866, %v1762
        %v1891 = vmul.f32 %v867, %v1763
        %v1892 = vmul.f32 %v868, %v1764
        %v1893 = vmul.f32 %v869, %v1765
        %v1894 = vmul.f32 %v870, %v1766
        %v1895 = vmul.f32 %v871, %v1767
        %v1896 = vmul.f32 %v872, %v1768
        %v1897 = vmul.f32 %v873, %v1769
        %v1898 = vmul.f32 %v874, %v1770
        %v1899 = vmul.f32 %v875, %v1771
        %v1900 = vmul.f32 %v876, %v1772
        %v1901 = vmul.f32 %v877, %v1773
        %v1902 = vmul.f32 %v878, %v1774
        %v1903 = vmul.f32 %v879, %v1775
        %v1904 = vmul.f32 %v880, %v1776
        %v1905 = vmul.f32 %v881, %v1777
        %v1906 = vmul.f32 %v882, %v1778
        %v1907 = vmul.f32 %v883, %v1779
        %v1908 = vmul.f32 %v884, %v1780
        %v1909 = vmul.f32 %v885, %v1781
        %v1910 = vmul.f32 %v886, %v1782
        %v1911 = vmul.f32 %v887, %v1783
        %v1912 = vmul.f32 %v888, %v1784
        %v1913 = vmul.f32 %v889, %v1785
        %v1914 = vmul.f32 %v890, %v1786
        %v1915 = vmul.f32 %v891, %v1787
        %v1916 = vmul.f32 %v892, %v1788
        %v1917 = vmul.f32 %v893, %v1789
        %v1918 = vmul.f32 %v894, %v1790
        %v1919 = vmul.f32 %v895, %v1791
        %v1920 = vmul.f32 %v896, %v1792
        %v1921 = vmul.f32 %v897, %v1793
        %v1922 = vmul.f32 %v898, %v1794
        %v1923 = vmul.f32 %v899, %v1795
        %v1924 = vmul.f32 %v900, %v1796
        %v1925 = vmul.f32 %v901, %v1797
        %v1926 = vmul.f32 %v902, %v1798
        %v1927 = vmul.f32 %v903, %v1799
        %v1928 = vmul.f32 %v904, %v1800
        %v1929 = vmul.f32 %v905, %v1801
        %v1930 = vmul.f32 %v906, %v1802
        %v1931 = vmul.f32 %v907, %v1803
        %v1932 = vmul.f32 %v908, %v1804
        %v1933 = vmul.f32 %v909, %v1805
        %v1934 = vmul.f32 %v910, %v1806
        %v1935 = vmul.f32 %v911, %v1807
        %v1936 = vmul.f32 %v912, %v1808
        %v1937 = vmul.f32 %v913, %v1809
        %v1938 = vmul.f32 %v914, %v1810
        %v1939 = vmul.f32 %v915, %v1811
        %v1940 = vmul.f32 %v916, %v1812
        %v1941 = vmul.f32 %v917, %v1813
        %v1942 = vmul.f32 %v918, %v1814
        %v1943 = vmul.f32 %v919, %v1815
        %v1944 = vmul.f32 %v920, %v1816
        %v1945 = vmul.f32 %v921, %v1817
        %v1946 = vmul.f32 %v922, %v1818
        %v1947 = vmul.f32 %v923, %v1819
        %v1948 = vmul.f32 %v924, %v1820
        %v1949 = vmul.f32 %v925, %v1821
        %v1950 = vmul.f32 %v926, %v1822
        %v1951 = vmul.f32 %v927, %v1823
        %v1952 = vmul.f32 %v928, %v1824
        %v1953 = vmul.f32 %v929, %v1825
        %v1954 = vmul.f32 %v930, %v1826
        %v1955 = vmul.f32 %v931, %v1827
        %v1956 = vmul.f32 %v932, %v1828
        %v1957 = vmul.f32 %v933, %v1829
        %v1958 = vmul.f32 %v934, %v1830
        %v1959 = vmul.f32 %v935, %v1831
        %v1960 = vmul.f32 %v936, %v1832
        %v1961 = vmul.f32 %v937, %v1833
        %v1962 = vmul.f32 %v938, %v1834
        %v1963 = vmul.f32 %v939, %v1835
        %v1964 = vmul.f32 %v940, %v1836
        %v1965 = vmul.f32 %v941, %v1837
        %v1966 = vmul.f32 %v942, %v1838
        %v1967 = vmul.f32 %v943, %v1839
        %v1968 = vmul.f32 %v944, %v1840
        %v1969 = vmul.f32 %v945, %v1841
        %v1970 = vmul.f32 %v946, %v1842
        %v1971 = vmul.f32 %v947, %v1843
        %v1972 = vmul.f32 %v948, %v1844
        %v1973 = vmul.f32 %v949, %v1845
        %v1974 = vmul.f32 %v950, %v1846
        %v1975 = vmul.f32 %v951, %v1847
        %v1976 = vmul.f32 %v952, %v1848
        %v1977 = vmul.f32 %v953, %v1849
        %v1978 = vmul.f32 %v954, %v1850
        %v1979 = vmul.f32 %v955, %v1851
        %v1980 = vmul.f32 %v956, %v1852
        %v1981 = vmul.f32 %v957, %v1853
        %v1982 = vmul.f32 %v958, %v1854
        %v1983 = vmul.f32 %v959, %v1855
        %v1984 = vmul.f32 %v960, %v1856
        %v1985 = vmul.f32 %v961, %v1857
        %v1986 = vmul.f32 %v962, %v1858
        %v1987 = vmul.f32 %v963, %v1859
        %v1988 = vmul.f32 %v964, %v1860
        %v1989 = vmul.f32 %v965, %v1861
        %v1990 = vmul.f32 %v966, %v1862
        %v1991 = vmul.f32 %v967, %v1863
        %v1992 = vmul.f32 %v968, %v1864
        %v1993 = vmul.f32 %v969, %v1865
        %v1994 = vmul.f32 %v970, %v1866
        %v1995 = vmul.f32 %v971, %v1867
        %v1996 = vmul.f32 %v972, %v1868
        %v1997 = vmul.f32 %v973, %v1869
        %v1998 = vpack.c.bf16 %v1872, %v1870
        %v1999 = vpack.c.bf16 %v1873, %v1871
        %v2000 = vpack.c.bf16 %v1876, %v1874
        %v2001 = vpack.c.bf16 %v1877, %v1875
        %v2002 = vpack.c.bf16 %v1880, %v1878
        %v2003 = vpack.c.bf16 %v1881, %v1879
        %v2004 = vpack.c.bf16 %v1884, %v1882
        %v2005 = vpack.c.bf16 %v1885, %v1883
        %v2006 = vpack.c.bf16 %v1888, %v1886
        %v2007 = vpack.c.bf16 %v1889, %v1887
        %v2008 = vpack.c.bf16 %v1892, %v1890
        %v2009 = vpack.c.bf16 %v1893, %v1891
        %v2010 = vpack.c.bf16 %v1896, %v1894
        %v2011 = vpack.c.bf16 %v1897, %v1895
        %v2012 = vpack.c.bf16 %v1900, %v1898
        %v2013 = vpack.c.bf16 %v1901, %v1899
        %v2014 = vpack.c.bf16 %v1904, %v1902
        %v2015 = vpack.c.bf16 %v1905, %v1903
        %v2016 = vpack.c.bf16 %v1908, %v1906
        %v2017 = vpack.c.bf16 %v1909, %v1907
        %v2018 = vpack.c.bf16 %v1912, %v1910
        %v2019 = vpack.c.bf16 %v1913, %v1911
        %v2020 = vpack.c.bf16 %v1916, %v1914
        %v2021 = vpack.c.bf16 %v1917, %v1915
        %v2022 = vpack.c.bf16 %v1920, %v1918
        %v2023 = vpack.c.bf16 %v1921, %v1919
        %v2024 = vpack.c.bf16 %v1924, %v1922
        %v2025 = vpack.c.bf16 %v1925, %v1923
        %v2026 = vpack.c.bf16 %v1928, %v1926
        %v2027 = vpack.c.bf16 %v1929, %v1927
        %v2028 = vpack.c.bf16 %v1932, %v1930
        %v2029 = vpack.c.bf16 %v1933, %v1931
        %v2030 = vpack.c.bf16 %v1936, %v1934
        %v2031 = vpack.c.bf16 %v1937, %v1935
        %v2032 = vpack.c.bf16 %v1940, %v1938
        %v2033 = vpack.c.bf16 %v1941, %v1939
        %v2034 = vpack.c.bf16 %v1944, %v1942
        %v2035 = vpack.c.bf16 %v1945, %v1943
        %v2036 = vpack.c.bf16 %v1948, %v1946
        %v2037 = vpack.c.bf16 %v1949, %v1947
        %v2038 = vpack.c.bf16 %v1952, %v1950
        %v2039 = vpack.c.bf16 %v1953, %v1951
        %v2040 = vpack.c.bf16 %v1956, %v1954
        %v2041 = vpack.c.bf16 %v1957, %v1955
        %v2042 = vpack.c.bf16 %v1960, %v1958
        %v2043 = vpack.c.bf16 %v1961, %v1959
        %v2044 = vpack.c.bf16 %v1964, %v1962
        %v2045 = vpack.c.bf16 %v1965, %v1963
        %v2046 = vpack.c.bf16 %v1968, %v1966
        %v2047 = vpack.c.bf16 %v1969, %v1967
        %v2048 = vpack.c.bf16 %v1972, %v1970
        %v2049 = vpack.c.bf16 %v1973, %v1971
        %v2050 = vpack.c.bf16 %v1976, %v1974
        %v2051 = vpack.c.bf16 %v1977, %v1975
        %v2052 = vpack.c.bf16 %v1980, %v1978
        %v2053 = vpack.c.bf16 %v1981, %v1979
        %v2054 = vpack.c.bf16 %v1984, %v1982
        %v2055 = vpack.c.bf16 %v1985, %v1983
        %v2056 = vpack.c.bf16 %v1988, %v1986
        %v2057 = vpack.c.bf16 %v1989, %v1987
        %v2058 = vpack.c.bf16 %v1992, %v1990
        %v2059 = vpack.c.bf16 %v1993, %v1991
        %v2060 = vpack.c.bf16 %v1996, %v1994
        %v2061 = vpack.c.bf16 %v1997, %v1995
        %v2062 = vld [vmem:[#allocation7] sm:$0xf]
        %v2063 = vld [vmem:[#allocation7 + $0x4] sm:$0xf]
        %v2064 = vld [vmem:[#allocation7 + $0x8] sm:$0xf]
        %v2065 = vld [vmem:[#allocation7 + $0xc] sm:$0xf]
        %v2066 = vld [vmem:[#allocation7 + $0x10] sm:$0xf]
        %v2067 = vld [vmem:[#allocation7 + $0x14] sm:$0xf]
        %v2068 = vld [vmem:[#allocation7 + $0x18] sm:$0xf]
        %v2069 = vld [vmem:[#allocation7 + $0x1c] sm:$0xf]
        %v2070 = vld [vmem:[#allocation7 + $0x20] sm:$0xf]
        %v2071 = vld [vmem:[#allocation7 + $0x24] sm:$0xf]
        %v2072 = vld [vmem:[#allocation7 + $0x28] sm:$0xf]
        %v2073 = vld [vmem:[#allocation7 + $0x2c] sm:$0xf]
        %v2074 = vld [vmem:[#allocation7 + $0x30] sm:$0xf]
        %v2075 = vld [vmem:[#allocation7 + $0x34] sm:$0xf]
        %v2076 = vld [vmem:[#allocation7 + $0x38] sm:$0xf]
        %v2077 = vld [vmem:[#allocation7 + $0x3c] sm:$0xf]
        %v2078 = vld [vmem:[#allocation7 + $0x40] sm:$0xf]
        %v2079 = vld [vmem:[#allocation7 + $0x44] sm:$0xf]
        %v2080 = vld [vmem:[#allocation7 + $0x48] sm:$0xf]
        %v2081 = vld [vmem:[#allocation7 + $0x4c] sm:$0xf]
        %v2082 = vld [vmem:[#allocation7 + $0x50] sm:$0xf]
        %v2083 = vld [vmem:[#allocation7 + $0x54] sm:$0xf]
        %v2084 = vld [vmem:[#allocation7 + $0x58] sm:$0xf]
        %v2085 = vld [vmem:[#allocation7 + $0x5c] sm:$0xf]
        %v2086 = vld [vmem:[#allocation7 + $0x60] sm:$0xf]
        %v2087 = vld [vmem:[#allocation7 + $0x64] sm:$0xf]
        %v2088 = vld [vmem:[#allocation7 + $0x68] sm:$0xf]
        %v2089 = vld [vmem:[#allocation7 + $0x6c] sm:$0xf]
        %v2090 = vld [vmem:[#allocation7 + $0x70] sm:$0xf]
        %v2091 = vld [vmem:[#allocation7 + $0x74] sm:$0xf]
        %v2092 = vld [vmem:[#allocation7 + $0x78] sm:$0xf]
        %v2093 = vld [vmem:[#allocation7 + $0x7c] sm:$0xf]
        %v2094 = vld [vmem:[%s4] sm:$0x1]
        %v2096 = vlaneseq
        %v2097 = vshrl.u32 %v2096, 7
        %v2098 = vsub.s32 0, %v2097
        %v2099 = vrot.slane %v2094, %v2098
        %v2133 = vunpack.c.l.b16 %v2062
        %v2134 = vunpack.c.l.b16 %v2063
        %v2135 = vunpack.c.l.b16 %v2064
        %v2136 = vunpack.c.l.b16 %v2065
        %v2137 = vunpack.c.l.b16 %v2066
        %v2138 = vunpack.c.l.b16 %v2067
        %v2139 = vunpack.c.l.b16 %v2068
        %v2140 = vunpack.c.l.b16 %v2069
        %v2141 = vunpack.c.l.b16 %v2070
        %v2142 = vunpack.c.l.b16 %v2071
        %v2143 = vunpack.c.l.b16 %v2072
        %v2144 = vunpack.c.l.b16 %v2073
        %v2145 = vunpack.c.l.b16 %v2074
        %v2146 = vunpack.c.l.b16 %v2075
        %v2147 = vunpack.c.l.b16 %v2076
        %v2148 = vunpack.c.l.b16 %v2077
        %v2149 = vunpack.c.l.b16 %v2078
        %v2150 = vunpack.c.l.b16 %v2079
        %v2151 = vunpack.c.l.b16 %v2080
        %v2152 = vunpack.c.l.b16 %v2081
        %v2153 = vunpack.c.l.b16 %v2082
        %v2154 = vunpack.c.l.b16 %v2083
        %v2155 = vunpack.c.l.b16 %v2084
        %v2156 = vunpack.c.l.b16 %v2085
        %v2157 = vunpack.c.l.b16 %v2086
        %v2158 = vunpack.c.l.b16 %v2087
        %v2159 = vunpack.c.l.b16 %v2088
        %v2160 = vunpack.c.l.b16 %v2089
        %v2161 = vunpack.c.l.b16 %v2090
        %v2162 = vunpack.c.l.b16 %v2091
        %v2163 = vunpack.c.l.b16 %v2092
        %v2164 = vunpack.c.l.b16 %v2093
        %v2165 = vpack.c.b16 %v2134, %v2133
        %v2166 = vpack.c.b16 %v2136, %v2135
        %v2167 = vpack.c.b16 %v2138, %v2137
        %v2168 = vpack.c.b16 %v2140, %v2139
        %v2169 = vpack.c.b16 %v2142, %v2141
        %v2170 = vpack.c.b16 %v2144, %v2143
        %v2171 = vpack.c.b16 %v2146, %v2145
        %v2172 = vpack.c.b16 %v2148, %v2147
        %v2173 = vpack.c.b16 %v2150, %v2149
        %v2174 = vpack.c.b16 %v2152, %v2151
        %v2175 = vpack.c.b16 %v2154, %v2153
        %v2176 = vpack.c.b16 %v2156, %v2155
        %v2177 = vpack.c.b16 %v2158, %v2157
        %v2178 = vpack.c.b16 %v2160, %v2159
        %v2179 = vpack.c.b16 %v2162, %v2161
        %v2180 = vpack.c.b16 %v2164, %v2163
        %2197 = vmatprep.subr.bf16.mxu0 0
        %2198 = vmatpush1.bf16.msra.mxu0 %v2165
        %2199 = vmatprep.subr.bf16.mxu0 0
        %2200 = vmatpush1.bf16.msra.mxu0 %v2166
        %2201 = vmatprep.subr.bf16.mxu0 0
        %2202 = vmatpush1.bf16.msra.mxu0 %v2167
        %2203 = vmatprep.subr.bf16.mxu0 0
        %2204 = vmatpush1.bf16.msra.mxu0 %v2168
        %2205 = vmatprep.subr.bf16.mxu0 0
        %2206 = vmatpush1.bf16.msra.mxu0 %v2169
        %2207 = vmatprep.subr.bf16.mxu0 0
        %2208 = vmatpush1.bf16.msra.mxu0 %v2170
        %2209 = vmatprep.subr.bf16.mxu0 0
        %2210 = vmatpush1.bf16.msra.mxu0 %v2171
        %2211 = vmatprep.subr.bf16.mxu0 0
        %2212 = vmatpush1.bf16.msra.mxu0 %v2172
        %2213 = vmatprep.subr.bf16.mxu0 0
        %2214 = vmatpush1.bf16.msra.mxu0 %v2173
        %2215 = vmatprep.subr.bf16.mxu0 0
        %2216 = vmatpush1.bf16.msra.mxu0 %v2174
        %2217 = vmatprep.subr.bf16.mxu0 0
        %2218 = vmatpush1.bf16.msra.mxu0 %v2175
        %2219 = vmatprep.subr.bf16.mxu0 0
        %2220 = vmatpush1.bf16.msra.mxu0 %v2176
        %2221 = vmatprep.subr.bf16.mxu0 0
        %2222 = vmatpush1.bf16.msra.mxu0 %v2177
        %2223 = vmatprep.subr.bf16.mxu0 0
        %2224 = vmatpush1.bf16.msra.mxu0 %v2178
        %2225 = vmatprep.subr.bf16.mxu0 0
        %2226 = vmatpush1.bf16.msra.mxu0 %v2179
        %2227 = vmatprep.subr.bf16.mxu0 0
        %2228 = vmatpush1.bf16.msra.mxu0 %v2180
        %2229 = vmatprep.mubr.bf16.mxu0 %v1999
        %2230 = vmatmul.mubr.bf16.gmra.mrb[0].mxu0 %v1998
        %v2231 = vpop.f32.mrb[0].mxu0
        %v2232 = vadd.f32 %v2099, %v2231
        %v2233 = vpop.f32.mrb[0].mxu0
        %v2234 = vpop.f32.mrb[0].mxu0
        %v2235 = vadd.f32 %v2099, %v2234
        %v2236 = vpop.f32.mrb[0].mxu0
        %2237 = vmatprep.mubr.bf16.mxu0 %v2001
        %2238 = vmatmul.mubr.bf16.gmra.mrb[0].mxu0 %v2000
        %v2239 = vpop.f32.mrb[0].mxu0
        %v2240 = vadd.f32 %v2099, %v2239
        %v2241 = vpop.f32.mrb[0].mxu0
        %v2242 = vpop.f32.mrb[0].mxu0
        %v2243 = vadd.f32 %v2099, %v2242
        %v2244 = vpop.f32.mrb[0].mxu0
        %2245 = vmatprep.mubr.bf16.mxu0 %v2003
        %2246 = vmatmul.mubr.bf16.gmra.mrb[0].mxu0 %v2002
        %v2247 = vpop.f32.mrb[0].mxu0
        %v2248 = vadd.f32 %v2099, %v2247
        %v2249 = vpop.f32.mrb[0].mxu0
        %v2250 = vpop.f32.mrb[0].mxu0
        %v2251 = vadd.f32 %v2099, %v2250
        %v2252 = vpop.f32.mrb[0].mxu0
        %2253 = vmatprep.mubr.bf16.mxu0 %v2005
        %2254 = vmatmul.mubr.bf16.gmra.mrb[0].mxu0 %v2004
        %v2255 = vpop.f32.mrb[0].mxu0
        %v2256 = vadd.f32 %v2099, %v2255
        %v2257 = vpop.f32.mrb[0].mxu0
        %v2258 = vpop.f32.mrb[0].mxu0
        %v2259 = vadd.f32 %v2099, %v2258
        %v2260 = vpop.f32.mrb[0].mxu0
        %2261 = vmatprep.mubr.bf16.mxu0 %v2007
        %2262 = vmatmul.mubr.bf16.gmra.mrb[0].mxu0 %v2006
        %v2263 = vpop.f32.mrb[0].mxu0
        %v2264 = vadd.f32 %v2099, %v2263
        %v2265 = vpop.f32.mrb[0].mxu0
        %v2266 = vpop.f32.mrb[0].mxu0
        %v2267 = vadd.f32 %v2099, %v2266
        %v2268 = vpop.f32.mrb[0].mxu0
        %2269 = vmatprep.mubr.bf16.mxu0 %v2009
        %2270 = vmatmul.mubr.bf16.gmra.mrb[0].mxu0 %v2008
        %v2271 = vpop.f32.mrb[0].mxu0
        %v2272 = vadd.f32 %v2099, %v2271
        %v2273 = vpop.f32.mrb[0].mxu0
        %v2274 = vpop.f32.mrb[0].mxu0
        %v2275 = vadd.f32 %v2099, %v2274
        %v2276 = vpop.f32.mrb[0].mxu0
        %2277 = vmatprep.mubr.bf16.mxu0 %v2011
        %2278 = vmatmul.mubr.bf16.gmra.mrb[0].mxu0 %v2010
        %v2279 = vpop.f32.mrb[0].mxu0
        %v2280 = vadd.f32 %v2099, %v2279
        %v2281 = vpop.f32.mrb[0].mxu0
        %v2282 = vpop.f32.mrb[0].mxu0
        %v2283 = vadd.f32 %v2099, %v2282
        %v2284 = vpop.f32.mrb[0].mxu0
        %2285 = vmatprep.mubr.bf16.mxu0 %v2013
        %2286 = vmatmul.mubr.bf16.gmra.mrb[0].mxu0 %v2012
        %v2287 = vpop.f32.mrb[0].mxu0
        %v2288 = vadd.f32 %v2099, %v2287
        %v2289 = vpop.f32.mrb[0].mxu0
        %v2290 = vpop.f32.mrb[0].mxu0
        %v2291 = vadd.f32 %v2099, %v2290
        %v2292 = vpop.f32.mrb[0].mxu0
        %2293 = vmatprep.mubr.bf16.mxu0 %v2015
        %2294 = vmatmul.mubr.bf16.gmra.mrb[0].mxu0 %v2014
        %v2295 = vpop.f32.mrb[0].mxu0
        %v2296 = vadd.f32 %v2099, %v2295
        %v2297 = vpop.f32.mrb[0].mxu0
        %v2298 = vpop.f32.mrb[0].mxu0
        %v2299 = vadd.f32 %v2099, %v2298
        %v2300 = vpop.f32.mrb[0].mxu0
        %2301 = vmatprep.mubr.bf16.mxu0 %v2017
        %2302 = vmatmul.mubr.bf16.gmra.mrb[0].mxu0 %v2016
        %v2303 = vpop.f32.mrb[0].mxu0
        %v2304 = vadd.f32 %v2099, %v2303
        %v2305 = vpop.f32.mrb[0].mxu0
        %v2306 = vpop.f32.mrb[0].mxu0
        %v2307 = vadd.f32 %v2099, %v2306
        %v2308 = vpop.f32.mrb[0].mxu0
        %2309 = vmatprep.mubr.bf16.mxu0 %v2019
        %2310 = vmatmul.mubr.bf16.gmra.mrb[0].mxu0 %v2018
        %v2311 = vpop.f32.mrb[0].mxu0
        %v2312 = vadd.f32 %v2099, %v2311
        %v2313 = vpop.f32.mrb[0].mxu0
        %v2314 = vpop.f32.mrb[0].mxu0
        %v2315 = vadd.f32 %v2099, %v2314
        %v2316 = vpop.f32.mrb[0].mxu0
        %2317 = vmatprep.mubr.bf16.mxu0 %v2021
        %2318 = vmatmul.mubr.bf16.gmra.mrb[0].mxu0 %v2020
        %v2319 = vpop.f32.mrb[0].mxu0
        %v2320 = vadd.f32 %v2099, %v2319
        %v2321 = vpop.f32.mrb[0].mxu0
        %v2322 = vpop.f32.mrb[0].mxu0
        %v2323 = vadd.f32 %v2099, %v2322
        %v2324 = vpop.f32.mrb[0].mxu0
        %2325 = vmatprep.mubr.bf16.mxu0 %v2023
        %2326 = vmatmul.mubr.bf16.gmra.mrb[0].mxu0 %v2022
        %v2327 = vpop.f32.mrb[0].mxu0
        %v2328 = vadd.f32 %v2099, %v2327
        %v2329 = vpop.f32.mrb[0].mxu0
        %v2330 = vpop.f32.mrb[0].mxu0
        %v2331 = vadd.f32 %v2099, %v2330
        %v2332 = vpop.f32.mrb[0].mxu0
        %2333 = vmatprep.mubr.bf16.mxu0 %v2025
        %2334 = vmatmul.mubr.bf16.gmra.mrb[0].mxu0 %v2024
        %v2335 = vpop.f32.mrb[0].mxu0
        %v2336 = vadd.f32 %v2099, %v2335
        %v2337 = vpop.f32.mrb[0].mxu0
        %v2338 = vpop.f32.mrb[0].mxu0
        %v2339 = vadd.f32 %v2099, %v2338
        %v2340 = vpop.f32.mrb[0].mxu0
        %2341 = vmatprep.mubr.bf16.mxu0 %v2027
        %2342 = vmatmul.mubr.bf16.gmra.mrb[0].mxu0 %v2026
        %v2343 = vpop.f32.mrb[0].mxu0
        %v2344 = vadd.f32 %v2099, %v2343
        %v2345 = vpop.f32.mrb[0].mxu0
        %v2346 = vpop.f32.mrb[0].mxu0
        %v2347 = vadd.f32 %v2099, %v2346
        %v2348 = vpop.f32.mrb[0].mxu0
        %2349 = vmatprep.mubr.bf16.mxu0 %v2029
        %2350 = vmatmul.mubr.bf16.gmra.mrb[0].mxu0 %v2028
        %v2351 = vpop.f32.mrb[0].mxu0
        %v2352 = vadd.f32 %v2099, %v2351
        %v2353 = vpop.f32.mrb[0].mxu0
        %v2354 = vpop.f32.mrb[0].mxu0
        %v2355 = vadd.f32 %v2099, %v2354
        %v2356 = vpop.f32.mrb[0].mxu0
        %2357 = vmatprep.mubr.bf16.mxu0 %v2031
        %2358 = vmatmul.mubr.bf16.gmra.mrb[0].mxu0 %v2030
        %v2359 = vpop.f32.mrb[0].mxu0
        %v2360 = vadd.f32 %v2099, %v2359
        %v2361 = vpop.f32.mrb[0].mxu0
        %v2362 = vpop.f32.mrb[0].mxu0
        %v2363 = vadd.f32 %v2099, %v2362
        %v2364 = vpop.f32.mrb[0].mxu0
        %2365 = vmatprep.mubr.bf16.mxu0 %v2033
        %2366 = vmatmul.mubr.bf16.gmra.mrb[0].mxu0 %v2032
        %v2367 = vpop.f32.mrb[0].mxu0
        %v2368 = vadd.f32 %v2099, %v2367
        %v2369 = vpop.f32.mrb[0].mxu0
        %v2370 = vpop.f32.mrb[0].mxu0
        %v2371 = vadd.f32 %v2099, %v2370
        %v2372 = vpop.f32.mrb[0].mxu0
        %2373 = vmatprep.mubr.bf16.mxu0 %v2035
        %2374 = vmatmul.mubr.bf16.gmra.mrb[0].mxu0 %v2034
        %v2375 = vpop.f32.mrb[0].mxu0
        %v2376 = vadd.f32 %v2099, %v2375
        %v2377 = vpop.f32.mrb[0].mxu0
        %v2378 = vpop.f32.mrb[0].mxu0
        %v2379 = vadd.f32 %v2099, %v2378
        %v2380 = vpop.f32.mrb[0].mxu0
        %2381 = vmatprep.mubr.bf16.mxu0 %v2037
        %2382 = vmatmul.mubr.bf16.gmra.mrb[0].mxu0 %v2036
        %v2383 = vpop.f32.mrb[0].mxu0
        %v2384 = vadd.f32 %v2099, %v2383
        %v2385 = vpop.f32.mrb[0].mxu0
        %v2386 = vpop.f32.mrb[0].mxu0
        %v2387 = vadd.f32 %v2099, %v2386
        %v2388 = vpop.f32.mrb[0].mxu0
        %2389 = vmatprep.mubr.bf16.mxu0 %v2039
        %2390 = vmatmul.mubr.bf16.gmra.mrb[0].mxu0 %v2038
        %v2391 = vpop.f32.mrb[0].mxu0
        %v2392 = vadd.f32 %v2099, %v2391
        %v2393 = vpop.f32.mrb[0].mxu0
        %v2394 = vpop.f32.mrb[0].mxu0
        %v2395 = vadd.f32 %v2099, %v2394
        %v2396 = vpop.f32.mrb[0].mxu0
        %2397 = vmatprep.mubr.bf16.mxu0 %v2041
        %2398 = vmatmul.mubr.bf16.gmra.mrb[0].mxu0 %v2040
        %v2399 = vpop.f32.mrb[0].mxu0
        %v2400 = vadd.f32 %v2099, %v2399
        %v2401 = vpop.f32.mrb[0].mxu0
        %v2402 = vpop.f32.mrb[0].mxu0
        %v2403 = vadd.f32 %v2099, %v2402
        %v2404 = vpop.f32.mrb[0].mxu0
        %2405 = vmatprep.mubr.bf16.mxu0 %v2043
        %2406 = vmatmul.mubr.bf16.gmra.mrb[0].mxu0 %v2042
        %v2407 = vpop.f32.mrb[0].mxu0
        %v2408 = vadd.f32 %v2099, %v2407
        %v2409 = vpop.f32.mrb[0].mxu0
        %v2410 = vpop.f32.mrb[0].mxu0
        %v2411 = vadd.f32 %v2099, %v2410
        %v2412 = vpop.f32.mrb[0].mxu0
        %2413 = vmatprep.mubr.bf16.mxu0 %v2045
        %2414 = vmatmul.mubr.bf16.gmra.mrb[0].mxu0 %v2044
        %v2415 = vpop.f32.mrb[0].mxu0
        %v2416 = vadd.f32 %v2099, %v2415
        %v2417 = vpop.f32.mrb[0].mxu0
        %v2418 = vpop.f32.mrb[0].mxu0
        %v2419 = vadd.f32 %v2099, %v2418
        %v2420 = vpop.f32.mrb[0].mxu0
        %2421 = vmatprep.mubr.bf16.mxu0 %v2047
        %2422 = vmatmul.mubr.bf16.gmra.mrb[0].mxu0 %v2046
        %v2423 = vpop.f32.mrb[0].mxu0
        %v2424 = vadd.f32 %v2099, %v2423
        %v2425 = vpop.f32.mrb[0].mxu0
        %v2426 = vpop.f32.mrb[0].mxu0
        %v2427 = vadd.f32 %v2099, %v2426
        %v2428 = vpop.f32.mrb[0].mxu0
        %2429 = vmatprep.mubr.bf16.mxu0 %v2049
        %2430 = vmatmul.mubr.bf16.gmra.mrb[0].mxu0 %v2048
        %v2431 = vpop.f32.mrb[0].mxu0
        %v2432 = vadd.f32 %v2099, %v2431
        %v2433 = vpop.f32.mrb[0].mxu0
        %v2434 = vpop.f32.mrb[0].mxu0
        %v2435 = vadd.f32 %v2099, %v2434
        %v2436 = vpop.f32.mrb[0].mxu0
        %2437 = vmatprep.mubr.bf16.mxu0 %v2051
        %2438 = vmatmul.mubr.bf16.gmra.mrb[0].mxu0 %v2050
        %v2439 = vpop.f32.mrb[0].mxu0
        %v2440 = vadd.f32 %v2099, %v2439
        %v2441 = vpop.f32.mrb[0].mxu0
        %v2442 = vpop.f32.mrb[0].mxu0
        %v2443 = vadd.f32 %v2099, %v2442
        %v2444 = vpop.f32.mrb[0].mxu0
        %2445 = vmatprep.mubr.bf16.mxu0 %v2053
        %2446 = vmatmul.mubr.bf16.gmra.mrb[0].mxu0 %v2052
        %v2447 = vpop.f32.mrb[0].mxu0
        %v2448 = vadd.f32 %v2099, %v2447
        %v2449 = vpop.f32.mrb[0].mxu0
        %v2450 = vpop.f32.mrb[0].mxu0
        %v2451 = vadd.f32 %v2099, %v2450
        %v2452 = vpop.f32.mrb[0].mxu0
        %2453 = vmatprep.mubr.bf16.mxu0 %v2055
        %2454 = vmatmul.mubr.bf16.gmra.mrb[0].mxu0 %v2054
        %v2455 = vpop.f32.mrb[0].mxu0
        %v2456 = vadd.f32 %v2099, %v2455
        %v2457 = vpop.f32.mrb[0].mxu0
        %v2458 = vpop.f32.mrb[0].mxu0
        %v2459 = vadd.f32 %v2099, %v2458
        %v2460 = vpop.f32.mrb[0].mxu0
        %2461 = vmatprep.mubr.bf16.mxu0 %v2057
        %2462 = vmatmul.mubr.bf16.gmra.mrb[0].mxu0 %v2056
        %v2463 = vpop.f32.mrb[0].mxu0
        %v2464 = vadd.f32 %v2099, %v2463
        %v2465 = vpop.f32.mrb[0].mxu0
        %v2466 = vpop.f32.mrb[0].mxu0
        %v2467 = vadd.f32 %v2099, %v2466
        %v2468 = vpop.f32.mrb[0].mxu0
        %2469 = vmatprep.mubr.bf16.mxu0 %v2059
        %2470 = vmatmul.mubr.bf16.gmra.mrb[0].mxu0 %v2058
        %v2471 = vpop.f32.mrb[0].mxu0
        %v2472 = vadd.f32 %v2099, %v2471
        %v2473 = vpop.f32.mrb[0].mxu0
        %v2474 = vpop.f32.mrb[0].mxu0
        %v2475 = vadd.f32 %v2099, %v2474
        %v2476 = vpop.f32.mrb[0].mxu0
        %2477 = vmatprep.mubr.bf16.mxu0 %v2061
        %2478 = vmatmul.mubr.bf16.gmra.mrb[0].mxu0 %v2060
        %v2479 = vpop.f32.mrb[0].mxu0
        %v2480 = vadd.f32 %v2099, %v2479
        %v2481 = vpop.f32.mrb[0].mxu0
        %v2482 = vpop.f32.mrb[0].mxu0
        %v2483 = vadd.f32 %v2099, %v2482
        %v2484 = vpop.f32.mrb[0].mxu0
        %2485 = vdwg.mxu0
        %v2486 = vadd.f32 %v2232, %v289
        %v2487 = vadd.f32 %v2235, %v290
        %v2488 = vadd.f32 %v2240, %v291
        %v2489 = vadd.f32 %v2243, %v292
        %v2490 = vadd.f32 %v2248, %v293
        %v2491 = vadd.f32 %v2251, %v294
        %v2492 = vadd.f32 %v2256, %v295
        %v2493 = vadd.f32 %v2259, %v296
        %v2494 = vadd.f32 %v2264, %v297
        %v2495 = vadd.f32 %v2267, %v298
        %v2496 = vadd.f32 %v2272, %v299
        %v2497 = vadd.f32 %v2275, %v300
        %v2498 = vadd.f32 %v2280, %v301
        %v2499 = vadd.f32 %v2283, %v302
        %v2500 = vadd.f32 %v2288, %v303
        %v2501 = vadd.f32 %v2291, %v304
        %v2502 = vadd.f32 %v2296, %v305
        %v2503 = vadd.f32 %v2299, %v306
        %v2504 = vadd.f32 %v2304, %v307
        %v2505 = vadd.f32 %v2307, %v308
        %v2506 = vadd.f32 %v2312, %v309
        %v2507 = vadd.f32 %v2315, %v310
        %v2508 = vadd.f32 %v2320, %v311
        %v2509 = vadd.f32 %v2323, %v312
        %v2510 = vadd.f32 %v2328, %v313
        %v2511 = vadd.f32 %v2331, %v314
        %v2512 = vadd.f32 %v2336, %v315
        %v2513 = vadd.f32 %v2339, %v316
        %v2514 = vadd.f32 %v2344, %v317
        %v2515 = vadd.f32 %v2347, %v318
        %v2516 = vadd.f32 %v2352, %v319
        %v2517 = vadd.f32 %v2355, %v320
        %v2518 = vadd.f32 %v2360, %v321
        %v2519 = vadd.f32 %v2363, %v322
        %v2520 = vadd.f32 %v2368, %v323
        %v2521 = vadd.f32 %v2371, %v324
        %v2522 = vadd.f32 %v2376, %v325
        %v2523 = vadd.f32 %v2379, %v326
        %v2524 = vadd.f32 %v2384, %v327
        %v2525 = vadd.f32 %v2387, %v328
        %v2526 = vadd.f32 %v2392, %v329
        %v2527 = vadd.f32 %v2395, %v330
        %v2528 = vadd.f32 %v2400, %v331
        %v2529 = vadd.f32 %v2403, %v332
        %v2530 = vadd.f32 %v2408, %v333
        %v2531 = vadd.f32 %v2411, %v334
        %v2532 = vadd.f32 %v2416, %v335
        %v2533 = vadd.f32 %v2419, %v336
        %v2534 = vadd.f32 %v2424, %v337
        %v2535 = vadd.f32 %v2427, %v338
        %v2536 = vadd.f32 %v2432, %v339
        %v2537 = vadd.f32 %v2435, %v340
        %v2538 = vadd.f32 %v2440, %v341
        %v2539 = vadd.f32 %v2443, %v342
        %v2540 = vadd.f32 %v2448, %v343
        %v2541 = vadd.f32 %v2451, %v344
        %v2542 = vadd.f32 %v2456, %v345
        %v2543 = vadd.f32 %v2459, %v346
        %v2544 = vadd.f32 %v2464, %v347
        %v2545 = vadd.f32 %v2467, %v348
        %v2546 = vadd.f32 %v2472, %v349
        %v2547 = vadd.f32 %v2475, %v350
        %v2548 = vadd.f32 %v2480, %v351
        %v2549 = vadd.f32 %v2483, %v352
        %2550 = vst [vmem:[%s277] sm:$0xff] %v2486
        %2551 = vst [vmem:[%s277 + $0x8] sm:$0xff] %v2487
        %2552 = vst [vmem:[%s277 + $0x10] sm:$0xff] %v2488
        %2553 = vst [vmem:[%s277 + $0x18] sm:$0xff] %v2489
        %2554 = vst [vmem:[%s277 + $0x20] sm:$0xff] %v2490
        %2555 = vst [vmem:[%s277 + $0x28] sm:$0xff] %v2491
        %2556 = vst [vmem:[%s277 + $0x30] sm:$0xff] %v2492
        %2557 = vst [vmem:[%s277 + $0x38] sm:$0xff] %v2493
        %2558 = vst [vmem:[%s277 + $0x40] sm:$0xff] %v2494
        %2559 = vst [vmem:[%s277 + $0x48] sm:$0xff] %v2495
        %2560 = vst [vmem:[%s277 + $0x50] sm:$0xff] %v2496
        %2561 = vst [vmem:[%s277 + $0x58] sm:$0xff] %v2497
        %2562 = vst [vmem:[%s277 + $0x60] sm:$0xff] %v2498
        %2563 = vst [vmem:[%s277 + $0x68] sm:$0xff] %v2499
        %2564 = vst [vmem:[%s277 + $0x70] sm:$0xff] %v2500
        %2565 = vst [vmem:[%s277 + $0x78] sm:$0xff] %v2501
        %2566 = vst [vmem:[%s277 + $0x80] sm:$0xff] %v2502
        %2567 = vst [vmem:[%s277 + $0x88] sm:$0xff] %v2503
        %2568 = vst [vmem:[%s277 + $0x90] sm:$0xff] %v2504
        %2569 = vst [vmem:[%s277 + $0x98] sm:$0xff] %v2505
        %2570 = vst [vmem:[%s277 + $0xa0] sm:$0xff] %v2506
        %2571 = vst [vmem:[%s277 + $0xa8] sm:$0xff] %v2507
        %2572 = vst [vmem:[%s277 + $0xb0] sm:$0xff] %v2508
        %2573 = vst [vmem:[%s277 + $0xb8] sm:$0xff] %v2509
        %2574 = vst [vmem:[%s277 + $0xc0] sm:$0xff] %v2510
        %2575 = vst [vmem:[%s277 + $0xc8] sm:$0xff] %v2511
        %2576 = vst [vmem:[%s277 + $0xd0] sm:$0xff] %v2512
        %2577 = vst [vmem:[%s277 + $0xd8] sm:$0xff] %v2513
        %2578 = vst [vmem:[%s277 + $0xe0] sm:$0xff] %v2514
        %2579 = vst [vmem:[%s277 + $0xe8] sm:$0xff] %v2515
        %2580 = vst [vmem:[%s277 + $0xf0] sm:$0xff] %v2516
        %2581 = vst [vmem:[%s277 + $0xf8] sm:$0xff] %v2517
        %2582 = vst [vmem:[%s277 + $0x100] sm:$0xff] %v2518
        %2583 = vst [vmem:[%s277 + $0x108] sm:$0xff] %v2519
        %2584 = vst [vmem:[%s277 + $0x110] sm:$0xff] %v2520
        %2585 = vst [vmem:[%s277 + $0x118] sm:$0xff] %v2521
        %2586 = vst [vmem:[%s277 + $0x120] sm:$0xff] %v2522
        %2587 = vst [vmem:[%s277 + $0x128] sm:$0xff] %v2523
        %2588 = vst [vmem:[%s277 + $0x130] sm:$0xff] %v2524
        %2589 = vst [vmem:[%s277 + $0x138] sm:$0xff] %v2525
        %2590 = vst [vmem:[%s277 + $0x140] sm:$0xff] %v2526
        %2591 = vst [vmem:[%s277 + $0x148] sm:$0xff] %v2527
        %2592 = vst [vmem:[%s277 + $0x150] sm:$0xff] %v2528
        %2593 = vst [vmem:[%s277 + $0x158] sm:$0xff] %v2529
        %2594 = vst [vmem:[%s277 + $0x160] sm:$0xff] %v2530
        %2595 = vst [vmem:[%s277 + $0x168] sm:$0xff] %v2531
        %2596 = vst [vmem:[%s277 + $0x170] sm:$0xff] %v2532
        %2597 = vst [vmem:[%s277 + $0x178] sm:$0xff] %v2533
        %2598 = vst [vmem:[%s277 + $0x180] sm:$0xff] %v2534
        %2599 = vst [vmem:[%s277 + $0x188] sm:$0xff] %v2535
        %2600 = vst [vmem:[%s277 + $0x190] sm:$0xff] %v2536
        %2601 = vst [vmem:[%s277 + $0x198] sm:$0xff] %v2537
        %2602 = vst [vmem:[%s277 + $0x1a0] sm:$0xff] %v2538
        %2603 = vst [vmem:[%s277 + $0x1a8] sm:$0xff] %v2539
        %2604 = vst [vmem:[%s277 + $0x1b0] sm:$0xff] %v2540
        %2605 = vst [vmem:[%s277 + $0x1b8] sm:$0xff] %v2541
        %2606 = vst [vmem:[%s277 + $0x1c0] sm:$0xff] %v2542
        %2607 = vst [vmem:[%s277 + $0x1c8] sm:$0xff] %v2543
        %2608 = vst [vmem:[%s277 + $0x1d0] sm:$0xff] %v2544
        %2609 = vst [vmem:[%s277 + $0x1d8] sm:$0xff] %v2545
        %2610 = vst [vmem:[%s277 + $0x1e0] sm:$0xff] %v2546
        %2611 = vst [vmem:[%s277 + $0x1e8] sm:$0xff] %v2547
        %2612 = vst [vmem:[%s277 + $0x1f0] sm:$0xff] %v2548
        %2613 = vst [vmem:[%s277 + $0x1f8] sm:$0xff] %v2549
        %s2614 = sand.u32 %s141, 1
        %s2615 = scalar_lea.sflag [#allocation4], %s2614
        %s2616 = sand.u32 %s141, 1
        %s2617 = smul.addr %s2616, 512
        %s2618 = scalar_lea.vmem [#allocation8], %s2617
        // Predicated region
        $region53: #{tpu_custom_call.1} parent=39 // pred_check
          %p2619 = pneg %p151
        $region54: #{tpu_custom_call.1} parent=39 // pred_check_branch
          %2621 = sbr.rel (%p2619) target = $region56
        $region55: #{tpu_custom_call.1} parent=39 // pred_region
          %s2622 = smul.u32 64, %s23
          %s2623 = ssub.s32 150, %s2622
          %p2624 = scmp.lt.s32.totalorder %s2623, 64
          %s2625 = scalar_select %p2624, %s2623, 64
          %s2626 = smul.u32 128, %s2625
          %s2628 = ssub.s32 8192, %s2626
          %2629 = vsyncadd %s2615, %s2628
          %p2630 = scmp.ne.s32.totalorder 0, %s2626
          %s2631 = smul.addr %s2622, 128
          %s2632 = scalar_lea.hbm %s5, %s2631
          %s2633 = smul.u32 8, %s2625
          %s2634 = sshll.u32 %s2618, 4
          %s2635 = int_to_ptr.vmem [resolvable:$true] %s2634
          %s2636 = sshll.u32 %s2633, 4
          %2640 = dma.vmem_to_hbm [thread:$0]  (%p2630), %s2635, %s2636, %s2632, %s2615, 128, 128, 8
        $region56: #{tpu_custom_call.1} parent=39 // pred_fallthru
          _
      $region40: #{tpu_custom_call.1} parent=5 // pred_fallthru
        _
      %p2641 = scmp.le.s32.totalorder 2, %s18
      // Predicated region
      $region57: #{tpu_custom_call.1} parent=5 // pred_check
        %p2642 = pneg %p2641
      $region58: #{tpu_custom_call.1} parent=5 // pred_check_branch
        %2644 = sbr.rel (%p2642) target = $region60
      $region59: #{tpu_custom_call.1} parent=5 // pred_region
        %s2645 = ssub.s32 %s18, 2
        // Predicated region
        $region61: #{tpu_custom_call.1} parent=59 // pred_check
          %p2646 = pneg %p157
        $region62: #{tpu_custom_call.1} parent=59 // pred_check_branch
          %2648 = sbr.rel (%p2646) target = $region64
        $region63: #{tpu_custom_call.1} parent=59 // pred_region
          %s2649 = sand.u32 %s142, 1
          %s2650 = scalar_lea.sflag [#allocation4], %s2649
          %s2651 = sand.u32 %s142, 1
          %s2652 = smul.addr %s2651, 512
          %s2653 = scalar_lea.vmem [#allocation8], %s2652
          %2654 = dma.done %s2650, 8192
        $region64: #{tpu_custom_call.1} parent=59 // pred_fallthru
          _
      $region60: #{tpu_custom_call.1} parent=5 // pred_fallthru
        _
    $region6: #{tpu_custom_call.1} parent=1 // loop_footer
      %s22 = sadd.s32 1, %s18
    $region7: #{tpu_custom_call.1} parent=1 // loop_footer_branch
      %17 = sbr.rel target = $region3
    $region8: #{tpu_custom_call.1} parent=1 // loop_exit
      _
    %2655 = vsyncpa [#allocation3], 1
    %s2656 = scalar_lea.sflag [#allocation3], 1
    %2657 = vsyncpa %s2656, 1
    %2658 = vsyncpa [#allocation6], 1
    %2659 = vsyncpa [#allocation4], 1
    %s2660 = scalar_lea.sflag [#allocation4], 1
    %2661 = vsyncpa %s2660, 1

</llo_original>
